<compile_context>
chip_gen: v7x
topology: tpu7x:2x2x1
jax: 0.10.0
libtpu: 0.0.40
codegen_flags: <defaults>
</compile_context>

<pallas_src>
import jax
import jax.numpy as jnp
from jax import lax
from jax.experimental import pallas as pl
from jax.experimental.pallas import tpu as pltpu

EMD_WEIGHT = 0.5
SINKHORN_BLUR = 0.05
SINKHORN_EPS = SINKHORN_BLUR ** 2     # geomloss: eps = blur**p, p=2
SINKHORN_SCALING = 0.5                # geomloss default annealing factor
SINKHORN_ITERS = 14                   # annealing steps (+1 final extrapolation)


def _pairwise_sqdist(a_cols, b_rows):
    """Squared euclidean distances on the VPU (K=3 is too skinny for the MXU).

    a_cols: (N, 3)  -- used for the (N,1) column broadcasts
    b_rows: (3, N)  -- used for the (1,N) row broadcasts (lane-dense)
    returns (N, N)
    """
    n = a_cols.shape[0]
    m = b_rows.shape[1]
    d2 = jnp.zeros((n, m), jnp.float32)
    for k in range(3):                          # static unroll over xyz planes
        diff = a_cols[:, k:k + 1] - b_rows[k:k + 1, :]     # (N, M)
        d2 = d2 + diff * diff
    return d2


def _lse_lane(x, ones_nl):
    """LSE over the lane axis (axis=1): max on XLU, exp-sum on the idle MXU."""
    m = jnp.max(x, axis=1, keepdims=True)                         # (N, 1) XLU
    e = jnp.exp(x - m)                                            # (N, N) EUP
    s = jnp.dot(e, ones_nl, preferred_element_type=jnp.float32)   # (N,128) MXU
    return m + jnp.log(s[:, 0:1])                                 # (N, 1)


def _lse_sub(x):
    """LSE over the sublane axis (axis=0): cheap (VPU adds + small XLU)."""
    m = jnp.max(x, axis=0, keepdims=True)                         # (1, N)
    return m + jnp.log(jnp.sum(jnp.exp(x - m), axis=0, keepdims=True))


def _pcl_kernel(yt_ref, yp_ref, ytT_ref, ypT_ref, out_ref):
    yt = yt_ref[0].astype(jnp.float32)     # (N, 3)
    yp = yp_ref[0].astype(jnp.float32)     # (N, 3)
    ytT = ytT_ref[0].astype(jnp.float32)   # (3, N)
    ypT = ypT_ref[0].astype(jnp.float32)   # (3, N)

    n = yt.shape[0]
    nf = jnp.float32(n)
    logw = -jnp.log(nf)
    eps_final = jnp.float32(SINKHORN_EPS)
    anneal = jnp.float32(SINKHORN_SCALING ** 2)   # eps scales by scaling**p

    # --- pairwise squared distances (VPU, no cancellation) -----------------
    d2_ab = _pairwise_sqdist(yt, ypT)      # (N, N)
    d2_aa = _pairwise_sqdist(yt, ytT)      # (N, N)
    d2_bb = _pairwise_sqdist(yp, ypT)      # (N, N)

    # --- chamfer distance (pytorch3d convention) ---------------------------
    cham = (jnp.mean(jnp.min(d2_ab, axis=1, keepdims=True)) +
            jnp.mean(jnp.min(d2_ab, axis=0, keepdims=True)))

    # --- eps-annealing start: squared diameter of the joint bounding box ---
    lo = jnp.minimum(jnp.min(yt, axis=0, keepdims=True),
                     jnp.min(yp, axis=0, keepdims=True))          # (1, 3)
    hi = jnp.maximum(jnp.max(yt, axis=0, keepdims=True),
                     jnp.max(yp, axis=0, keepdims=True))          # (1, 3)
    diam2 = jnp.sum((hi - lo) ** 2)
    eps0 = jnp.maximum(diam2, eps_final)

    # ones matrix for the MXU row-sum trick (built once, loop-invariant)
    ones_nl = jnp.ones((n, 128), jnp.float32)

    # --- debiased Sinkhorn: OT(a,b), OT(a,a), OT(b,b) with eps annealing ---
    # Damped (0.5) Jacobi updates on UNSCALED potentials (geomloss style); the
    # symmetric problems use a double-application so the potential stays a row
    # vector and no (N,1)<->(1,N) relayout is needed.  cs must be rebuilt each
    # iteration because eps changes (so folding eps into the distance
    # accumulation would not help here).
    def body(_, carry):
        eps, f_ab, g_ab, u_aa, u_bb = carry
        inv_eps = 1.0 / eps
        scale = -0.5 * inv_eps                      # geomloss cost C = 0.5*d2
        cs_ab = d2_ab * scale + logw
        cs_aa = d2_aa * scale + logw
        cs_bb = d2_bb * scale + logw

        # a<->b problem: damped symmetric (Jacobi) update
        f_new = -eps * _lse_lane(cs_ab + g_ab * inv_eps, ones_nl)   # (N, 1)
        g_new = -eps * _lse_sub(cs_ab + f_ab * inv_eps)             # (1, N)
        f_ab = 0.5 * (f_ab + f_new)
        g_ab = 0.5 * (g_ab + g_new)

        # a<->a and b<->b (symmetric): double application, then average
        c_aa = -eps * _lse_lane(cs_aa + u_aa * inv_eps, ones_nl)    # (N, 1)
        r_aa = -eps * _lse_sub(cs_aa + c_aa * inv_eps)              # (1, N)
        u_aa = 0.5 * (u_aa + r_aa)
        c_bb = -eps * _lse_lane(cs_bb + u_bb * inv_eps, ones_nl)
        r_bb = -eps * _lse_sub(cs_bb + c_bb * inv_eps)
        u_bb = 0.5 * (u_bb + r_bb)

        eps = jnp.maximum(eps_final, eps * anneal)
        return eps, f_ab, g_ab, u_aa, u_bb

    init = (eps0,
            jnp.zeros((n, 1), jnp.float32),   # f_ab (potential on y_true)
            jnp.zeros((1, n), jnp.float32),   # g_ab (potential on y_pred)
            jnp.zeros((1, n), jnp.float32),   # u_aa (self potential, y_true)
            jnp.zeros((1, n), jnp.float32))   # u_bb (self potential, y_pred)
    _, f_ab, g_ab, u_aa, u_bb = lax.fori_loop(
        0, SINKHORN_ITERS, body, init, unroll=1)

    # final undamped extrapolation step at the target eps (geomloss style)
    inv_eps = 1.0 / eps_final
    scale = -0.5 * inv_eps
    cs_ab = d2_ab * scale + logw
    f_fin = -eps_final * _lse_lane(cs_ab + g_ab * inv_eps, ones_nl)
    g_fin = -eps_final * _lse_sub(cs_ab + f_ab * inv_eps)

    # debiased divergence: <a, f_ab - f_aa> + <b, g_ab - g_bb>, a = b = 1/n
    inv_n = 1.0 / nf
    emd = ((jnp.sum(f_fin) - jnp.sum(u_aa)) +
           (jnp.sum(g_fin) - jnp.sum(u_bb))) * inv_n

    # single lane-contiguous writeback: [:, :, 0] = chamfer, [:, :, 1] = emd
    sel = lax.broadcasted_iota(jnp.int32, (1, 1, 2), 2)
    out_ref[...] = jnp.where(sel == 0, cham, emd).astype(out_ref.dtype)


def point_cloud_loss(y_true, y_pred, npoints, emd_weight=EMD_WEIGHT):
    y_true = y_true.reshape(-1, npoints, 3).astype(jnp.float32)
    y_pred = y_pred.reshape(-1, npoints, 3).astype(jnp.float32)
    B, N, _ = y_true.shape

    # v7x has 2 TensorCores: keep the (only) parallel grid axis even so both
    # cores get a batch element; padded rows are sliced off below.
    B_pad = B + (B % 2)
    if B_pad != B:
        y_true = jnp.concatenate([y_true, y_true[:1]], axis=0)
        y_pred = jnp.concatenate([y_pred, y_pred[:1]], axis=0)

    # lane-dense (B, 3, N) copies so the kernel gets both broadcast
    # orientations as plain slices (no in-kernel transposes).
    yt_T = jnp.swapaxes(y_true, 1, 2)
    yp_T = jnp.swapaxes(y_pred, 1, 2)

    # NOTE: at N=128 everything (3 NxN f32 cost matrices + loop temporaries)
    # is < ~1 MiB.  For large N the 32 MiB scoped-VMEM default is hit around
    # N~1.5K, and v7x's 64 MiB *physical* VMEM around N~2.2K (vs ~3.2K on
    # v5e/v6e's 128 MiB) -- the Sinkhorn LSEs would then need row-stripe
    # tiling plus an explicit, generation-aware vmem_limit_bytes.
    n2 = N * N
    iters = SINKHORN_ITERS + 1
    cost = pl.CostEstimate(
        flops=B_pad * (iters * 30 * n2 + 15 * n2),
        transcendentals=B_pad * (iters * 7 * n2),
        bytes_accessed=B_pad * (4 * (4 * N * 3 + 2)))

    out = pl.pallas_call(
        _pcl_kernel,
        out_shape=jax.ShapeDtypeStruct((B_pad, 1, 2), jnp.float32),
        grid_spec=pltpu.PrefetchScalarGridSpec(
            num_scalar_prefetch=0,
            grid=(B_pad,),
            in_specs=[pl.BlockSpec((1, N, 3), lambda b: (b, 0, 0)),
                      pl.BlockSpec((1, N, 3), lambda b: (b, 0, 0)),
                      pl.BlockSpec((1, 3, N), lambda b: (b, 0, 0)),
                      pl.BlockSpec((1, 3, N), lambda b: (b, 0, 0))],
            out_specs=pl.BlockSpec((1, 1, 2), lambda b: (b, 0, 0))),
        compiler_params=pltpu.CompilerParams(
            dimension_semantics=("parallel",)),
        cost_estimate=cost,
    )(y_true, y_pred, yt_T, yp_T)

    cd_b = out[:B, 0, 0]
    emd = out[:B, 0, 1]

    # pytorch3d chamfer_distance returns a batch-mean scalar;
    # geomloss SamplesLoss returns a per-batch vector -> broadcast sum (B,)
    cd = jnp.mean(cd_b)
    return (1.0 - emd_weight) * cd + emd_weight * emd


if __name__ == "__main__":
    B = 2
    NPOINTS = 128
    key = jax.random.PRNGKey(0)
    k1, k2 = jax.random.split(key)
    # forward does .view(-1, npoints, 3); pass already-shaped clouds
    y_true = jax.random.normal(k1, (B, NPOINTS, 3), dtype=jnp.float32)
    y_pred = jax.random.normal(k2, (B, NPOINTS, 3), dtype=jnp.float32)

    loss = jax.jit(lambda a, b: point_cloud_loss(a, b, NPOINTS, EMD_WEIGHT))(
        y_true, y_pred)
    jax.block_until_ready(loss)
    assert loss.shape == (B,)
    assert bool(jnp.all(jnp.isfinite(loss)))
    print("KERNEL_OK")
</pallas_src>

<mosaic_0001>
module attributes {stable_mosaic.version = 11 : i64} {
  func.func @_pcl_kernel(%arg0: i32, %arg1: memref<1x128x3xf32, #tpu.memory_space<vmem>>, %arg2: memref<1x128x3xf32, #tpu.memory_space<vmem>>, %arg3: memref<1x3x128xf32, #tpu.memory_space<vmem>>, %arg4: memref<1x3x128xf32, #tpu.memory_space<vmem>>, %arg5: memref<1x1x2xf32, #tpu.memory_space<vmem>>) attributes {dimension_semantics = [#tpu.dimension_semantics<parallel>], iteration_bounds = array<i64: 2>, scalar_prefetch = 0 : i64, scratch_operands = 0 : i64, tpu.core_type = #tpu.core_type<tc>, window_params = [{transform_indices = @transform_0, window_bounds = array<i64: 1, 128, 3>}, {transform_indices = @transform_1, window_bounds = array<i64: 1, 128, 3>}, {transform_indices = @transform_2, window_bounds = array<i64: 1, 3, 128>}, {transform_indices = @transform_3, window_bounds = array<i64: 1, 3, 128>}, {transform_indices = @transform_4, window_bounds = array<i64: 1, 1, 2>}]} {
    %c0 = arith.constant 0 : index
    %c0_0 = arith.constant 0 : index
    %c0_1 = arith.constant 0 : index
    %0 = vector.load %arg1[%c0, %c0_0, %c0_1] : memref<1x128x3xf32, #tpu.memory_space<vmem>>, vector<1x128x3xf32>
    %1 = vector.shape_cast %0 : vector<1x128x3xf32> to vector<128x3xf32>
    %c0_2 = arith.constant 0 : index
    %c0_3 = arith.constant 0 : index
    %c0_4 = arith.constant 0 : index
    %2 = vector.load %arg2[%c0_2, %c0_3, %c0_4] : memref<1x128x3xf32, #tpu.memory_space<vmem>>, vector<1x128x3xf32>
    %3 = vector.shape_cast %2 : vector<1x128x3xf32> to vector<128x3xf32>
    %c0_5 = arith.constant 0 : index
    %c0_6 = arith.constant 0 : index
    %c0_7 = arith.constant 0 : index
    %4 = vector.load %arg3[%c0_5, %c0_6, %c0_7] : memref<1x3x128xf32, #tpu.memory_space<vmem>>, vector<1x3x128xf32>
    %5 = vector.shape_cast %4 : vector<1x3x128xf32> to vector<3x128xf32>
    %c0_8 = arith.constant 0 : index
    %c0_9 = arith.constant 0 : index
    %c0_10 = arith.constant 0 : index
    %6 = vector.load %arg4[%c0_8, %c0_9, %c0_10] : memref<1x3x128xf32, #tpu.memory_space<vmem>>, vector<1x3x128xf32>
    %7 = vector.shape_cast %6 : vector<1x3x128xf32> to vector<3x128xf32>
    %cst = arith.constant 1.280000e+02 : f32
    %8 = math.log %cst : f32
    %cst_11 = arith.constant 0.000000e+00 : f32
    %9 = arith.subf %cst_11, %8 : f32
    %cst_12 = arith.constant 0.000000e+00 : f32
    %10 = vector.broadcast %cst_12 : f32 to vector<128x128xf32>
    %11 = vector.extract_strided_slice %1 {offsets = [0, 0], sizes = [128, 1], strides = [1, 1]} : vector<128x3xf32> to vector<128x1xf32>
    %12 = vector.extract_strided_slice %7 {offsets = [0, 0], sizes = [1, 128], strides = [1, 1]} : vector<3x128xf32> to vector<1x128xf32>
    %13 = vector.broadcast %11 : vector<128x1xf32> to vector<128x128xf32>
    %14 = vector.broadcast %12 : vector<1x128xf32> to vector<128x128xf32>
    %15 = arith.subf %13, %14 : vector<128x128xf32>
    %16 = arith.mulf %15, %15 : vector<128x128xf32>
    %17 = arith.addf %10, %16 : vector<128x128xf32>
    %18 = vector.extract_strided_slice %1 {offsets = [0, 1], sizes = [128, 1], strides = [1, 1]} : vector<128x3xf32> to vector<128x1xf32>
    %19 = vector.extract_strided_slice %7 {offsets = [1, 0], sizes = [1, 128], strides = [1, 1]} : vector<3x128xf32> to vector<1x128xf32>
    %20 = vector.broadcast %18 : vector<128x1xf32> to vector<128x128xf32>
    %21 = vector.broadcast %19 : vector<1x128xf32> to vector<128x128xf32>
    %22 = arith.subf %20, %21 : vector<128x128xf32>
    %23 = arith.mulf %22, %22 : vector<128x128xf32>
    %24 = arith.addf %17, %23 : vector<128x128xf32>
    %25 = vector.extract_strided_slice %1 {offsets = [0, 2], sizes = [128, 1], strides = [1, 1]} : vector<128x3xf32> to vector<128x1xf32>
    %26 = vector.extract_strided_slice %7 {offsets = [2, 0], sizes = [1, 128], strides = [1, 1]} : vector<3x128xf32> to vector<1x128xf32>
    %27 = vector.broadcast %25 : vector<128x1xf32> to vector<128x128xf32>
    %28 = vector.broadcast %26 : vector<1x128xf32> to vector<128x128xf32>
    %29 = arith.subf %27, %28 : vector<128x128xf32>
    %30 = arith.mulf %29, %29 : vector<128x128xf32>
    %31 = arith.addf %24, %30 : vector<128x128xf32>
    %cst_13 = arith.constant 0.000000e+00 : f32
    %32 = vector.broadcast %cst_13 : f32 to vector<128x128xf32>
    %33 = vector.extract_strided_slice %1 {offsets = [0, 0], sizes = [128, 1], strides = [1, 1]} : vector<128x3xf32> to vector<128x1xf32>
    %34 = vector.extract_strided_slice %5 {offsets = [0, 0], sizes = [1, 128], strides = [1, 1]} : vector<3x128xf32> to vector<1x128xf32>
    %35 = vector.broadcast %33 : vector<128x1xf32> to vector<128x128xf32>
    %36 = vector.broadcast %34 : vector<1x128xf32> to vector<128x128xf32>
    %37 = arith.subf %35, %36 : vector<128x128xf32>
    %38 = arith.mulf %37, %37 : vector<128x128xf32>
    %39 = arith.addf %32, %38 : vector<128x128xf32>
    %40 = vector.extract_strided_slice %1 {offsets = [0, 1], sizes = [128, 1], strides = [1, 1]} : vector<128x3xf32> to vector<128x1xf32>
    %41 = vector.extract_strided_slice %5 {offsets = [1, 0], sizes = [1, 128], strides = [1, 1]} : vector<3x128xf32> to vector<1x128xf32>
    %42 = vector.broadcast %40 : vector<128x1xf32> to vector<128x128xf32>
    %43 = vector.broadcast %41 : vector<1x128xf32> to vector<128x128xf32>
    %44 = arith.subf %42, %43 : vector<128x128xf32>
    %45 = arith.mulf %44, %44 : vector<128x128xf32>
    %46 = arith.addf %39, %45 : vector<128x128xf32>
    %47 = vector.extract_strided_slice %1 {offsets = [0, 2], sizes = [128, 1], strides = [1, 1]} : vector<128x3xf32> to vector<128x1xf32>
    %48 = vector.extract_strided_slice %5 {offsets = [2, 0], sizes = [1, 128], strides = [1, 1]} : vector<3x128xf32> to vector<1x128xf32>
    %49 = vector.broadcast %47 : vector<128x1xf32> to vector<128x128xf32>
    %50 = vector.broadcast %48 : vector<1x128xf32> to vector<128x128xf32>
    %51 = arith.subf %49, %50 : vector<128x128xf32>
    %52 = arith.mulf %51, %51 : vector<128x128xf32>
    %53 = arith.addf %46, %52 : vector<128x128xf32>
    %cst_14 = arith.constant 0.000000e+00 : f32
    %54 = vector.broadcast %cst_14 : f32 to vector<128x128xf32>
    %55 = vector.extract_strided_slice %3 {offsets = [0, 0], sizes = [128, 1], strides = [1, 1]} : vector<128x3xf32> to vector<128x1xf32>
    %56 = vector.extract_strided_slice %7 {offsets = [0, 0], sizes = [1, 128], strides = [1, 1]} : vector<3x128xf32> to vector<1x128xf32>
    %57 = vector.broadcast %55 : vector<128x1xf32> to vector<128x128xf32>
    %58 = vector.broadcast %56 : vector<1x128xf32> to vector<128x128xf32>
    %59 = arith.subf %57, %58 : vector<128x128xf32>
    %60 = arith.mulf %59, %59 : vector<128x128xf32>
    %61 = arith.addf %54, %60 : vector<128x128xf32>
    %62 = vector.extract_strided_slice %3 {offsets = [0, 1], sizes = [128, 1], strides = [1, 1]} : vector<128x3xf32> to vector<128x1xf32>
    %63 = vector.extract_strided_slice %7 {offsets = [1, 0], sizes = [1, 128], strides = [1, 1]} : vector<3x128xf32> to vector<1x128xf32>
    %64 = vector.broadcast %62 : vector<128x1xf32> to vector<128x128xf32>
    %65 = vector.broadcast %63 : vector<1x128xf32> to vector<128x128xf32>
    %66 = arith.subf %64, %65 : vector<128x128xf32>
    %67 = arith.mulf %66, %66 : vector<128x128xf32>
    %68 = arith.addf %61, %67 : vector<128x128xf32>
    %69 = vector.extract_strided_slice %3 {offsets = [0, 2], sizes = [128, 1], strides = [1, 1]} : vector<128x3xf32> to vector<128x1xf32>
    %70 = vector.extract_strided_slice %7 {offsets = [2, 0], sizes = [1, 128], strides = [1, 1]} : vector<3x128xf32> to vector<1x128xf32>
    %71 = vector.broadcast %69 : vector<128x1xf32> to vector<128x128xf32>
    %72 = vector.broadcast %70 : vector<1x128xf32> to vector<128x128xf32>
    %73 = arith.subf %71, %72 : vector<128x128xf32>
    %74 = arith.mulf %73, %73 : vector<128x128xf32>
    %75 = arith.addf %68, %74 : vector<128x128xf32>
    %cst_15 = arith.constant dense<0x7F800000> : vector<128xf32>
    %76 = vector.multi_reduction <minimumf>, %31, %cst_15 [1] : vector<128x128xf32> to vector<128xf32>
    %77 = vector.shape_cast %76 : vector<128xf32> to vector<128x1xf32>
    %78 = vector.shape_cast %77 : vector<128x1xf32> to vector<1x128x1xf32>
    %cst_16 = arith.constant dense<0.000000e+00> : vector<1xf32>
    %79 = vector.multi_reduction <add>, %78, %cst_16 [1, 2] : vector<1x128x1xf32> to vector<1xf32>
    %80 = vector.shape_cast %79 : vector<1xf32> to vector<1x1x1xf32>
    %81 = vector.extract %80[0, 0, 0] : f32 from vector<1x1x1xf32>
    %cst_17 = arith.constant 1.280000e+02 : f32
    %82 = arith.divf %81, %cst_17 : f32
    %cst_18 = arith.constant dense<0x7F800000> : vector<128xf32>
    %83 = vector.multi_reduction <minimumf>, %31, %cst_18 [0] : vector<128x128xf32> to vector<128xf32>
    %84 = vector.shape_cast %83 : vector<128xf32> to vector<1x128xf32>
    %85 = vector.shape_cast %84 : vector<1x128xf32> to vector<1x1x128xf32>
    %cst_19 = arith.constant dense<0.000000e+00> : vector<1xf32>
    %86 = vector.multi_reduction <add>, %85, %cst_19 [1, 2] : vector<1x1x128xf32> to vector<1xf32>
    %87 = vector.shape_cast %86 : vector<1xf32> to vector<1x1x1xf32>
    %88 = vector.extract %87[0, 0, 0] : f32 from vector<1x1x1xf32>
    %cst_20 = arith.constant 1.280000e+02 : f32
    %89 = arith.divf %88, %cst_20 : f32
    %90 = arith.addf %82, %89 : f32
    %cst_21 = arith.constant dense<0x7F800000> : vector<3xf32>
    %91 = vector.multi_reduction <minimumf>, %1, %cst_21 [0] : vector<128x3xf32> to vector<3xf32>
    %92 = vector.shape_cast %91 : vector<3xf32> to vector<1x3xf32>
    %cst_22 = arith.constant dense<0x7F800000> : vector<3xf32>
    %93 = vector.multi_reduction <minimumf>, %3, %cst_22 [0] : vector<128x3xf32> to vector<3xf32>
    %94 = vector.shape_cast %93 : vector<3xf32> to vector<1x3xf32>
    %95 = arith.minimumf %92, %94 : vector<1x3xf32>
    %cst_23 = arith.constant dense<0xFF800000> : vector<3xf32>
    %96 = vector.multi_reduction <maximumf>, %1, %cst_23 [0] : vector<128x3xf32> to vector<3xf32>
    %97 = vector.shape_cast %96 : vector<3xf32> to vector<1x3xf32>
    %cst_24 = arith.constant dense<0xFF800000> : vector<3xf32>
    %98 = vector.multi_reduction <maximumf>, %3, %cst_24 [0] : vector<128x3xf32> to vector<3xf32>
    %99 = vector.shape_cast %98 : vector<3xf32> to vector<1x3xf32>
    %100 = arith.maximumf %97, %99 : vector<1x3xf32>
    %101 = arith.subf %100, %95 : vector<1x3xf32>
    %102 = arith.mulf %101, %101 : vector<1x3xf32>
    %103 = vector.shape_cast %102 : vector<1x3xf32> to vector<1x1x3xf32>
    %cst_25 = arith.constant dense<0.000000e+00> : vector<1xf32>
    %104 = vector.multi_reduction <add>, %103, %cst_25 [1, 2] : vector<1x1x3xf32> to vector<1xf32>
    %105 = vector.shape_cast %104 : vector<1xf32> to vector<1x1x1xf32>
    %106 = vector.extract %105[0, 0, 0] : f32 from vector<1x1x1xf32>
    %cst_26 = arith.constant 2.500000e-03 : f32
    %107 = arith.maximumf %106, %cst_26 : f32
    %cst_27 = arith.constant 1.000000e+00 : f32
    %108 = vector.broadcast %cst_27 : f32 to vector<128x128xf32>
    %cst_28 = arith.constant 0.000000e+00 : f32
    %109 = vector.broadcast %cst_28 : f32 to vector<128x1xf32>
    %cst_29 = arith.constant 0.000000e+00 : f32
    %110 = vector.broadcast %cst_29 : f32 to vector<1x128xf32>
    %cst_30 = arith.constant 0.000000e+00 : f32
    %111 = vector.broadcast %cst_30 : f32 to vector<1x128xf32>
    %cst_31 = arith.constant 0.000000e+00 : f32
    %112 = vector.broadcast %cst_31 : f32 to vector<1x128xf32>
    %cst_32 = arith.constant 2.500000e-01 : f32
    %cst_33 = arith.constant 2.500000e-03 : f32
    %c0_i32 = arith.constant 0 : i32
    %c14_i32 = arith.constant 14 : i32
    %113 = arith.addi %c0_i32, %c14_i32 : i32
    %c1_i32 = arith.constant 1 : i32
    %114:5 = scf.for %arg6 = %c0_i32 to %113 step %c1_i32 iter_args(%arg7 = %107, %arg8 = %109, %arg9 = %110, %arg10 = %111, %arg11 = %112) -> (f32, vector<128x1xf32>, vector<1x128xf32>, vector<1x128xf32>, vector<1x128xf32>)  : i32 {
      %cst_55 = arith.constant 1.000000e+00 : f32
      %181 = arith.divf %cst_55, %arg7 : f32
      %cst_56 = arith.constant -5.000000e-01 : f32
      %182 = arith.mulf %cst_56, %181 : f32
      %183 = vector.broadcast %182 : f32 to vector<128x128xf32>
      %184 = arith.mulf %31, %183 : vector<128x128xf32>
      %185 = vector.broadcast %9 : f32 to vector<128x128xf32>
      %186 = arith.addf %184, %185 : vector<128x128xf32>
      %187 = vector.broadcast %182 : f32 to vector<128x128xf32>
      %188 = arith.mulf %53, %187 : vector<128x128xf32>
      %189 = vector.broadcast %9 : f32 to vector<128x128xf32>
      %190 = arith.addf %188, %189 : vector<128x128xf32>
      %191 = vector.broadcast %182 : f32 to vector<128x128xf32>
      %192 = arith.mulf %75, %191 : vector<128x128xf32>
      %193 = vector.broadcast %9 : f32 to vector<128x128xf32>
      %194 = arith.addf %192, %193 : vector<128x128xf32>
      %cst_57 = arith.constant 0.000000e+00 : f32
      %195 = arith.subf %cst_57, %arg7 : f32
      %196 = vector.broadcast %181 : f32 to vector<1x128xf32>
      %197 = arith.mulf %arg9, %196 : vector<1x128xf32>
      %198 = vector.broadcast %197 : vector<1x128xf32> to vector<128x128xf32>
      %199 = arith.addf %186, %198 : vector<128x128xf32>
      %cst_58 = arith.constant dense<0xFF800000> : vector<128xf32>
      %200 = vector.multi_reduction <maximumf>, %199, %cst_58 [1] : vector<128x128xf32> to vector<128xf32>
      %201 = vector.shape_cast %200 : vector<128xf32> to vector<128x1xf32>
      %202 = vector.broadcast %201 : vector<128x1xf32> to vector<128x128xf32>
      %203 = arith.subf %199, %202 : vector<128x128xf32>
      %204 = math.exp %203 : vector<128x128xf32>
      %cst_59 = arith.constant dense<0.000000e+00> : vector<128x128xf32>
      %205 = tpu.matmul %204, %108, %cst_59 {dimension_numbers = #tpu.dot_dimension_numbers<[1], [0], [0], [1], [0, 0, 1, 1], [], []>} : vector<128x128xf32>, vector<128x128xf32>, vector<128x128xf32> -> vector<128x128xf32>
      %206 = vector.extract_strided_slice %205 {offsets = [0, 0], sizes = [128, 1], strides = [1, 1]} : vector<128x128xf32> to vector<128x1xf32>
      %207 = math.log %206 : vector<128x1xf32>
      %208 = arith.addf %201, %207 : vector<128x1xf32>
      %209 = vector.broadcast %195 : f32 to vector<128x1xf32>
      %210 = arith.mulf %209, %208 : vector<128x1xf32>
      %cst_60 = arith.constant 0.000000e+00 : f32
      %211 = arith.subf %cst_60, %arg7 : f32
      %212 = vector.broadcast %181 : f32 to vector<128x1xf32>
      %213 = arith.mulf %arg8, %212 : vector<128x1xf32>
      %214 = vector.broadcast %213 : vector<128x1xf32> to vector<128x128xf32>
      %215 = arith.addf %186, %214 : vector<128x128xf32>
      %cst_61 = arith.constant dense<0xFF800000> : vector<128xf32>
      %216 = vector.multi_reduction <maximumf>, %215, %cst_61 [0] : vector<128x128xf32> to vector<128xf32>
      %217 = vector.shape_cast %216 : vector<128xf32> to vector<1x128xf32>
      %218 = vector.broadcast %217 : vector<1x128xf32> to vector<128x128xf32>
      %219 = arith.subf %215, %218 : vector<128x128xf32>
      %220 = math.exp %219 : vector<128x128xf32>
      %cst_62 = arith.constant dense<0.000000e+00> : vector<128xf32>
      %221 = vector.multi_reduction <add>, %220, %cst_62 [0] : vector<128x128xf32> to vector<128xf32>
      %222 = vector.shape_cast %221 : vector<128xf32> to vector<1x128xf32>
      %223 = math.log %222 : vector<1x128xf32>
      %224 = arith.addf %217, %223 : vector<1x128xf32>
      %225 = vector.broadcast %211 : f32 to vector<1x128xf32>
      %226 = arith.mulf %225, %224 : vector<1x128xf32>
      %227 = arith.addf %arg8, %210 : vector<128x1xf32>
      %cst_63 = arith.constant 5.000000e-01 : f32
      %228 = vector.broadcast %cst_63 : f32 to vector<128x1xf32>
      %229 = arith.mulf %228, %227 : vector<128x1xf32>
      %230 = arith.addf %arg9, %226 : vector<1x128xf32>
      %cst_64 = arith.constant 5.000000e-01 : f32
      %231 = vector.broadcast %cst_64 : f32 to vector<1x128xf32>
      %232 = arith.mulf %231, %230 : vector<1x128xf32>
      %cst_65 = arith.constant 0.000000e+00 : f32
      %233 = arith.subf %cst_65, %arg7 : f32
      %234 = vector.broadcast %181 : f32 to vector<1x128xf32>
      %235 = arith.mulf %arg10, %234 : vector<1x128xf32>
      %236 = vector.broadcast %235 : vector<1x128xf32> to vector<128x128xf32>
      %237 = arith.addf %190, %236 : vector<128x128xf32>
      %cst_66 = arith.constant dense<0xFF800000> : vector<128xf32>
      %238 = vector.multi_reduction <maximumf>, %237, %cst_66 [1] : vector<128x128xf32> to vector<128xf32>
      %239 = vector.shape_cast %238 : vector<128xf32> to vector<128x1xf32>
      %240 = vector.broadcast %239 : vector<128x1xf32> to vector<128x128xf32>
      %241 = arith.subf %237, %240 : vector<128x128xf32>
      %242 = math.exp %241 : vector<128x128xf32>
      %cst_67 = arith.constant dense<0.000000e+00> : vector<128x128xf32>
      %243 = tpu.matmul %242, %108, %cst_67 {dimension_numbers = #tpu.dot_dimension_numbers<[1], [0], [0], [1], [0, 0, 1, 1], [], []>} : vector<128x128xf32>, vector<128x128xf32>, vector<128x128xf32> -> vector<128x128xf32>
      %244 = vector.extract_strided_slice %243 {offsets = [0, 0], sizes = [128, 1], strides = [1, 1]} : vector<128x128xf32> to vector<128x1xf32>
      %245 = math.log %244 : vector<128x1xf32>
      %246 = arith.addf %239, %245 : vector<128x1xf32>
      %247 = vector.broadcast %233 : f32 to vector<128x1xf32>
      %248 = arith.mulf %247, %246 : vector<128x1xf32>
      %cst_68 = arith.constant 0.000000e+00 : f32
      %249 = arith.subf %cst_68, %arg7 : f32
      %250 = vector.broadcast %181 : f32 to vector<128x1xf32>
      %251 = arith.mulf %248, %250 : vector<128x1xf32>
      %252 = vector.broadcast %251 : vector<128x1xf32> to vector<128x128xf32>
      %253 = arith.addf %190, %252 : vector<128x128xf32>
      %cst_69 = arith.constant dense<0xFF800000> : vector<128xf32>
      %254 = vector.multi_reduction <maximumf>, %253, %cst_69 [0] : vector<128x128xf32> to vector<128xf32>
      %255 = vector.shape_cast %254 : vector<128xf32> to vector<1x128xf32>
      %256 = vector.broadcast %255 : vector<1x128xf32> to vector<128x128xf32>
      %257 = arith.subf %253, %256 : vector<128x128xf32>
      %258 = math.exp %257 : vector<128x128xf32>
      %cst_70 = arith.constant dense<0.000000e+00> : vector<128xf32>
      %259 = vector.multi_reduction <add>, %258, %cst_70 [0] : vector<128x128xf32> to vector<128xf32>
      %260 = vector.shape_cast %259 : vector<128xf32> to vector<1x128xf32>
      %261 = math.log %260 : vector<1x128xf32>
      %262 = arith.addf %255, %261 : vector<1x128xf32>
      %263 = vector.broadcast %249 : f32 to vector<1x128xf32>
      %264 = arith.mulf %263, %262 : vector<1x128xf32>
      %265 = arith.addf %arg10, %264 : vector<1x128xf32>
      %cst_71 = arith.constant 5.000000e-01 : f32
      %266 = vector.broadcast %cst_71 : f32 to vector<1x128xf32>
      %267 = arith.mulf %266, %265 : vector<1x128xf32>
      %cst_72 = arith.constant 0.000000e+00 : f32
      %268 = arith.subf %cst_72, %arg7 : f32
      %269 = vector.broadcast %181 : f32 to vector<1x128xf32>
      %270 = arith.mulf %arg11, %269 : vector<1x128xf32>
      %271 = vector.broadcast %270 : vector<1x128xf32> to vector<128x128xf32>
      %272 = arith.addf %194, %271 : vector<128x128xf32>
      %cst_73 = arith.constant dense<0xFF800000> : vector<128xf32>
      %273 = vector.multi_reduction <maximumf>, %272, %cst_73 [1] : vector<128x128xf32> to vector<128xf32>
      %274 = vector.shape_cast %273 : vector<128xf32> to vector<128x1xf32>
      %275 = vector.broadcast %274 : vector<128x1xf32> to vector<128x128xf32>
      %276 = arith.subf %272, %275 : vector<128x128xf32>
      %277 = math.exp %276 : vector<128x128xf32>
      %cst_74 = arith.constant dense<0.000000e+00> : vector<128x128xf32>
      %278 = tpu.matmul %277, %108, %cst_74 {dimension_numbers = #tpu.dot_dimension_numbers<[1], [0], [0], [1], [0, 0, 1, 1], [], []>} : vector<128x128xf32>, vector<128x128xf32>, vector<128x128xf32> -> vector<128x128xf32>
      %279 = vector.extract_strided_slice %278 {offsets = [0, 0], sizes = [128, 1], strides = [1, 1]} : vector<128x128xf32> to vector<128x1xf32>
      %280 = math.log %279 : vector<128x1xf32>
      %281 = arith.addf %274, %280 : vector<128x1xf32>
      %282 = vector.broadcast %268 : f32 to vector<128x1xf32>
      %283 = arith.mulf %282, %281 : vector<128x1xf32>
      %cst_75 = arith.constant 0.000000e+00 : f32
      %284 = arith.subf %cst_75, %arg7 : f32
      %285 = vector.broadcast %181 : f32 to vector<128x1xf32>
      %286 = arith.mulf %283, %285 : vector<128x1xf32>
      %287 = vector.broadcast %286 : vector<128x1xf32> to vector<128x128xf32>
      %288 = arith.addf %194, %287 : vector<128x128xf32>
      %cst_76 = arith.constant dense<0xFF800000> : vector<128xf32>
      %289 = vector.multi_reduction <maximumf>, %288, %cst_76 [0] : vector<128x128xf32> to vector<128xf32>
      %290 = vector.shape_cast %289 : vector<128xf32> to vector<1x128xf32>
      %291 = vector.broadcast %290 : vector<1x128xf32> to vector<128x128xf32>
      %292 = arith.subf %288, %291 : vector<128x128xf32>
      %293 = math.exp %292 : vector<128x128xf32>
      %cst_77 = arith.constant dense<0.000000e+00> : vector<128xf32>
      %294 = vector.multi_reduction <add>, %293, %cst_77 [0] : vector<128x128xf32> to vector<128xf32>
      %295 = vector.shape_cast %294 : vector<128xf32> to vector<1x128xf32>
      %296 = math.log %295 : vector<1x128xf32>
      %297 = arith.addf %290, %296 : vector<1x128xf32>
      %298 = vector.broadcast %284 : f32 to vector<1x128xf32>
      %299 = arith.mulf %298, %297 : vector<1x128xf32>
      %300 = arith.addf %arg11, %299 : vector<1x128xf32>
      %cst_78 = arith.constant 5.000000e-01 : f32
      %301 = vector.broadcast %cst_78 : f32 to vector<1x128xf32>
      %302 = arith.mulf %301, %300 : vector<1x128xf32>
      %303 = arith.mulf %arg7, %cst_32 : f32
      %304 = arith.maximumf %cst_33, %303 : f32
      scf.yield %304, %229, %232, %267, %302 : f32, vector<128x1xf32>, vector<1x128xf32>, vector<1x128xf32>, vector<1x128xf32>
    }
    %cst_34 = arith.constant 1.000000e+00 : f32
    %cst_35 = arith.constant 2.500000e-03 : f32
    %115 = arith.divf %cst_34, %cst_35 : f32
    %cst_36 = arith.constant -5.000000e-01 : f32
    %116 = arith.mulf %cst_36, %115 : f32
    %117 = vector.broadcast %116 : f32 to vector<128x128xf32>
    %118 = arith.mulf %31, %117 : vector<128x128xf32>
    %119 = vector.broadcast %9 : f32 to vector<128x128xf32>
    %120 = arith.addf %118, %119 : vector<128x128xf32>
    %cst_37 = arith.constant 0.000000e+00 : f32
    %cst_38 = arith.constant 2.500000e-03 : f32
    %121 = arith.subf %cst_37, %cst_38 : f32
    %122 = vector.broadcast %115 : f32 to vector<1x128xf32>
    %123 = arith.mulf %114#2, %122 : vector<1x128xf32>
    %124 = vector.broadcast %123 : vector<1x128xf32> to vector<128x128xf32>
    %125 = arith.addf %120, %124 : vector<128x128xf32>
    %cst_39 = arith.constant dense<0xFF800000> : vector<128xf32>
    %126 = vector.multi_reduction <maximumf>, %125, %cst_39 [1] : vector<128x128xf32> to vector<128xf32>
    %127 = vector.shape_cast %126 : vector<128xf32> to vector<128x1xf32>
    %128 = vector.broadcast %127 : vector<128x1xf32> to vector<128x128xf32>
    %129 = arith.subf %125, %128 : vector<128x128xf32>
    %130 = math.exp %129 : vector<128x128xf32>
    %cst_40 = arith.constant dense<0.000000e+00> : vector<128x128xf32>
    %131 = tpu.matmul %130, %108, %cst_40 {dimension_numbers = #tpu.dot_dimension_numbers<[1], [0], [0], [1], [0, 0, 1, 1], [], []>} : vector<128x128xf32>, vector<128x128xf32>, vector<128x128xf32> -> vector<128x128xf32>
    %132 = vector.extract_strided_slice %131 {offsets = [0, 0], sizes = [128, 1], strides = [1, 1]} : vector<128x128xf32> to vector<128x1xf32>
    %133 = math.log %132 : vector<128x1xf32>
    %134 = arith.addf %127, %133 : vector<128x1xf32>
    %135 = vector.broadcast %121 : f32 to vector<128x1xf32>
    %136 = arith.mulf %135, %134 : vector<128x1xf32>
    %cst_41 = arith.constant 0.000000e+00 : f32
    %cst_42 = arith.constant 2.500000e-03 : f32
    %137 = arith.subf %cst_41, %cst_42 : f32
    %138 = vector.broadcast %115 : f32 to vector<128x1xf32>
    %139 = arith.mulf %114#1, %138 : vector<128x1xf32>
    %140 = vector.broadcast %139 : vector<128x1xf32> to vector<128x128xf32>
    %141 = arith.addf %120, %140 : vector<128x128xf32>
    %cst_43 = arith.constant dense<0xFF800000> : vector<128xf32>
    %142 = vector.multi_reduction <maximumf>, %141, %cst_43 [0] : vector<128x128xf32> to vector<128xf32>
    %143 = vector.shape_cast %142 : vector<128xf32> to vector<1x128xf32>
    %144 = vector.broadcast %143 : vector<1x128xf32> to vector<128x128xf32>
    %145 = arith.subf %141, %144 : vector<128x128xf32>
    %146 = math.exp %145 : vector<128x128xf32>
    %cst_44 = arith.constant dense<0.000000e+00> : vector<128xf32>
    %147 = vector.multi_reduction <add>, %146, %cst_44 [0] : vector<128x128xf32> to vector<128xf32>
    %148 = vector.shape_cast %147 : vector<128xf32> to vector<1x128xf32>
    %149 = math.log %148 : vector<1x128xf32>
    %150 = arith.addf %143, %149 : vector<1x128xf32>
    %151 = vector.broadcast %137 : f32 to vector<1x128xf32>
    %152 = arith.mulf %151, %150 : vector<1x128xf32>
    %cst_45 = arith.constant 1.000000e+00 : f32
    %cst_46 = arith.constant 1.280000e+02 : f32
    %153 = arith.divf %cst_45, %cst_46 : f32
    %154 = vector.shape_cast %136 : vector<128x1xf32> to vector<1x128x1xf32>
    %cst_47 = arith.constant dense<0.000000e+00> : vector<1xf32>
    %155 = vector.multi_reduction <add>, %154, %cst_47 [1, 2] : vector<1x128x1xf32> to vector<1xf32>
    %156 = vector.shape_cast %155 : vector<1xf32> to vector<1x1x1xf32>
    %157 = vector.extract %156[0, 0, 0] : f32 from vector<1x1x1xf32>
    %158 = vector.shape_cast %114#3 : vector<1x128xf32> to vector<1x1x128xf32>
    %cst_48 = arith.constant dense<0.000000e+00> : vector<1xf32>
    %159 = vector.multi_reduction <add>, %158, %cst_48 [1, 2] : vector<1x1x128xf32> to vector<1xf32>
    %160 = vector.shape_cast %159 : vector<1xf32> to vector<1x1x1xf32>
    %161 = vector.extract %160[0, 0, 0] : f32 from vector<1x1x1xf32>
    %162 = arith.subf %157, %161 : f32
    %163 = vector.shape_cast %152 : vector<1x128xf32> to vector<1x1x128xf32>
    %cst_49 = arith.constant dense<0.000000e+00> : vector<1xf32>
    %164 = vector.multi_reduction <add>, %163, %cst_49 [1, 2] : vector<1x1x128xf32> to vector<1xf32>
    %165 = vector.shape_cast %164 : vector<1xf32> to vector<1x1x1xf32>
    %166 = vector.extract %165[0, 0, 0] : f32 from vector<1x1x1xf32>
    %167 = vector.shape_cast %114#4 : vector<1x128xf32> to vector<1x1x128xf32>
    %cst_50 = arith.constant dense<0.000000e+00> : vector<1xf32>
    %168 = vector.multi_reduction <add>, %167, %cst_50 [1, 2] : vector<1x1x128xf32> to vector<1xf32>
    %169 = vector.shape_cast %168 : vector<1xf32> to vector<1x1x1xf32>
    %170 = vector.extract %169[0, 0, 0] : f32 from vector<1x1x1xf32>
    %171 = arith.subf %166, %170 : f32
    %172 = arith.addf %162, %171 : f32
    %173 = arith.mulf %172, %153 : f32
    %174 = tpu.iota {dimensions = array<i32: 2>} : vector<1x1x2xi32>
    %c0_i32_51 = arith.constant 0 : i32
    %175 = vector.broadcast %c0_i32_51 : i32 to vector<1x1x2xi32>
    %176 = arith.cmpi eq, %174, %175 : vector<1x1x2xi32>
    %177 = vector.broadcast %90 : f32 to vector<1x1x2xf32>
    %178 = vector.broadcast %173 : f32 to vector<1x1x2xf32>
    %179 = arith.select %176, %177, %178 : vector<1x1x2xi1>, vector<1x1x2xf32>
    %c0_52 = arith.constant 0 : index
    %c0_53 = arith.constant 0 : index
    %c0_54 = arith.constant 0 : index
    %180 = vector.load %arg5[%c0_52, %c0_53, %c0_54] : memref<1x1x2xf32, #tpu.memory_space<vmem>>, vector<1x1x2xf32>
    tpu.vector_store %arg5[%c0_52, %c0_53, %c0_54], %179 {strides = array<i32>} : memref<1x1x2xf32, #tpu.memory_space<vmem>>, vector<1x1x2xf32>,
    return
  }
  func.func @transform_0(%arg0: i32) -> (i32, i32, i32) {
    %c0_i32 = arith.constant 0 : i32
    %c0_i32_0 = arith.constant 0 : i32
    %c0_i32_1 = arith.constant 0 : i32
    return %arg0, %c0_i32, %c0_i32_0 : i32, i32, i32
  }
  func.func @transform_1(%arg0: i32) -> (i32, i32, i32) {
    %c0_i32 = arith.constant 0 : i32
    %c0_i32_0 = arith.constant 0 : i32
    %c0_i32_1 = arith.constant 0 : i32
    return %arg0, %c0_i32, %c0_i32_0 : i32, i32, i32
  }
  func.func @transform_2(%arg0: i32) -> (i32, i32, i32) {
    %c0_i32 = arith.constant 0 : i32
    %c0_i32_0 = arith.constant 0 : i32
    %c0_i32_1 = arith.constant 0 : i32
    return %arg0, %c0_i32, %c0_i32_0 : i32, i32, i32
  }
  func.func @transform_3(%arg0: i32) -> (i32, i32, i32) {
    %c0_i32 = arith.constant 0 : i32
    %c0_i32_0 = arith.constant 0 : i32
    %c0_i32_1 = arith.constant 0 : i32
    return %arg0, %c0_i32, %c0_i32_0 : i32, i32, i32
  }
  func.func @transform_4(%arg0: i32) -> (i32, i32, i32) {
    %c0_i32 = arith.constant 0 : i32
    %c0_i32_0 = arith.constant 0 : i32
    %c0_i32_1 = arith.constant 0 : i32
    return %arg0, %c0_i32, %c0_i32_0 : i32, i32, i32
  }
}

</mosaic_0001>

<llo_original>
// kernel: _lambda_.1
$region0: #{_lambda_.1}
  #allocation0 [shape = 'u32[]', space=smem, size = 0x4, offset = 0x4, fixed_abs, tag = 'smem constant byte address 0x4 - core index']
  #allocation1 [shape = 'u32[144,128]{1,0:T(1,128)}', space=vmem, size = 0x12000, scoped, tag = 'internal scratch']
  %s0 = inlined_call_operand.vmem [shape: f32[2,128,3], index: 0, kind: input, shape index: {}]
  %s1 = inlined_call_operand.vmem [shape: f32[2,128,3], index: 1, kind: input, shape index: {}]
  %s2 = inlined_call_operand.vmem [shape: f32[2,3,128], index: 2, kind: input, shape index: {}]
  %s3 = inlined_call_operand.vmem [shape: f32[2,3,128], index: 3, kind: input, shape index: {}]
  %s4 = inlined_call_operand.vmem [shape: f32[2,1,2], index: 4, kind: output, shape index: {}]
  %s5 = sld [smem:[#allocation0]]
  $region56: #{_lambda_.1} parent=0
    _
  %s7 = ssub.s32 1, %s5
  %s8 = scalar_select 0, %s7, %s5
  loop: start=0, step=1, limit=4
  $region2: #{_lambda_.1} parent=0 // loop_pre_header
    _
  $region3: #{_lambda_.1} parent=0 // loop_header
    %s10 = sphi 0, %s14
    %p11 = scmp.ge.s32.totalorder %s10, 4
    %s20 = sphi 0, %s22
    %s23 = sphi 0, %s20
    %s24 = sphi 0, %s23
    %s40 = sphi 0, %s24
    %s46 = sphi 0, %s48
    %s49 = sphi 0, %s46
    %s50 = sphi 0, %s49
    %s66 = sphi 0, %s50
    %s72 = sphi 0, %s74
    %s75 = sphi 0, %s72
    %s76 = sphi 0, %s75
    %s92 = sphi 0, %s76
    %s98 = sphi 0, %s100
    %s101 = sphi 0, %s98
    %s102 = sphi 0, %s101
    %s118 = sphi 0, %s102
    %s124 = sphi 0, %s126
    %s127 = sphi 0, %s124
    %s128 = sphi 0, %s127
    %s144 = sphi 0, %s128
  $region4: #{_lambda_.1} parent=0 // loop_header_branch
    %13 = sbr.rel (%p11) target = $region8
  $region5: #{_lambda_.1} parent=0 // loop_body
    %s15 = ssub.s32 %s10, 1
    %s16 = ssub.s32 %s10, 2
    %s17 = sadd.s32 %s10, 1
    %s18 = ssub.s32 %s10, %s17
    %p19 = scmp.eq.s32.totalorder %s18, 0
    %s21 = sadd.s32 %s20, 1
    %s22 = scalar_select %p19, %s20, %s21
    %p25 = pneg %p19
    %p26 = scmp.eq.s32.totalorder %s10, 1
    %p27 = por %p25, %p26
    %p28 = scmp.ne.s32.totalorder %s20, %s23
    %p29 = scmp.eq.s32.totalorder %s10, 0
    %p30 = por %p28, %p29
    %p31 = scmp.ne.s32.totalorder %s20, %s23
    %p32 = scmp.eq.s32.totalorder %s15, 1
    %p33 = por %p31, %p32
    %p34 = scmp.ne.s32.totalorder %s23, %s24
    %p35 = scmp.eq.s32.totalorder %s15, 0
    %p36 = por %p34, %p35
    %p37 = scmp.ne.s32.totalorder %s23, %s24
    %p38 = scmp.eq.s32.totalorder %s16, 1
    %p39 = por %p37, %p38
    %p41 = scmp.ne.s32.totalorder %s24, %s40
    %p42 = scmp.eq.s32.totalorder %s16, 0
    %p43 = por %p41, %p42
    %s44 = ssub.s32 %s10, %s17
    %p45 = scmp.eq.s32.totalorder %s44, 0
    %s47 = sadd.s32 %s46, 1
    %s48 = scalar_select %p45, %s46, %s47
    %p51 = pneg %p45
    %p52 = scmp.eq.s32.totalorder %s10, 1
    %p53 = por %p51, %p52
    %p54 = scmp.ne.s32.totalorder %s46, %s49
    %p55 = scmp.eq.s32.totalorder %s10, 0
    %p56 = por %p54, %p55
    %p57 = scmp.ne.s32.totalorder %s46, %s49
    %p58 = scmp.eq.s32.totalorder %s15, 1
    %p59 = por %p57, %p58
    %p60 = scmp.ne.s32.totalorder %s49, %s50
    %p61 = scmp.eq.s32.totalorder %s15, 0
    %p62 = por %p60, %p61
    %p63 = scmp.ne.s32.totalorder %s49, %s50
    %p64 = scmp.eq.s32.totalorder %s16, 1
    %p65 = por %p63, %p64
    %p67 = scmp.ne.s32.totalorder %s50, %s66
    %p68 = scmp.eq.s32.totalorder %s16, 0
    %p69 = por %p67, %p68
    %s70 = ssub.s32 %s10, %s17
    %p71 = scmp.eq.s32.totalorder %s70, 0
    %s73 = sadd.s32 %s72, 1
    %s74 = scalar_select %p71, %s72, %s73
    %p77 = pneg %p71
    %p78 = scmp.eq.s32.totalorder %s10, 1
    %p79 = por %p77, %p78
    %p80 = scmp.ne.s32.totalorder %s72, %s75
    %p81 = scmp.eq.s32.totalorder %s10, 0
    %p82 = por %p80, %p81
    %p83 = scmp.ne.s32.totalorder %s72, %s75
    %p84 = scmp.eq.s32.totalorder %s15, 1
    %p85 = por %p83, %p84
    %p86 = scmp.ne.s32.totalorder %s75, %s76
    %p87 = scmp.eq.s32.totalorder %s15, 0
    %p88 = por %p86, %p87
    %p89 = scmp.ne.s32.totalorder %s75, %s76
    %p90 = scmp.eq.s32.totalorder %s16, 1
    %p91 = por %p89, %p90
    %p93 = scmp.ne.s32.totalorder %s76, %s92
    %p94 = scmp.eq.s32.totalorder %s16, 0
    %p95 = por %p93, %p94
    %s96 = ssub.s32 %s10, %s17
    %p97 = scmp.eq.s32.totalorder %s96, 0
    %s99 = sadd.s32 %s98, 1
    %s100 = scalar_select %p97, %s98, %s99
    %p103 = pneg %p97
    %p104 = scmp.eq.s32.totalorder %s10, 1
    %p105 = por %p103, %p104
    %p106 = scmp.ne.s32.totalorder %s98, %s101
    %p107 = scmp.eq.s32.totalorder %s10, 0
    %p108 = por %p106, %p107
    %p109 = scmp.ne.s32.totalorder %s98, %s101
    %p110 = scmp.eq.s32.totalorder %s15, 1
    %p111 = por %p109, %p110
    %p112 = scmp.ne.s32.totalorder %s101, %s102
    %p113 = scmp.eq.s32.totalorder %s15, 0
    %p114 = por %p112, %p113
    %p115 = scmp.ne.s32.totalorder %s101, %s102
    %p116 = scmp.eq.s32.totalorder %s16, 1
    %p117 = por %p115, %p116
    %p119 = scmp.ne.s32.totalorder %s102, %s118
    %p120 = scmp.eq.s32.totalorder %s16, 0
    %p121 = por %p119, %p120
    %s122 = ssub.s32 %s10, %s17
    %p123 = scmp.eq.s32.totalorder %s122, 0
    %s125 = sadd.s32 %s124, 1
    %s126 = scalar_select %p123, %s124, %s125
    %p129 = pneg %p123
    %p130 = scmp.eq.s32.totalorder %s10, 1
    %p131 = por %p129, %p130
    %p132 = scmp.ne.s32.totalorder %s124, %s127
    %p133 = scmp.eq.s32.totalorder %s10, 0
    %p134 = por %p132, %p133
    %p135 = scmp.ne.s32.totalorder %s124, %s127
    %p136 = scmp.eq.s32.totalorder %s15, 1
    %p137 = por %p135, %p136
    %p138 = scmp.ne.s32.totalorder %s127, %s128
    %p139 = scmp.eq.s32.totalorder %s15, 0
    %p140 = por %p138, %p139
    %p141 = scmp.ne.s32.totalorder %s127, %s128
    %p142 = scmp.eq.s32.totalorder %s16, 1
    %p143 = por %p141, %p142
    %p145 = scmp.ne.s32.totalorder %s128, %s144
    %p146 = scmp.eq.s32.totalorder %s16, 0
    %p147 = por %p145, %p146
    %p148 = scmp.le.s32.totalorder 1, %s10
    %p149 = scmp.lt.s32.totalorder %s10, 3
    %p150 = pnand %p148, %p149
    %p151 = pneg %p150
    // Predicated region
    $region9: #{_lambda_.1} parent=5 // pred_check
      _
    $region10: #{_lambda_.1} parent=5 // pred_check_branch
      %153 = sbr.rel (%p150) target = $region12
    $region11: #{_lambda_.1} parent=5 // pred_region
      %s154 = ssub.s32 %s10, 1
    $region12: #{_lambda_.1} parent=5 // pred_fallthru
      _
    %p155 = scmp.lt.s32.totalorder %s10, 2
    // Predicated region
    $region13: #{_lambda_.1} parent=5 // pred_check
      %p156 = pneg %p155
    $region14: #{_lambda_.1} parent=5 // pred_check_branch
      %158 = sbr.rel (%p156) target = $region16
    $region15: #{_lambda_.1} parent=5 // pred_region
      // Predicated region
      $region17: #{_lambda_.1} parent=15 // pred_check
        %p159 = pneg %p30
      $region18: #{_lambda_.1} parent=15 // pred_check_branch
        %161 = sbr.rel (%p159) target = $region20
      $region19: #{_lambda_.1} parent=15 // pred_region
        %p162 = scmp.lt.s32.totalorder %s10, 1
        %s163 = scalar_select %p162, %s10, 1
        %s164 = smul.addr %s163, 16
        %s165 = smul.addr %s164, 8
        %s166 = scalar_lea.vmem %s0, %s165
      $region20: #{_lambda_.1} parent=15 // pred_fallthru
        _
      // Predicated region
      $region21: #{_lambda_.1} parent=15 // pred_check
        %p167 = pneg %p56
      $region22: #{_lambda_.1} parent=15 // pred_check_branch
        %169 = sbr.rel (%p167) target = $region24
      $region23: #{_lambda_.1} parent=15 // pred_region
        %p170 = scmp.lt.s32.totalorder %s10, 1
        %s171 = scalar_select %p170, %s10, 1
        %s172 = smul.addr %s171, 16
        %s173 = smul.addr %s172, 8
        %s174 = scalar_lea.vmem %s1, %s173
      $region24: #{_lambda_.1} parent=15 // pred_fallthru
        _
      // Predicated region
      $region25: #{_lambda_.1} parent=15 // pred_check
        %p175 = pneg %p82
      $region26: #{_lambda_.1} parent=15 // pred_check_branch
        %177 = sbr.rel (%p175) target = $region28
      $region27: #{_lambda_.1} parent=15 // pred_region
        %p178 = scmp.lt.s32.totalorder %s10, 1
        %s179 = scalar_select %p178, %s10, 1
        %s180 = smul.addr %s179, 4
        %s181 = scalar_lea.vmem %s2, %s180
      $region28: #{_lambda_.1} parent=15 // pred_fallthru
        _
      // Predicated region
      $region29: #{_lambda_.1} parent=15 // pred_check
        %p182 = pneg %p108
      $region30: #{_lambda_.1} parent=15 // pred_check_branch
        %184 = sbr.rel (%p182) target = $region32
      $region31: #{_lambda_.1} parent=15 // pred_region
        %p185 = scmp.lt.s32.totalorder %s10, 1
        %s186 = scalar_select %p185, %s10, 1
        %s187 = smul.addr %s186, 4
        %s188 = scalar_lea.vmem %s3, %s187
      $region32: #{_lambda_.1} parent=15 // pred_fallthru
        _
    $region16: #{_lambda_.1} parent=5 // pred_fallthru
      _
    %p189 = scmp.le.s32.totalorder 1, %s10
    %p190 = scmp.lt.s32.totalorder %s10, 3
    %p191 = pnand %p189, %p190
    %p192 = pneg %p191
    // Predicated region
    $region33: #{_lambda_.1} parent=5 // pred_check
      _
    $region34: #{_lambda_.1} parent=5 // pred_check_branch
      %194 = sbr.rel (%p191) target = $region36
    $region35: #{_lambda_.1} parent=5 // pred_region
      %s195 = ssub.s32 %s10, 1
      %p196 = scmp.lt.s32.totalorder %s15, 1
      %s197 = scalar_select %p196, %s15, 1
      %s198 = smul.addr %s197, 16
      %s199 = smul.addr %s198, 8
      %s200 = scalar_lea.vmem %s0, %s199
      %p201 = pneg %p36
      %p202 = pneg %p33
      %p203 = scmp.lt.s32.totalorder %s15, 1
      %s204 = scalar_select %p203, %s15, 1
      %s205 = smul.addr %s204, 16
      %s206 = smul.addr %s205, 8
      %s207 = scalar_lea.vmem %s1, %s206
      %p208 = pneg %p62
      %p209 = pneg %p59
      %p210 = scmp.lt.s32.totalorder %s15, 1
      %s211 = scalar_select %p210, %s15, 1
      %s212 = smul.addr %s211, 4
      %s213 = scalar_lea.vmem %s2, %s212
      %p214 = pneg %p88
      %p215 = pneg %p85
      %p216 = scmp.lt.s32.totalorder %s15, 1
      %s217 = scalar_select %p216, %s15, 1
      %s218 = smul.addr %s217, 4
      %s219 = scalar_lea.vmem %s3, %s218
      %p220 = pneg %p114
      %p221 = pneg %p111
      %p222 = pneg %p140
      %p223 = pneg %p137
      %p224 = scmp.lt.s32.totalorder %s15, 1
      %s225 = scalar_select %p224, %s15, 1
      %s226 = scalar_lea.vmem %s4, %s225
      %p227 = scmp.lt.s32.totalorder %s15, 1
      %s228 = scalar_select %p227, %s15, 1
      %s229 = smul.addr %s228, 16
      %s230 = smul.addr %s229, 8
      %s231 = scalar_lea.vmem %s0, %s230
      %p232 = scmp.lt.s32.totalorder %s15, 1
      %s233 = scalar_select %p232, %s15, 1
      %s234 = smul.addr %s233, 16
      %s235 = smul.addr %s234, 8
      %s236 = scalar_lea.vmem %s1, %s235
      %p237 = scmp.lt.s32.totalorder %s15, 1
      %s238 = scalar_select %p237, %s15, 1
      %s239 = smul.addr %s238, 4
      %s240 = scalar_lea.vmem %s2, %s239
      %p241 = scmp.lt.s32.totalorder %s15, 1
      %s242 = scalar_select %p241, %s15, 1
      %s243 = smul.addr %s242, 4
      %s244 = scalar_lea.vmem %s3, %s243
      %p245 = scmp.lt.s32.totalorder %s15, 1
      %s246 = scalar_select %p245, %s15, 1
      %s247 = scalar_lea.vmem %s4, %s246
      %v248 = vld [vmem:[%s231] sm:$0xff]
      %v249 = vld [vmem:[%s231 + $0x8] sm:$0xff]
      %v250 = vld [vmem:[%s231 + $0x10] sm:$0xff]
      %v251 = vld [vmem:[%s231 + $0x18] sm:$0xff]
      %v252 = vld [vmem:[%s231 + $0x20] sm:$0xff]
      %v253 = vld [vmem:[%s231 + $0x28] sm:$0xff]
      %v254 = vld [vmem:[%s231 + $0x30] sm:$0xff]
      %v255 = vld [vmem:[%s231 + $0x38] sm:$0xff]
      %v256 = vld [vmem:[%s231 + $0x40] sm:$0xff]
      %v257 = vld [vmem:[%s231 + $0x48] sm:$0xff]
      %v258 = vld [vmem:[%s231 + $0x50] sm:$0xff]
      %v259 = vld [vmem:[%s231 + $0x58] sm:$0xff]
      %v260 = vld [vmem:[%s231 + $0x60] sm:$0xff]
      %v261 = vld [vmem:[%s231 + $0x68] sm:$0xff]
      %v262 = vld [vmem:[%s231 + $0x70] sm:$0xff]
      %v263 = vld [vmem:[%s231 + $0x78] sm:$0xff]
      %v264 = vld [vmem:[%s236] sm:$0xff]
      %v265 = vld [vmem:[%s236 + $0x8] sm:$0xff]
      %v266 = vld [vmem:[%s236 + $0x10] sm:$0xff]
      %v267 = vld [vmem:[%s236 + $0x18] sm:$0xff]
      %v268 = vld [vmem:[%s236 + $0x20] sm:$0xff]
      %v269 = vld [vmem:[%s236 + $0x28] sm:$0xff]
      %v270 = vld [vmem:[%s236 + $0x30] sm:$0xff]
      %v271 = vld [vmem:[%s236 + $0x38] sm:$0xff]
      %v272 = vld [vmem:[%s236 + $0x40] sm:$0xff]
      %v273 = vld [vmem:[%s236 + $0x48] sm:$0xff]
      %v274 = vld [vmem:[%s236 + $0x50] sm:$0xff]
      %v275 = vld [vmem:[%s236 + $0x58] sm:$0xff]
      %v276 = vld [vmem:[%s236 + $0x60] sm:$0xff]
      %v277 = vld [vmem:[%s236 + $0x68] sm:$0xff]
      %v278 = vld [vmem:[%s236 + $0x70] sm:$0xff]
      %v279 = vld [vmem:[%s236 + $0x78] sm:$0xff]
      %v280 = vld [vmem:[%s240] sm:$0x7]
      %v281 = vld [vmem:[%s244] sm:$0x7]
      %283 = vset.pattern.permute.xlu0 0
      %284 = vperm.xlu0 %283, %v248
      %v285 = vpop.permute.xlu0 %284
      %288 = vset.pattern.permute.xlu0 0
      %289 = vperm.xlu0 %288, %v249
      %v290 = vpop.permute.xlu0 %289
      %293 = vset.pattern.permute.xlu0 0
      %294 = vperm.xlu0 %293, %v250
      %v295 = vpop.permute.xlu0 %294
      %298 = vset.pattern.permute.xlu0 0
      %299 = vperm.xlu0 %298, %v251
      %v300 = vpop.permute.xlu0 %299
      %303 = vset.pattern.permute.xlu0 0
      %304 = vperm.xlu0 %303, %v252
      %v305 = vpop.permute.xlu0 %304
      %308 = vset.pattern.permute.xlu0 0
      %309 = vperm.xlu0 %308, %v253
      %v310 = vpop.permute.xlu0 %309
      %313 = vset.pattern.permute.xlu0 0
      %314 = vperm.xlu0 %313, %v254
      %v315 = vpop.permute.xlu0 %314
      %318 = vset.pattern.permute.xlu0 0
      %319 = vperm.xlu0 %318, %v255
      %v320 = vpop.permute.xlu0 %319
      %323 = vset.pattern.permute.xlu0 0
      %324 = vperm.xlu0 %323, %v256
      %v325 = vpop.permute.xlu0 %324
      %328 = vset.pattern.permute.xlu0 0
      %329 = vperm.xlu0 %328, %v257
      %v330 = vpop.permute.xlu0 %329
      %333 = vset.pattern.permute.xlu0 0
      %334 = vperm.xlu0 %333, %v258
      %v335 = vpop.permute.xlu0 %334
      %338 = vset.pattern.permute.xlu0 0
      %339 = vperm.xlu0 %338, %v259
      %v340 = vpop.permute.xlu0 %339
      %343 = vset.pattern.permute.xlu0 0
      %344 = vperm.xlu0 %343, %v260
      %v345 = vpop.permute.xlu0 %344
      %348 = vset.pattern.permute.xlu0 0
      %349 = vperm.xlu0 %348, %v261
      %v350 = vpop.permute.xlu0 %349
      %353 = vset.pattern.permute.xlu0 0
      %354 = vperm.xlu0 %353, %v262
      %v355 = vpop.permute.xlu0 %354
      %358 = vset.pattern.permute.xlu0 0
      %359 = vperm.xlu0 %358, %v263
      %v360 = vpop.permute.xlu0 %359
      %v362 = vlaneseq
      %v363 = vshrl.u32 %v362, 7
      %v364 = vsub.s32 0, %v363
      %v365 = vrot.slane %v281, %v364
      %v366 = vsub.f32 %v285, %v365
      %v367 = vsub.f32 %v290, %v365
      %v368 = vsub.f32 %v295, %v365
      %v369 = vsub.f32 %v300, %v365
      %v370 = vsub.f32 %v305, %v365
      %v371 = vsub.f32 %v310, %v365
      %v372 = vsub.f32 %v315, %v365
      %v373 = vsub.f32 %v320, %v365
      %v374 = vsub.f32 %v325, %v365
      %v375 = vsub.f32 %v330, %v365
      %v376 = vsub.f32 %v335, %v365
      %v377 = vsub.f32 %v340, %v365
      %v378 = vsub.f32 %v345, %v365
      %v379 = vsub.f32 %v350, %v365
      %v380 = vsub.f32 %v355, %v365
      %v381 = vsub.f32 %v360, %v365
      %v382 = vmul.f32 %v366, %v366
      %v383 = vmul.f32 %v367, %v367
      %v384 = vmul.f32 %v368, %v368
      %v385 = vmul.f32 %v369, %v369
      %v386 = vmul.f32 %v370, %v370
      %v387 = vmul.f32 %v371, %v371
      %v388 = vmul.f32 %v372, %v372
      %v389 = vmul.f32 %v373, %v373
      %v390 = vmul.f32 %v374, %v374
      %v391 = vmul.f32 %v375, %v375
      %v392 = vmul.f32 %v376, %v376
      %v393 = vmul.f32 %v377, %v377
      %v394 = vmul.f32 %v378, %v378
      %v395 = vmul.f32 %v379, %v379
      %v396 = vmul.f32 %v380, %v380
      %v397 = vmul.f32 %v381, %v381
      %v398 = vadd.f32 %v382, 0.0
      %v399 = vadd.f32 %v383, 0.0
      %v400 = vadd.f32 %v384, 0.0
      %v401 = vadd.f32 %v385, 0.0
      %v402 = vadd.f32 %v386, 0.0
      %v403 = vadd.f32 %v387, 0.0
      %v404 = vadd.f32 %v388, 0.0
      %v405 = vadd.f32 %v389, 0.0
      %v406 = vadd.f32 %v390, 0.0
      %v407 = vadd.f32 %v391, 0.0
      %v408 = vadd.f32 %v392, 0.0
      %v409 = vadd.f32 %v393, 0.0
      %v410 = vadd.f32 %v394, 0.0
      %v411 = vadd.f32 %v395, 0.0
      %v412 = vadd.f32 %v396, 0.0
      %v413 = vadd.f32 %v397, 0.0
      %414 = vset.pattern.permute.xlu0 1
      %415 = vperm.xlu0 %414, %v248
      %v416 = vpop.permute.xlu0 %415
      %418 = vset.pattern.permute.xlu0 1
      %419 = vperm.xlu0 %418, %v249
      %v420 = vpop.permute.xlu0 %419
      %422 = vset.pattern.permute.xlu0 1
      %423 = vperm.xlu0 %422, %v250
      %v424 = vpop.permute.xlu0 %423
      %426 = vset.pattern.permute.xlu0 1
      %427 = vperm.xlu0 %426, %v251
      %v428 = vpop.permute.xlu0 %427
      %430 = vset.pattern.permute.xlu0 1
      %431 = vperm.xlu0 %430, %v252
      %v432 = vpop.permute.xlu0 %431
      %434 = vset.pattern.permute.xlu0 1
      %435 = vperm.xlu0 %434, %v253
      %v436 = vpop.permute.xlu0 %435
      %438 = vset.pattern.permute.xlu0 1
      %439 = vperm.xlu0 %438, %v254
      %v440 = vpop.permute.xlu0 %439
      %442 = vset.pattern.permute.xlu0 1
      %443 = vperm.xlu0 %442, %v255
      %v444 = vpop.permute.xlu0 %443
      %446 = vset.pattern.permute.xlu0 1
      %447 = vperm.xlu0 %446, %v256
      %v448 = vpop.permute.xlu0 %447
      %450 = vset.pattern.permute.xlu0 1
      %451 = vperm.xlu0 %450, %v257
      %v452 = vpop.permute.xlu0 %451
      %454 = vset.pattern.permute.xlu0 1
      %455 = vperm.xlu0 %454, %v258
      %v456 = vpop.permute.xlu0 %455
      %458 = vset.pattern.permute.xlu0 1
      %459 = vperm.xlu0 %458, %v259
      %v460 = vpop.permute.xlu0 %459
      %462 = vset.pattern.permute.xlu0 1
      %463 = vperm.xlu0 %462, %v260
      %v464 = vpop.permute.xlu0 %463
      %466 = vset.pattern.permute.xlu0 1
      %467 = vperm.xlu0 %466, %v261
      %v468 = vpop.permute.xlu0 %467
      %470 = vset.pattern.permute.xlu0 1
      %471 = vperm.xlu0 %470, %v262
      %v472 = vpop.permute.xlu0 %471
      %474 = vset.pattern.permute.xlu0 1
      %475 = vperm.xlu0 %474, %v263
      %v476 = vpop.permute.xlu0 %475
      %v478 = vlaneseq
      %v479 = vshrl.u32 %v478, 7
      %v480 = vsub.s32 1, %v479
      %v481 = vrot.slane %v281, %v480
      %v482 = vsub.f32 %v416, %v481
      %v483 = vsub.f32 %v420, %v481
      %v484 = vsub.f32 %v424, %v481
      %v485 = vsub.f32 %v428, %v481
      %v486 = vsub.f32 %v432, %v481
      %v487 = vsub.f32 %v436, %v481
      %v488 = vsub.f32 %v440, %v481
      %v489 = vsub.f32 %v444, %v481
      %v490 = vsub.f32 %v448, %v481
      %v491 = vsub.f32 %v452, %v481
      %v492 = vsub.f32 %v456, %v481
      %v493 = vsub.f32 %v460, %v481
      %v494 = vsub.f32 %v464, %v481
      %v495 = vsub.f32 %v468, %v481
      %v496 = vsub.f32 %v472, %v481
      %v497 = vsub.f32 %v476, %v481
      %v498 = vmul.f32 %v482, %v482
      %v499 = vmul.f32 %v483, %v483
      %v500 = vmul.f32 %v484, %v484
      %v501 = vmul.f32 %v485, %v485
      %v502 = vmul.f32 %v486, %v486
      %v503 = vmul.f32 %v487, %v487
      %v504 = vmul.f32 %v488, %v488
      %v505 = vmul.f32 %v489, %v489
      %v506 = vmul.f32 %v490, %v490
      %v507 = vmul.f32 %v491, %v491
      %v508 = vmul.f32 %v492, %v492
      %v509 = vmul.f32 %v493, %v493
      %v510 = vmul.f32 %v494, %v494
      %v511 = vmul.f32 %v495, %v495
      %v512 = vmul.f32 %v496, %v496
      %v513 = vmul.f32 %v497, %v497
      %v514 = vadd.f32 %v398, %v498
      %v515 = vadd.f32 %v399, %v499
      %v516 = vadd.f32 %v400, %v500
      %v517 = vadd.f32 %v401, %v501
      %v518 = vadd.f32 %v402, %v502
      %v519 = vadd.f32 %v403, %v503
      %v520 = vadd.f32 %v404, %v504
      %v521 = vadd.f32 %v405, %v505
      %v522 = vadd.f32 %v406, %v506
      %v523 = vadd.f32 %v407, %v507
      %v524 = vadd.f32 %v408, %v508
      %v525 = vadd.f32 %v409, %v509
      %v526 = vadd.f32 %v410, %v510
      %v527 = vadd.f32 %v411, %v511
      %v528 = vadd.f32 %v412, %v512
      %v529 = vadd.f32 %v413, %v513
      %530 = vset.pattern.permute.xlu0 2
      %531 = vperm.xlu0 %530, %v248
      %v532 = vpop.permute.xlu0 %531
      %534 = vset.pattern.permute.xlu0 2
      %535 = vperm.xlu0 %534, %v249
      %v536 = vpop.permute.xlu0 %535
      %538 = vset.pattern.permute.xlu0 2
      %539 = vperm.xlu0 %538, %v250
      %v540 = vpop.permute.xlu0 %539
      %542 = vset.pattern.permute.xlu0 2
      %543 = vperm.xlu0 %542, %v251
      %v544 = vpop.permute.xlu0 %543
      %546 = vset.pattern.permute.xlu0 2
      %547 = vperm.xlu0 %546, %v252
      %v548 = vpop.permute.xlu0 %547
      %550 = vset.pattern.permute.xlu0 2
      %551 = vperm.xlu0 %550, %v253
      %v552 = vpop.permute.xlu0 %551
      %554 = vset.pattern.permute.xlu0 2
      %555 = vperm.xlu0 %554, %v254
      %v556 = vpop.permute.xlu0 %555
      %558 = vset.pattern.permute.xlu0 2
      %559 = vperm.xlu0 %558, %v255
      %v560 = vpop.permute.xlu0 %559
      %562 = vset.pattern.permute.xlu0 2
      %563 = vperm.xlu0 %562, %v256
      %v564 = vpop.permute.xlu0 %563
      %566 = vset.pattern.permute.xlu0 2
      %567 = vperm.xlu0 %566, %v257
      %v568 = vpop.permute.xlu0 %567
      %570 = vset.pattern.permute.xlu0 2
      %571 = vperm.xlu0 %570, %v258
      %v572 = vpop.permute.xlu0 %571
      %574 = vset.pattern.permute.xlu0 2
      %575 = vperm.xlu0 %574, %v259
      %v576 = vpop.permute.xlu0 %575
      %578 = vset.pattern.permute.xlu0 2
      %579 = vperm.xlu0 %578, %v260
      %v580 = vpop.permute.xlu0 %579
      %582 = vset.pattern.permute.xlu0 2
      %583 = vperm.xlu0 %582, %v261
      %v584 = vpop.permute.xlu0 %583
      %586 = vset.pattern.permute.xlu0 2
      %587 = vperm.xlu0 %586, %v262
      %v588 = vpop.permute.xlu0 %587
      %590 = vset.pattern.permute.xlu0 2
      %591 = vperm.xlu0 %590, %v263
      %v592 = vpop.permute.xlu0 %591
      %v594 = vlaneseq
      %v595 = vshrl.u32 %v594, 7
      %v596 = vsub.s32 2, %v595
      %v597 = vrot.slane %v281, %v596
      %v598 = vsub.f32 %v532, %v597
      %v599 = vsub.f32 %v536, %v597
      %v600 = vsub.f32 %v540, %v597
      %v601 = vsub.f32 %v544, %v597
      %v602 = vsub.f32 %v548, %v597
      %v603 = vsub.f32 %v552, %v597
      %v604 = vsub.f32 %v556, %v597
      %v605 = vsub.f32 %v560, %v597
      %v606 = vsub.f32 %v564, %v597
      %v607 = vsub.f32 %v568, %v597
      %v608 = vsub.f32 %v572, %v597
      %v609 = vsub.f32 %v576, %v597
      %v610 = vsub.f32 %v580, %v597
      %v611 = vsub.f32 %v584, %v597
      %v612 = vsub.f32 %v588, %v597
      %v613 = vsub.f32 %v592, %v597
      %v614 = vmul.f32 %v598, %v598
      %v615 = vmul.f32 %v599, %v599
      %v616 = vmul.f32 %v600, %v600
      %v617 = vmul.f32 %v601, %v601
      %v618 = vmul.f32 %v602, %v602
      %v619 = vmul.f32 %v603, %v603
      %v620 = vmul.f32 %v604, %v604
      %v621 = vmul.f32 %v605, %v605
      %v622 = vmul.f32 %v606, %v606
      %v623 = vmul.f32 %v607, %v607
      %v624 = vmul.f32 %v608, %v608
      %v625 = vmul.f32 %v609, %v609
      %v626 = vmul.f32 %v610, %v610
      %v627 = vmul.f32 %v611, %v611
      %v628 = vmul.f32 %v612, %v612
      %v629 = vmul.f32 %v613, %v613
      %v630 = vadd.f32 %v514, %v614
      %v631 = vadd.f32 %v515, %v615
      %v632 = vadd.f32 %v516, %v616
      %v633 = vadd.f32 %v517, %v617
      %v634 = vadd.f32 %v518, %v618
      %v635 = vadd.f32 %v519, %v619
      %v636 = vadd.f32 %v520, %v620
      %v637 = vadd.f32 %v521, %v621
      %v638 = vadd.f32 %v522, %v622
      %v639 = vadd.f32 %v523, %v623
      %v640 = vadd.f32 %v524, %v624
      %v641 = vadd.f32 %v525, %v625
      %v642 = vadd.f32 %v526, %v626
      %v643 = vadd.f32 %v527, %v627
      %v644 = vadd.f32 %v528, %v628
      %v645 = vadd.f32 %v529, %v629
      %v646 = vlaneseq
      %v647 = vshrl.u32 %v646, 7
      %v648 = vsub.s32 0, %v647
      %v649 = vrot.slane %v280, %v648
      %v650 = vsub.f32 %v285, %v649
      %v651 = vsub.f32 %v290, %v649
      %v652 = vsub.f32 %v295, %v649
      %v653 = vsub.f32 %v300, %v649
      %v654 = vsub.f32 %v305, %v649
      %v655 = vsub.f32 %v310, %v649
      %v656 = vsub.f32 %v315, %v649
      %v657 = vsub.f32 %v320, %v649
      %v658 = vsub.f32 %v325, %v649
      %v659 = vsub.f32 %v330, %v649
      %v660 = vsub.f32 %v335, %v649
      %v661 = vsub.f32 %v340, %v649
      %v662 = vsub.f32 %v345, %v649
      %v663 = vsub.f32 %v350, %v649
      %v664 = vsub.f32 %v355, %v649
      %v665 = vsub.f32 %v360, %v649
      %v666 = vmul.f32 %v650, %v650
      %v667 = vmul.f32 %v651, %v651
      %v668 = vmul.f32 %v652, %v652
      %v669 = vmul.f32 %v653, %v653
      %v670 = vmul.f32 %v654, %v654
      %v671 = vmul.f32 %v655, %v655
      %v672 = vmul.f32 %v656, %v656
      %v673 = vmul.f32 %v657, %v657
      %v674 = vmul.f32 %v658, %v658
      %v675 = vmul.f32 %v659, %v659
      %v676 = vmul.f32 %v660, %v660
      %v677 = vmul.f32 %v661, %v661
      %v678 = vmul.f32 %v662, %v662
      %v679 = vmul.f32 %v663, %v663
      %v680 = vmul.f32 %v664, %v664
      %v681 = vmul.f32 %v665, %v665
      %v682 = vadd.f32 %v666, 0.0
      %v683 = vadd.f32 %v667, 0.0
      %v684 = vadd.f32 %v668, 0.0
      %v685 = vadd.f32 %v669, 0.0
      %v686 = vadd.f32 %v670, 0.0
      %v687 = vadd.f32 %v671, 0.0
      %v688 = vadd.f32 %v672, 0.0
      %v689 = vadd.f32 %v673, 0.0
      %v690 = vadd.f32 %v674, 0.0
      %v691 = vadd.f32 %v675, 0.0
      %v692 = vadd.f32 %v676, 0.0
      %v693 = vadd.f32 %v677, 0.0
      %v694 = vadd.f32 %v678, 0.0
      %v695 = vadd.f32 %v679, 0.0
      %v696 = vadd.f32 %v680, 0.0
      %v697 = vadd.f32 %v681, 0.0
      %v698 = vlaneseq
      %v699 = vshrl.u32 %v698, 7
      %v700 = vsub.s32 1, %v699
      %v701 = vrot.slane %v280, %v700
      %v702 = vsub.f32 %v416, %v701
      %v703 = vsub.f32 %v420, %v701
      %v704 = vsub.f32 %v424, %v701
      %v705 = vsub.f32 %v428, %v701
      %v706 = vsub.f32 %v432, %v701
      %v707 = vsub.f32 %v436, %v701
      %v708 = vsub.f32 %v440, %v701
      %v709 = vsub.f32 %v444, %v701
      %v710 = vsub.f32 %v448, %v701
      %v711 = vsub.f32 %v452, %v701
      %v712 = vsub.f32 %v456, %v701
      %v713 = vsub.f32 %v460, %v701
      %v714 = vsub.f32 %v464, %v701
      %v715 = vsub.f32 %v468, %v701
      %v716 = vsub.f32 %v472, %v701
      %v717 = vsub.f32 %v476, %v701
      %v718 = vmul.f32 %v702, %v702
      %v719 = vmul.f32 %v703, %v703
      %v720 = vmul.f32 %v704, %v704
      %v721 = vmul.f32 %v705, %v705
      %v722 = vmul.f32 %v706, %v706
      %v723 = vmul.f32 %v707, %v707
      %v724 = vmul.f32 %v708, %v708
      %v725 = vmul.f32 %v709, %v709
      %v726 = vmul.f32 %v710, %v710
      %v727 = vmul.f32 %v711, %v711
      %v728 = vmul.f32 %v712, %v712
      %v729 = vmul.f32 %v713, %v713
      %v730 = vmul.f32 %v714, %v714
      %v731 = vmul.f32 %v715, %v715
      %v732 = vmul.f32 %v716, %v716
      %v733 = vmul.f32 %v717, %v717
      %v734 = vadd.f32 %v682, %v718
      %v735 = vadd.f32 %v683, %v719
      %v736 = vadd.f32 %v684, %v720
      %v737 = vadd.f32 %v685, %v721
      %v738 = vadd.f32 %v686, %v722
      %v739 = vadd.f32 %v687, %v723
      %v740 = vadd.f32 %v688, %v724
      %v741 = vadd.f32 %v689, %v725
      %v742 = vadd.f32 %v690, %v726
      %v743 = vadd.f32 %v691, %v727
      %v744 = vadd.f32 %v692, %v728
      %v745 = vadd.f32 %v693, %v729
      %v746 = vadd.f32 %v694, %v730
      %v747 = vadd.f32 %v695, %v731
      %v748 = vadd.f32 %v696, %v732
      %v749 = vadd.f32 %v697, %v733
      %v750 = vlaneseq
      %v751 = vshrl.u32 %v750, 7
      %v752 = vsub.s32 2, %v751
      %v753 = vrot.slane %v280, %v752
      %v754 = vsub.f32 %v532, %v753
      %v755 = vsub.f32 %v536, %v753
      %v756 = vsub.f32 %v540, %v753
      %v757 = vsub.f32 %v544, %v753
      %v758 = vsub.f32 %v548, %v753
      %v759 = vsub.f32 %v552, %v753
      %v760 = vsub.f32 %v556, %v753
      %v761 = vsub.f32 %v560, %v753
      %v762 = vsub.f32 %v564, %v753
      %v763 = vsub.f32 %v568, %v753
      %v764 = vsub.f32 %v572, %v753
      %v765 = vsub.f32 %v576, %v753
      %v766 = vsub.f32 %v580, %v753
      %v767 = vsub.f32 %v584, %v753
      %v768 = vsub.f32 %v588, %v753
      %v769 = vsub.f32 %v592, %v753
      %v770 = vmul.f32 %v754, %v754
      %v771 = vmul.f32 %v755, %v755
      %v772 = vmul.f32 %v756, %v756
      %v773 = vmul.f32 %v757, %v757
      %v774 = vmul.f32 %v758, %v758
      %v775 = vmul.f32 %v759, %v759
      %v776 = vmul.f32 %v760, %v760
      %v777 = vmul.f32 %v761, %v761
      %v778 = vmul.f32 %v762, %v762
      %v779 = vmul.f32 %v763, %v763
      %v780 = vmul.f32 %v764, %v764
      %v781 = vmul.f32 %v765, %v765
      %v782 = vmul.f32 %v766, %v766
      %v783 = vmul.f32 %v767, %v767
      %v784 = vmul.f32 %v768, %v768
      %v785 = vmul.f32 %v769, %v769
      %v786 = vadd.f32 %v734, %v770
      %v787 = vadd.f32 %v735, %v771
      %v788 = vadd.f32 %v736, %v772
      %v789 = vadd.f32 %v737, %v773
      %v790 = vadd.f32 %v738, %v774
      %v791 = vadd.f32 %v739, %v775
      %v792 = vadd.f32 %v740, %v776
      %v793 = vadd.f32 %v741, %v777
      %v794 = vadd.f32 %v742, %v778
      %v795 = vadd.f32 %v743, %v779
      %v796 = vadd.f32 %v744, %v780
      %v797 = vadd.f32 %v745, %v781
      %v798 = vadd.f32 %v746, %v782
      %v799 = vadd.f32 %v747, %v783
      %v800 = vadd.f32 %v748, %v784
      %v801 = vadd.f32 %v749, %v785
      %803 = vset.pattern.permute.xlu0 0
      %804 = vperm.xlu0 %803, %v264
      %v805 = vpop.permute.xlu0 %804
      %808 = vset.pattern.permute.xlu0 0
      %809 = vperm.xlu0 %808, %v265
      %v810 = vpop.permute.xlu0 %809
      %813 = vset.pattern.permute.xlu0 0
      %814 = vperm.xlu0 %813, %v266
      %v815 = vpop.permute.xlu0 %814
      %818 = vset.pattern.permute.xlu0 0
      %819 = vperm.xlu0 %818, %v267
      %v820 = vpop.permute.xlu0 %819
      %823 = vset.pattern.permute.xlu0 0
      %824 = vperm.xlu0 %823, %v268
      %v825 = vpop.permute.xlu0 %824
      %828 = vset.pattern.permute.xlu0 0
      %829 = vperm.xlu0 %828, %v269
      %v830 = vpop.permute.xlu0 %829
      %833 = vset.pattern.permute.xlu0 0
      %834 = vperm.xlu0 %833, %v270
      %v835 = vpop.permute.xlu0 %834
      %838 = vset.pattern.permute.xlu0 0
      %839 = vperm.xlu0 %838, %v271
      %v840 = vpop.permute.xlu0 %839
      %843 = vset.pattern.permute.xlu0 0
      %844 = vperm.xlu0 %843, %v272
      %v845 = vpop.permute.xlu0 %844
      %848 = vset.pattern.permute.xlu0 0
      %849 = vperm.xlu0 %848, %v273
      %v850 = vpop.permute.xlu0 %849
      %853 = vset.pattern.permute.xlu0 0
      %854 = vperm.xlu0 %853, %v274
      %v855 = vpop.permute.xlu0 %854
      %858 = vset.pattern.permute.xlu0 0
      %859 = vperm.xlu0 %858, %v275
      %v860 = vpop.permute.xlu0 %859
      %863 = vset.pattern.permute.xlu0 0
      %864 = vperm.xlu0 %863, %v276
      %v865 = vpop.permute.xlu0 %864
      %868 = vset.pattern.permute.xlu0 0
      %869 = vperm.xlu0 %868, %v277
      %v870 = vpop.permute.xlu0 %869
      %873 = vset.pattern.permute.xlu0 0
      %874 = vperm.xlu0 %873, %v278
      %v875 = vpop.permute.xlu0 %874
      %878 = vset.pattern.permute.xlu0 0
      %879 = vperm.xlu0 %878, %v279
      %v880 = vpop.permute.xlu0 %879
      %v882 = vsub.f32 %v805, %v365
      %v883 = vsub.f32 %v810, %v365
      %v884 = vsub.f32 %v815, %v365
      %v885 = vsub.f32 %v820, %v365
      %v886 = vsub.f32 %v825, %v365
      %v887 = vsub.f32 %v830, %v365
      %v888 = vsub.f32 %v835, %v365
      %v889 = vsub.f32 %v840, %v365
      %v890 = vsub.f32 %v845, %v365
      %v891 = vsub.f32 %v850, %v365
      %v892 = vsub.f32 %v855, %v365
      %v893 = vsub.f32 %v860, %v365
      %v894 = vsub.f32 %v865, %v365
      %v895 = vsub.f32 %v870, %v365
      %v896 = vsub.f32 %v875, %v365
      %v897 = vsub.f32 %v880, %v365
      %v898 = vmul.f32 %v882, %v882
      %v899 = vmul.f32 %v883, %v883
      %v900 = vmul.f32 %v884, %v884
      %v901 = vmul.f32 %v885, %v885
      %v902 = vmul.f32 %v886, %v886
      %v903 = vmul.f32 %v887, %v887
      %v904 = vmul.f32 %v888, %v888
      %v905 = vmul.f32 %v889, %v889
      %v906 = vmul.f32 %v890, %v890
      %v907 = vmul.f32 %v891, %v891
      %v908 = vmul.f32 %v892, %v892
      %v909 = vmul.f32 %v893, %v893
      %v910 = vmul.f32 %v894, %v894
      %v911 = vmul.f32 %v895, %v895
      %v912 = vmul.f32 %v896, %v896
      %v913 = vmul.f32 %v897, %v897
      %v914 = vadd.f32 %v898, 0.0
      %v915 = vadd.f32 %v899, 0.0
      %v916 = vadd.f32 %v900, 0.0
      %v917 = vadd.f32 %v901, 0.0
      %v918 = vadd.f32 %v902, 0.0
      %v919 = vadd.f32 %v903, 0.0
      %v920 = vadd.f32 %v904, 0.0
      %v921 = vadd.f32 %v905, 0.0
      %v922 = vadd.f32 %v906, 0.0
      %v923 = vadd.f32 %v907, 0.0
      %v924 = vadd.f32 %v908, 0.0
      %v925 = vadd.f32 %v909, 0.0
      %v926 = vadd.f32 %v910, 0.0
      %v927 = vadd.f32 %v911, 0.0
      %v928 = vadd.f32 %v912, 0.0
      %v929 = vadd.f32 %v913, 0.0
      %930 = vset.pattern.permute.xlu0 1
      %931 = vperm.xlu0 %930, %v264
      %v932 = vpop.permute.xlu0 %931
      %934 = vset.pattern.permute.xlu0 1
      %935 = vperm.xlu0 %934, %v265
      %v936 = vpop.permute.xlu0 %935
      %938 = vset.pattern.permute.xlu0 1
      %939 = vperm.xlu0 %938, %v266
      %v940 = vpop.permute.xlu0 %939
      %942 = vset.pattern.permute.xlu0 1
      %943 = vperm.xlu0 %942, %v267
      %v944 = vpop.permute.xlu0 %943
      %946 = vset.pattern.permute.xlu0 1
      %947 = vperm.xlu0 %946, %v268
      %v948 = vpop.permute.xlu0 %947
      %950 = vset.pattern.permute.xlu0 1
      %951 = vperm.xlu0 %950, %v269
      %v952 = vpop.permute.xlu0 %951
      %954 = vset.pattern.permute.xlu0 1
      %955 = vperm.xlu0 %954, %v270
      %v956 = vpop.permute.xlu0 %955
      %958 = vset.pattern.permute.xlu0 1
      %959 = vperm.xlu0 %958, %v271
      %v960 = vpop.permute.xlu0 %959
      %962 = vset.pattern.permute.xlu0 1
      %963 = vperm.xlu0 %962, %v272
      %v964 = vpop.permute.xlu0 %963
      %966 = vset.pattern.permute.xlu0 1
      %967 = vperm.xlu0 %966, %v273
      %v968 = vpop.permute.xlu0 %967
      %970 = vset.pattern.permute.xlu0 1
      %971 = vperm.xlu0 %970, %v274
      %v972 = vpop.permute.xlu0 %971
      %974 = vset.pattern.permute.xlu0 1
      %975 = vperm.xlu0 %974, %v275
      %v976 = vpop.permute.xlu0 %975
      %978 = vset.pattern.permute.xlu0 1
      %979 = vperm.xlu0 %978, %v276
      %v980 = vpop.permute.xlu0 %979
      %982 = vset.pattern.permute.xlu0 1
      %983 = vperm.xlu0 %982, %v277
      %v984 = vpop.permute.xlu0 %983
      %986 = vset.pattern.permute.xlu0 1
      %987 = vperm.xlu0 %986, %v278
      %v988 = vpop.permute.xlu0 %987
      %990 = vset.pattern.permute.xlu0 1
      %991 = vperm.xlu0 %990, %v279
      %v992 = vpop.permute.xlu0 %991
      %v994 = vsub.f32 %v932, %v481
      %v995 = vsub.f32 %v936, %v481
      %v996 = vsub.f32 %v940, %v481
      %v997 = vsub.f32 %v944, %v481
      %v998 = vsub.f32 %v948, %v481
      %v999 = vsub.f32 %v952, %v481
      %v1000 = vsub.f32 %v956, %v481
      %v1001 = vsub.f32 %v960, %v481
      %v1002 = vsub.f32 %v964, %v481
      %v1003 = vsub.f32 %v968, %v481
      %v1004 = vsub.f32 %v972, %v481
      %v1005 = vsub.f32 %v976, %v481
      %v1006 = vsub.f32 %v980, %v481
      %v1007 = vsub.f32 %v984, %v481
      %v1008 = vsub.f32 %v988, %v481
      %v1009 = vsub.f32 %v992, %v481
      %v1010 = vmul.f32 %v994, %v994
      %v1011 = vmul.f32 %v995, %v995
      %v1012 = vmul.f32 %v996, %v996
      %v1013 = vmul.f32 %v997, %v997
      %v1014 = vmul.f32 %v998, %v998
      %v1015 = vmul.f32 %v999, %v999
      %v1016 = vmul.f32 %v1000, %v1000
      %v1017 = vmul.f32 %v1001, %v1001
      %v1018 = vmul.f32 %v1002, %v1002
      %v1019 = vmul.f32 %v1003, %v1003
      %v1020 = vmul.f32 %v1004, %v1004
      %v1021 = vmul.f32 %v1005, %v1005
      %v1022 = vmul.f32 %v1006, %v1006
      %v1023 = vmul.f32 %v1007, %v1007
      %v1024 = vmul.f32 %v1008, %v1008
      %v1025 = vmul.f32 %v1009, %v1009
      %v1026 = vadd.f32 %v914, %v1010
      %v1027 = vadd.f32 %v915, %v1011
      %v1028 = vadd.f32 %v916, %v1012
      %v1029 = vadd.f32 %v917, %v1013
      %v1030 = vadd.f32 %v918, %v1014
      %v1031 = vadd.f32 %v919, %v1015
      %v1032 = vadd.f32 %v920, %v1016
      %v1033 = vadd.f32 %v921, %v1017
      %v1034 = vadd.f32 %v922, %v1018
      %v1035 = vadd.f32 %v923, %v1019
      %v1036 = vadd.f32 %v924, %v1020
      %v1037 = vadd.f32 %v925, %v1021
      %v1038 = vadd.f32 %v926, %v1022
      %v1039 = vadd.f32 %v927, %v1023
      %v1040 = vadd.f32 %v928, %v1024
      %v1041 = vadd.f32 %v929, %v1025
      %1042 = vset.pattern.permute.xlu0 2
      %1043 = vperm.xlu0 %1042, %v264
      %v1044 = vpop.permute.xlu0 %1043
      %1046 = vset.pattern.permute.xlu0 2
      %1047 = vperm.xlu0 %1046, %v265
      %v1048 = vpop.permute.xlu0 %1047
      %1050 = vset.pattern.permute.xlu0 2
      %1051 = vperm.xlu0 %1050, %v266
      %v1052 = vpop.permute.xlu0 %1051
      %1054 = vset.pattern.permute.xlu0 2
      %1055 = vperm.xlu0 %1054, %v267
      %v1056 = vpop.permute.xlu0 %1055
      %1058 = vset.pattern.permute.xlu0 2
      %1059 = vperm.xlu0 %1058, %v268
      %v1060 = vpop.permute.xlu0 %1059
      %1062 = vset.pattern.permute.xlu0 2
      %1063 = vperm.xlu0 %1062, %v269
      %v1064 = vpop.permute.xlu0 %1063
      %1066 = vset.pattern.permute.xlu0 2
      %1067 = vperm.xlu0 %1066, %v270
      %v1068 = vpop.permute.xlu0 %1067
      %1070 = vset.pattern.permute.xlu0 2
      %1071 = vperm.xlu0 %1070, %v271
      %v1072 = vpop.permute.xlu0 %1071
      %1074 = vset.pattern.permute.xlu0 2
      %1075 = vperm.xlu0 %1074, %v272
      %v1076 = vpop.permute.xlu0 %1075
      %1078 = vset.pattern.permute.xlu0 2
      %1079 = vperm.xlu0 %1078, %v273
      %v1080 = vpop.permute.xlu0 %1079
      %1082 = vset.pattern.permute.xlu0 2
      %1083 = vperm.xlu0 %1082, %v274
      %v1084 = vpop.permute.xlu0 %1083
      %1086 = vset.pattern.permute.xlu0 2
      %1087 = vperm.xlu0 %1086, %v275
      %v1088 = vpop.permute.xlu0 %1087
      %1090 = vset.pattern.permute.xlu0 2
      %1091 = vperm.xlu0 %1090, %v276
      %v1092 = vpop.permute.xlu0 %1091
      %1094 = vset.pattern.permute.xlu0 2
      %1095 = vperm.xlu0 %1094, %v277
      %v1096 = vpop.permute.xlu0 %1095
      %1098 = vset.pattern.permute.xlu0 2
      %1099 = vperm.xlu0 %1098, %v278
      %v1100 = vpop.permute.xlu0 %1099
      %1102 = vset.pattern.permute.xlu0 2
      %1103 = vperm.xlu0 %1102, %v279
      %v1104 = vpop.permute.xlu0 %1103
      %v1106 = vsub.f32 %v1044, %v597
      %v1107 = vsub.f32 %v1048, %v597
      %v1108 = vsub.f32 %v1052, %v597
      %v1109 = vsub.f32 %v1056, %v597
      %v1110 = vsub.f32 %v1060, %v597
      %v1111 = vsub.f32 %v1064, %v597
      %v1112 = vsub.f32 %v1068, %v597
      %v1113 = vsub.f32 %v1072, %v597
      %v1114 = vsub.f32 %v1076, %v597
      %v1115 = vsub.f32 %v1080, %v597
      %v1116 = vsub.f32 %v1084, %v597
      %v1117 = vsub.f32 %v1088, %v597
      %v1118 = vsub.f32 %v1092, %v597
      %v1119 = vsub.f32 %v1096, %v597
      %v1120 = vsub.f32 %v1100, %v597
      %v1121 = vsub.f32 %v1104, %v597
      %v1122 = vmul.f32 %v1106, %v1106
      %v1123 = vmul.f32 %v1107, %v1107
      %v1124 = vmul.f32 %v1108, %v1108
      %v1125 = vmul.f32 %v1109, %v1109
      %v1126 = vmul.f32 %v1110, %v1110
      %v1127 = vmul.f32 %v1111, %v1111
      %v1128 = vmul.f32 %v1112, %v1112
      %v1129 = vmul.f32 %v1113, %v1113
      %v1130 = vmul.f32 %v1114, %v1114
      %v1131 = vmul.f32 %v1115, %v1115
      %v1132 = vmul.f32 %v1116, %v1116
      %v1133 = vmul.f32 %v1117, %v1117
      %v1134 = vmul.f32 %v1118, %v1118
      %v1135 = vmul.f32 %v1119, %v1119
      %v1136 = vmul.f32 %v1120, %v1120
      %v1137 = vmul.f32 %v1121, %v1121
      %v1138 = vadd.f32 %v1026, %v1122
      %v1139 = vadd.f32 %v1027, %v1123
      %v1140 = vadd.f32 %v1028, %v1124
      %v1141 = vadd.f32 %v1029, %v1125
      %v1142 = vadd.f32 %v1030, %v1126
      %v1143 = vadd.f32 %v1031, %v1127
      %v1144 = vadd.f32 %v1032, %v1128
      %v1145 = vadd.f32 %v1033, %v1129
      %v1146 = vadd.f32 %v1034, %v1130
      %v1147 = vadd.f32 %v1035, %v1131
      %v1148 = vadd.f32 %v1036, %v1132
      %v1149 = vadd.f32 %v1037, %v1133
      %v1150 = vadd.f32 %v1038, %v1134
      %v1151 = vadd.f32 %v1039, %v1135
      %v1152 = vadd.f32 %v1040, %v1136
      %v1153 = vadd.f32 %v1041, %v1137
      %1154 = vmin.xlane.f32.xlu0 %v630
      %v1155 = vpop.xlane.xlu0 %1154
      %1156 = vmin.xlane.f32.xlu0 %v631
      %v1157 = vpop.xlane.xlu0 %1156
      %1158 = vmin.xlane.f32.xlu0 %v632
      %v1159 = vpop.xlane.xlu0 %1158
      %1160 = vmin.xlane.f32.xlu0 %v633
      %v1161 = vpop.xlane.xlu0 %1160
      %1162 = vmin.xlane.f32.xlu0 %v634
      %v1163 = vpop.xlane.xlu0 %1162
      %1164 = vmin.xlane.f32.xlu0 %v635
      %v1165 = vpop.xlane.xlu0 %1164
      %1166 = vmin.xlane.f32.xlu0 %v636
      %v1167 = vpop.xlane.xlu0 %1166
      %1168 = vmin.xlane.f32.xlu0 %v637
      %v1169 = vpop.xlane.xlu0 %1168
      %1170 = vmin.xlane.f32.xlu0 %v638
      %v1171 = vpop.xlane.xlu0 %1170
      %1172 = vmin.xlane.f32.xlu0 %v639
      %v1173 = vpop.xlane.xlu0 %1172
      %1174 = vmin.xlane.f32.xlu0 %v640
      %v1175 = vpop.xlane.xlu0 %1174
      %1176 = vmin.xlane.f32.xlu0 %v641
      %v1177 = vpop.xlane.xlu0 %1176
      %1178 = vmin.xlane.f32.xlu0 %v642
      %v1179 = vpop.xlane.xlu0 %1178
      %1180 = vmin.xlane.f32.xlu0 %v643
      %v1181 = vpop.xlane.xlu0 %1180
      %1182 = vmin.xlane.f32.xlu0 %v644
      %v1183 = vpop.xlane.xlu0 %1182
      %1184 = vmin.xlane.f32.xlu0 %v645
      %v1185 = vpop.xlane.xlu0 %1184
      %vm1186 = vcmask 7168
      %v1187 = vsel %vm1186, %v1155, 0.0
      %v1188 = vsel %vm1186, %v1157, 0.0
      %v1189 = vadd.f32 %v1187, %v1188
      %v1190 = vsel %vm1186, %v1159, 0.0
      %v1191 = vadd.f32 %v1189, %v1190
      %v1192 = vsel %vm1186, %v1161, 0.0
      %v1193 = vadd.f32 %v1191, %v1192
      %v1194 = vsel %vm1186, %v1163, 0.0
      %v1195 = vadd.f32 %v1193, %v1194
      %v1196 = vsel %vm1186, %v1165, 0.0
      %v1197 = vadd.f32 %v1195, %v1196
      %v1198 = vsel %vm1186, %v1167, 0.0
      %v1199 = vadd.f32 %v1197, %v1198
      %v1200 = vsel %vm1186, %v1169, 0.0
      %v1201 = vadd.f32 %v1199, %v1200
      %v1202 = vsel %vm1186, %v1171, 0.0
      %v1203 = vadd.f32 %v1201, %v1202
      %v1204 = vsel %vm1186, %v1173, 0.0
      %v1205 = vadd.f32 %v1203, %v1204
      %v1206 = vsel %vm1186, %v1175, 0.0
      %v1207 = vadd.f32 %v1205, %v1206
      %v1208 = vsel %vm1186, %v1177, 0.0
      %v1209 = vadd.f32 %v1207, %v1208
      %v1210 = vsel %vm1186, %v1179, 0.0
      %v1211 = vadd.f32 %v1209, %v1210
      %v1212 = vsel %vm1186, %v1181, 0.0
      %v1213 = vadd.f32 %v1211, %v1212
      %v1214 = vsel %vm1186, %v1183, 0.0
      %v1215 = vadd.f32 %v1213, %v1214
      %v1216 = vsel %vm1186, %v1185, 0.0
      %v1217 = vadd.f32 %v1215, %v1216
      %1218 = vadd.xlane.f32.xlu0 %v1217
      %v1219 = vpop.xlane.xlu0 %1218
      %v1220 = vrot.slane %v1219, 4
      %v1221 = vadd.f32 %v1219, %v1220
      %v1222 = vrot.slane %v1221, 2
      %v1223 = vadd.f32 %v1221, %v1222
      %v1224 = vrot.slane %v1223, 1
      %v1225 = vadd.f32 %v1223, %v1224
      %s1226 = vtos %v1225
      %v1227 = vrcp.pop 128.0
      %s1228 = vtos %v1227
      %s1229 = smul.f32 %s1226, %s1228
      %v1230 = vmin.f32 %v630, %v634
      %v1231 = vmin.f32 %v631, %v635
      %v1232 = vmin.f32 %v632, %v636
      %v1233 = vmin.f32 %v633, %v637
      %v1234 = vmin.f32 %v1230, %v638
      %v1235 = vmin.f32 %v1231, %v639
      %v1236 = vmin.f32 %v1232, %v640
      %v1237 = vmin.f32 %v1233, %v641
      %v1238 = vmin.f32 %v1234, %v642
      %v1239 = vmin.f32 %v1235, %v643
      %v1240 = vmin.f32 %v1236, %v644
      %v1241 = vmin.f32 %v1237, %v645
      %v1242 = vmin.f32 %v1238, %v1239
      %v1243 = vmin.f32 %v1240, %v1241
      %v1244 = vmin.f32 %v1242, %v1243
      %v1245 = vrot.slane %v1244, 4
      %v1246 = vmin.f32 %v1244, %v1245
      %v1247 = vrot.slane %v1246, 2
      %v1248 = vmin.f32 %v1246, %v1247
      %v1249 = vrot.slane %v1248, 1
      %v1250 = vmin.f32 %v1248, %v1249
      %vm1251 = vcmask 1040384
      %v1252 = vsel %vm1251, %v1250, 0.0
      %1253 = vadd.xlane.f32.xlu0 %v1252
      %v1254 = vpop.xlane.xlu0 %1253
      %v1255 = vrot.slane %v1254, 4
      %v1256 = vadd.f32 %v1254, %v1255
      %v1257 = vrot.slane %v1256, 2
      %v1258 = vadd.f32 %v1256, %v1257
      %v1259 = vrot.slane %v1258, 1
      %v1260 = vadd.f32 %v1258, %v1259
      %s1261 = vtos %v1260
      %v1262 = vrcp.pop 128.0
      %s1263 = vtos %v1262
      %s1264 = smul.f32 %s1261, %s1263
      %s1265 = sadd.f32 %s1229, %s1264
      %vm1266 = vcmask 23552
      %v1267 = vsel %vm1266, %v248, inf
      %v1268 = vsel %vm1266, %v249, inf
      %v1269 = vsel %vm1266, %v250, inf
      %v1270 = vsel %vm1266, %v251, inf
      %v1271 = vsel %vm1266, %v252, inf
      %v1272 = vmin.f32 %v1267, %v1271
      %v1273 = vsel %vm1266, %v253, inf
      %v1274 = vmin.f32 %v1268, %v1273
      %v1275 = vsel %vm1266, %v254, inf
      %v1276 = vmin.f32 %v1269, %v1275
      %v1277 = vsel %vm1266, %v255, inf
      %v1278 = vmin.f32 %v1270, %v1277
      %v1279 = vsel %vm1266, %v256, inf
      %v1280 = vmin.f32 %v1272, %v1279
      %v1281 = vsel %vm1266, %v257, inf
      %v1282 = vmin.f32 %v1274, %v1281
      %v1283 = vsel %vm1266, %v258, inf
      %v1284 = vmin.f32 %v1276, %v1283
      %v1285 = vsel %vm1266, %v259, inf
      %v1286 = vmin.f32 %v1278, %v1285
      %v1287 = vsel %vm1266, %v260, inf
      %v1288 = vmin.f32 %v1280, %v1287
      %v1289 = vsel %vm1266, %v261, inf
      %v1290 = vmin.f32 %v1282, %v1289
      %v1291 = vsel %vm1266, %v262, inf
      %v1292 = vmin.f32 %v1284, %v1291
      %v1293 = vsel %vm1266, %v263, inf
      %v1294 = vmin.f32 %v1286, %v1293
      %v1295 = vmin.f32 %v1288, %v1290
      %v1296 = vmin.f32 %v1292, %v1294
      %v1297 = vmin.f32 %v1295, %v1296
      %v1298 = vrot.slane %v1297, 4
      %v1299 = vmin.f32 %v1297, %v1298
      %v1300 = vrot.slane %v1299, 2
      %v1301 = vmin.f32 %v1299, %v1300
      %v1302 = vrot.slane %v1301, 1
      %v1303 = vmin.f32 %v1301, %v1302
      %v1304 = vsel %vm1266, %v264, inf
      %v1305 = vsel %vm1266, %v265, inf
      %v1306 = vsel %vm1266, %v266, inf
      %v1307 = vsel %vm1266, %v267, inf
      %v1308 = vsel %vm1266, %v268, inf
      %v1309 = vmin.f32 %v1304, %v1308
      %v1310 = vsel %vm1266, %v269, inf
      %v1311 = vmin.f32 %v1305, %v1310
      %v1312 = vsel %vm1266, %v270, inf
      %v1313 = vmin.f32 %v1306, %v1312
      %v1314 = vsel %vm1266, %v271, inf
      %v1315 = vmin.f32 %v1307, %v1314
      %v1316 = vsel %vm1266, %v272, inf
      %v1317 = vmin.f32 %v1309, %v1316
      %v1318 = vsel %vm1266, %v273, inf
      %v1319 = vmin.f32 %v1311, %v1318
      %v1320 = vsel %vm1266, %v274, inf
      %v1321 = vmin.f32 %v1313, %v1320
      %v1322 = vsel %vm1266, %v275, inf
      %v1323 = vmin.f32 %v1315, %v1322
      %v1324 = vsel %vm1266, %v276, inf
      %v1325 = vmin.f32 %v1317, %v1324
      %v1326 = vsel %vm1266, %v277, inf
      %v1327 = vmin.f32 %v1319, %v1326
      %v1328 = vsel %vm1266, %v278, inf
      %v1329 = vmin.f32 %v1321, %v1328
      %v1330 = vsel %vm1266, %v279, inf
      %v1331 = vmin.f32 %v1323, %v1330
      %v1332 = vmin.f32 %v1325, %v1327
      %v1333 = vmin.f32 %v1329, %v1331
      %v1334 = vmin.f32 %v1332, %v1333
      %v1335 = vrot.slane %v1334, 4
      %v1336 = vmin.f32 %v1334, %v1335
      %v1337 = vrot.slane %v1336, 2
      %v1338 = vmin.f32 %v1336, %v1337
      %v1339 = vrot.slane %v1338, 1
      %v1340 = vmin.f32 %v1338, %v1339
      %v1341 = vmin.f32 %v1303, %v1340
      %v1342 = vsel %vm1266, %v248, -inf
      %v1343 = vsel %vm1266, %v249, -inf
      %v1344 = vsel %vm1266, %v250, -inf
      %v1345 = vsel %vm1266, %v251, -inf
      %v1346 = vsel %vm1266, %v252, -inf
      %v1347 = vmax.f32 %v1342, %v1346
      %v1348 = vsel %vm1266, %v253, -inf
      %v1349 = vmax.f32 %v1343, %v1348
      %v1350 = vsel %vm1266, %v254, -inf
      %v1351 = vmax.f32 %v1344, %v1350
      %v1352 = vsel %vm1266, %v255, -inf
      %v1353 = vmax.f32 %v1345, %v1352
      %v1354 = vsel %vm1266, %v256, -inf
      %v1355 = vmax.f32 %v1347, %v1354
      %v1356 = vsel %vm1266, %v257, -inf
      %v1357 = vmax.f32 %v1349, %v1356
      %v1358 = vsel %vm1266, %v258, -inf
      %v1359 = vmax.f32 %v1351, %v1358
      %v1360 = vsel %vm1266, %v259, -inf
      %v1361 = vmax.f32 %v1353, %v1360
      %v1362 = vsel %vm1266, %v260, -inf
      %v1363 = vmax.f32 %v1355, %v1362
      %v1364 = vsel %vm1266, %v261, -inf
      %v1365 = vmax.f32 %v1357, %v1364
      %v1366 = vsel %vm1266, %v262, -inf
      %v1367 = vmax.f32 %v1359, %v1366
      %v1368 = vsel %vm1266, %v263, -inf
      %v1369 = vmax.f32 %v1361, %v1368
      %v1370 = vmax.f32 %v1363, %v1365
      %v1371 = vmax.f32 %v1367, %v1369
      %v1372 = vmax.f32 %v1370, %v1371
      %v1373 = vrot.slane %v1372, 4
      %v1374 = vmax.f32 %v1372, %v1373
      %v1375 = vrot.slane %v1374, 2
      %v1376 = vmax.f32 %v1374, %v1375
      %v1377 = vrot.slane %v1376, 1
      %v1378 = vmax.f32 %v1376, %v1377
      %v1379 = vsel %vm1266, %v264, -inf
      %v1380 = vsel %vm1266, %v265, -inf
      %v1381 = vsel %vm1266, %v266, -inf
      %v1382 = vsel %vm1266, %v267, -inf
      %v1383 = vsel %vm1266, %v268, -inf
      %v1384 = vmax.f32 %v1379, %v1383
      %v1385 = vsel %vm1266, %v269, -inf
      %v1386 = vmax.f32 %v1380, %v1385
      %v1387 = vsel %vm1266, %v270, -inf
      %v1388 = vmax.f32 %v1381, %v1387
      %v1389 = vsel %vm1266, %v271, -inf
      %v1390 = vmax.f32 %v1382, %v1389
      %v1391 = vsel %vm1266, %v272, -inf
      %v1392 = vmax.f32 %v1384, %v1391
      %v1393 = vsel %vm1266, %v273, -inf
      %v1394 = vmax.f32 %v1386, %v1393
      %v1395 = vsel %vm1266, %v274, -inf
      %v1396 = vmax.f32 %v1388, %v1395
      %v1397 = vsel %vm1266, %v275, -inf
      %v1398 = vmax.f32 %v1390, %v1397
      %v1399 = vsel %vm1266, %v276, -inf
      %v1400 = vmax.f32 %v1392, %v1399
      %v1401 = vsel %vm1266, %v277, -inf
      %v1402 = vmax.f32 %v1394, %v1401
      %v1403 = vsel %vm1266, %v278, -inf
      %v1404 = vmax.f32 %v1396, %v1403
      %v1405 = vsel %vm1266, %v279, -inf
      %v1406 = vmax.f32 %v1398, %v1405
      %v1407 = vmax.f32 %v1400, %v1402
      %v1408 = vmax.f32 %v1404, %v1406
      %v1409 = vmax.f32 %v1407, %v1408
      %v1410 = vrot.slane %v1409, 4
      %v1411 = vmax.f32 %v1409, %v1410
      %v1412 = vrot.slane %v1411, 2
      %v1413 = vmax.f32 %v1411, %v1412
      %v1414 = vrot.slane %v1413, 1
      %v1415 = vmax.f32 %v1413, %v1414
      %v1416 = vmax.f32 %v1378, %v1415
      %v1417 = vsub.f32 %v1416, %v1341
      %v1418 = vmul.f32 %v1417, %v1417
      %vm1419 = vcmask 16384
      %v1420 = vsel %vm1419, %v1418, 0.0
      %1421 = vadd.xlane.f32.xlu0 %v1420
      %v1422 = vpop.xlane.xlu0 %1421
      %v1423 = vrot.slane %v1422, 4
      %v1424 = vadd.f32 %v1422, %v1423
      %v1425 = vrot.slane %v1424, 2
      %v1426 = vadd.f32 %v1424, %v1425
      %v1427 = vrot.slane %v1426, 1
      %v1428 = vadd.f32 %v1426, %v1427
      %s1429 = vtos %v1428
      %s1430 = smax.f32 %s1429, 0.0025
      loop: start=0, step=1, limit=14
      $region37: #{_lambda_.1} parent=35 // loop_pre_header
        _
      $region38: #{_lambda_.1} parent=35 // loop_header
        %s1432 = sphi 0, %s1436
        %p1433 = scmp.ge.s32.totalorder %s1432, 14
        %s1437 = sphi %s1430, %s3136
        %v1438 = vphi 0.0, %v2089
        %v1439 = vphi 0.0, %v2090
        %v1440 = vphi 0.0, %v2091
        %v1441 = vphi 0.0, %v2092
        %v1442 = vphi 0.0, %v2093
        %v1443 = vphi 0.0, %v2094
        %v1444 = vphi 0.0, %v2095
        %v1445 = vphi 0.0, %v2096
        %v1446 = vphi 0.0, %v2097
        %v1447 = vphi 0.0, %v2098
        %v1448 = vphi 0.0, %v2099
        %v1449 = vphi 0.0, %v2100
        %v1450 = vphi 0.0, %v2101
        %v1451 = vphi 0.0, %v2102
        %v1452 = vphi 0.0, %v2103
        %v1453 = vphi 0.0, %v2104
        %v1454 = vphi 0.0, %v2106
        %v1455 = vphi 0.0, %v2620
        %v1456 = vphi 0.0, %v3134
      $region39: #{_lambda_.1} parent=35 // loop_header_branch
        %1435 = sbr.rel (%p1433) target = $region43
      $region40: #{_lambda_.1} parent=35 // loop_body
        %v1457 = vstv %s1437
        %v1458 = vrcp.pop %v1457
        %s1459 = vtos %v1458
        %s1460 = smul.f32 %s1459, -0.5
        %v1461 = vstv %s1460
        %v1462 = vmul.f32 %v630, %v1461
        %v1463 = vmul.f32 %v631, %v1461
        %v1464 = vmul.f32 %v632, %v1461
        %v1465 = vmul.f32 %v633, %v1461
        %v1466 = vmul.f32 %v634, %v1461
        %v1467 = vmul.f32 %v635, %v1461
        %v1468 = vmul.f32 %v636, %v1461
        %v1469 = vmul.f32 %v637, %v1461
        %v1470 = vmul.f32 %v638, %v1461
        %v1471 = vmul.f32 %v639, %v1461
        %v1472 = vmul.f32 %v640, %v1461
        %v1473 = vmul.f32 %v641, %v1461
        %v1474 = vmul.f32 %v642, %v1461
        %v1475 = vmul.f32 %v643, %v1461
        %v1476 = vmul.f32 %v644, %v1461
        %v1477 = vmul.f32 %v645, %v1461
        %v1478 = vadd.f32 %v1462, -4.8520303
        %v1479 = vadd.f32 %v1463, -4.8520303
        %v1480 = vadd.f32 %v1464, -4.8520303
        %v1481 = vadd.f32 %v1465, -4.8520303
        %v1482 = vadd.f32 %v1466, -4.8520303
        %v1483 = vadd.f32 %v1467, -4.8520303
        %v1484 = vadd.f32 %v1468, -4.8520303
        %v1485 = vadd.f32 %v1469, -4.8520303
        %v1486 = vadd.f32 %v1470, -4.8520303
        %v1487 = vadd.f32 %v1471, -4.8520303
        %v1488 = vadd.f32 %v1472, -4.8520303
        %v1489 = vadd.f32 %v1473, -4.8520303
        %v1490 = vadd.f32 %v1474, -4.8520303
        %v1491 = vadd.f32 %v1475, -4.8520303
        %v1492 = vadd.f32 %v1476, -4.8520303
        %v1493 = vadd.f32 %v1477, -4.8520303
        %v1494 = vmul.f32 %v786, %v1461
        %v1495 = vmul.f32 %v787, %v1461
        %v1496 = vmul.f32 %v788, %v1461
        %v1497 = vmul.f32 %v789, %v1461
        %v1498 = vmul.f32 %v790, %v1461
        %v1499 = vmul.f32 %v791, %v1461
        %v1500 = vmul.f32 %v792, %v1461
        %v1501 = vmul.f32 %v793, %v1461
        %v1502 = vmul.f32 %v794, %v1461
        %v1503 = vmul.f32 %v795, %v1461
        %v1504 = vmul.f32 %v796, %v1461
        %v1505 = vmul.f32 %v797, %v1461
        %v1506 = vmul.f32 %v798, %v1461
        %v1507 = vmul.f32 %v799, %v1461
        %v1508 = vmul.f32 %v800, %v1461
        %v1509 = vmul.f32 %v801, %v1461
        %v1510 = vadd.f32 %v1494, -4.8520303
        %v1511 = vadd.f32 %v1495, -4.8520303
        %v1512 = vadd.f32 %v1496, -4.8520303
        %v1513 = vadd.f32 %v1497, -4.8520303
        %v1514 = vadd.f32 %v1498, -4.8520303
        %v1515 = vadd.f32 %v1499, -4.8520303
        %v1516 = vadd.f32 %v1500, -4.8520303
        %v1517 = vadd.f32 %v1501, -4.8520303
        %v1518 = vadd.f32 %v1502, -4.8520303
        %v1519 = vadd.f32 %v1503, -4.8520303
        %v1520 = vadd.f32 %v1504, -4.8520303
        %v1521 = vadd.f32 %v1505, -4.8520303
        %v1522 = vadd.f32 %v1506, -4.8520303
        %v1523 = vadd.f32 %v1507, -4.8520303
        %v1524 = vadd.f32 %v1508, -4.8520303
        %v1525 = vadd.f32 %v1509, -4.8520303
        %v1526 = vmul.f32 %v1138, %v1461
        %v1527 = vmul.f32 %v1139, %v1461
        %v1528 = vmul.f32 %v1140, %v1461
        %v1529 = vmul.f32 %v1141, %v1461
        %v1530 = vmul.f32 %v1142, %v1461
        %v1531 = vmul.f32 %v1143, %v1461
        %v1532 = vmul.f32 %v1144, %v1461
        %v1533 = vmul.f32 %v1145, %v1461
        %v1534 = vmul.f32 %v1146, %v1461
        %v1535 = vmul.f32 %v1147, %v1461
        %v1536 = vmul.f32 %v1148, %v1461
        %v1537 = vmul.f32 %v1149, %v1461
        %v1538 = vmul.f32 %v1150, %v1461
        %v1539 = vmul.f32 %v1151, %v1461
        %v1540 = vmul.f32 %v1152, %v1461
        %v1541 = vmul.f32 %v1153, %v1461
        %v1542 = vadd.f32 %v1526, -4.8520303
        %v1543 = vadd.f32 %v1527, -4.8520303
        %v1544 = vadd.f32 %v1528, -4.8520303
        %v1545 = vadd.f32 %v1529, -4.8520303
        %v1546 = vadd.f32 %v1530, -4.8520303
        %v1547 = vadd.f32 %v1531, -4.8520303
        %v1548 = vadd.f32 %v1532, -4.8520303
        %v1549 = vadd.f32 %v1533, -4.8520303
        %v1550 = vadd.f32 %v1534, -4.8520303
        %v1551 = vadd.f32 %v1535, -4.8520303
        %v1552 = vadd.f32 %v1536, -4.8520303
        %v1553 = vadd.f32 %v1537, -4.8520303
        %v1554 = vadd.f32 %v1538, -4.8520303
        %v1555 = vadd.f32 %v1539, -4.8520303
        %v1556 = vadd.f32 %v1540, -4.8520303
        %v1557 = vadd.f32 %v1541, -4.8520303
        %s1558 = ssub.f32 0.0, %s1437
        %v1559 = vstv %s1459
        %v1560 = vmul.f32 %v1454, %v1559
        %v1561 = vadd.f32 %v1478, %v1560
        %v1562 = vadd.f32 %v1479, %v1560
        %v1563 = vadd.f32 %v1480, %v1560
        %v1564 = vadd.f32 %v1481, %v1560
        %v1565 = vadd.f32 %v1482, %v1560
        %v1566 = vadd.f32 %v1483, %v1560
        %v1567 = vadd.f32 %v1484, %v1560
        %v1568 = vadd.f32 %v1485, %v1560
        %v1569 = vadd.f32 %v1486, %v1560
        %v1570 = vadd.f32 %v1487, %v1560
        %v1571 = vadd.f32 %v1488, %v1560
        %v1572 = vadd.f32 %v1489, %v1560
        %v1573 = vadd.f32 %v1490, %v1560
        %v1574 = vadd.f32 %v1491, %v1560
        %v1575 = vadd.f32 %v1492, %v1560
        %v1576 = vadd.f32 %v1493, %v1560
        %1577 = vmax.xlane.f32.xlu0 %v1561
        %v1578 = vpop.xlane.xlu0 %1577
        %1579 = vmax.xlane.f32.xlu0 %v1562
        %v1580 = vpop.xlane.xlu0 %1579
        %1581 = vmax.xlane.f32.xlu0 %v1563
        %v1582 = vpop.xlane.xlu0 %1581
        %1583 = vmax.xlane.f32.xlu0 %v1564
        %v1584 = vpop.xlane.xlu0 %1583
        %1585 = vmax.xlane.f32.xlu0 %v1565
        %v1586 = vpop.xlane.xlu0 %1585
        %1587 = vmax.xlane.f32.xlu0 %v1566
        %v1588 = vpop.xlane.xlu0 %1587
        %1589 = vmax.xlane.f32.xlu0 %v1567
        %v1590 = vpop.xlane.xlu0 %1589
        %1591 = vmax.xlane.f32.xlu0 %v1568
        %v1592 = vpop.xlane.xlu0 %1591
        %1593 = vmax.xlane.f32.xlu0 %v1569
        %v1594 = vpop.xlane.xlu0 %1593
        %1595 = vmax.xlane.f32.xlu0 %v1570
        %v1596 = vpop.xlane.xlu0 %1595
        %1597 = vmax.xlane.f32.xlu0 %v1571
        %v1598 = vpop.xlane.xlu0 %1597
        %1599 = vmax.xlane.f32.xlu0 %v1572
        %v1600 = vpop.xlane.xlu0 %1599
        %1601 = vmax.xlane.f32.xlu0 %v1573
        %v1602 = vpop.xlane.xlu0 %1601
        %1603 = vmax.xlane.f32.xlu0 %v1574
        %v1604 = vpop.xlane.xlu0 %1603
        %1605 = vmax.xlane.f32.xlu0 %v1575
        %v1606 = vpop.xlane.xlu0 %1605
        %1607 = vmax.xlane.f32.xlu0 %v1576
        %v1608 = vpop.xlane.xlu0 %1607
        %v1609 = vsub.f32 %v1561, %v1578
        %v1610 = vsub.f32 %v1562, %v1580
        %v1611 = vsub.f32 %v1563, %v1582
        %v1612 = vsub.f32 %v1564, %v1584
        %v1613 = vsub.f32 %v1565, %v1586
        %v1614 = vsub.f32 %v1566, %v1588
        %v1615 = vsub.f32 %v1567, %v1590
        %v1616 = vsub.f32 %v1568, %v1592
        %v1617 = vsub.f32 %v1569, %v1594
        %v1618 = vsub.f32 %v1570, %v1596
        %v1619 = vsub.f32 %v1571, %v1598
        %v1620 = vsub.f32 %v1572, %v1600
        %v1621 = vsub.f32 %v1573, %v1602
        %v1622 = vsub.f32 %v1574, %v1604
        %v1623 = vsub.f32 %v1575, %v1606
        %v1624 = vsub.f32 %v1576, %v1608
        %v1625 = vmul.f32 %v1609, 1.442695
        %v1626 = vpow.pop %v1625
        %v1627 = vmul.f32 %v1610, 1.442695
        %v1628 = vpow.pop %v1627
        %v1629 = vmul.f32 %v1611, 1.442695
        %v1630 = vpow.pop %v1629
        %v1631 = vmul.f32 %v1612, 1.442695
        %v1632 = vpow.pop %v1631
        %v1633 = vmul.f32 %v1613, 1.442695
        %v1634 = vpow.pop %v1633
        %v1635 = vmul.f32 %v1614, 1.442695
        %v1636 = vpow.pop %v1635
        %v1637 = vmul.f32 %v1615, 1.442695
        %v1638 = vpow.pop %v1637
        %v1639 = vmul.f32 %v1616, 1.442695
        %v1640 = vpow.pop %v1639
        %v1641 = vmul.f32 %v1617, 1.442695
        %v1642 = vpow.pop %v1641
        %v1643 = vmul.f32 %v1618, 1.442695
        %v1644 = vpow.pop %v1643
        %v1645 = vmul.f32 %v1619, 1.442695
        %v1646 = vpow.pop %v1645
        %v1647 = vmul.f32 %v1620, 1.442695
        %v1648 = vpow.pop %v1647
        %v1649 = vmul.f32 %v1621, 1.442695
        %v1650 = vpow.pop %v1649
        %v1651 = vmul.f32 %v1622, 1.442695
        %v1652 = vpow.pop %v1651
        %v1653 = vmul.f32 %v1623, 1.442695
        %v1654 = vpow.pop %v1653
        %v1655 = vmul.f32 %v1624, 1.442695
        %v1656 = vpow.pop %v1655
        %1657 = vmatprep.subr.mxu0 0.0
        %1658 = vmatpush1.msra.mxu0 1.0
        %1659 = vmatprep.subr.mxu0 0.0
        %1660 = vmatpush1.msra.mxu0 1.0
        %1661 = vmatprep.subr.mxu0 0.0
        %1662 = vmatpush1.msra.mxu0 1.0
        %1663 = vmatprep.subr.mxu0 0.0
        %1664 = vmatpush1.msra.mxu0 1.0
        %1665 = vmatprep.subr.mxu0 0.0
        %1666 = vmatpush1.msra.mxu0 1.0
        %1667 = vmatprep.subr.mxu0 0.0
        %1668 = vmatpush1.msra.mxu0 1.0
        %1669 = vmatprep.subr.mxu0 0.0
        %1670 = vmatpush1.msra.mxu0 1.0
        %1671 = vmatprep.subr.mxu0 0.0
        %1672 = vmatpush1.msra.mxu0 1.0
        %1673 = vmatprep.subr.mxu0 0.0
        %1674 = vmatpush1.msra.mxu0 1.0
        %1675 = vmatprep.subr.mxu0 0.0
        %1676 = vmatpush1.msra.mxu0 1.0
        %1677 = vmatprep.subr.mxu0 0.0
        %1678 = vmatpush1.msra.mxu0 1.0
        %1679 = vmatprep.subr.mxu0 0.0
        %1680 = vmatpush1.msra.mxu0 1.0
        %1681 = vmatprep.subr.mxu0 0.0
        %1682 = vmatpush1.msra.mxu0 1.0
        %1683 = vmatprep.subr.mxu0 0.0
        %1684 = vmatpush1.msra.mxu0 1.0
        %1685 = vmatprep.subr.mxu0 0.0
        %1686 = vmatpush1.msra.mxu0 1.0
        %1687 = vmatprep.subr.mxu0 0.0
        %1688 = vmatpush1.msra.mxu0 1.0
        %1689 = vmatprep.subr.mxu0 0.0
        %1690 = vmatpush1.msra.mxu0 0.0
        %1691 = vmatprep.subr.mxu0 0.0
        %1692 = vmatpush1.msra.mxu0 0.0
        %1693 = vmatprep.subr.mxu0 0.0
        %1694 = vmatpush1.msra.mxu0 0.0
        %1695 = vmatprep.subr.mxu0 0.0
        %1696 = vmatpush1.msra.mxu0 0.0
        %1697 = vmatprep.subr.mxu0 0.0
        %1698 = vmatpush1.msra.mxu0 0.0
        %1699 = vmatprep.subr.mxu0 0.0
        %1700 = vmatpush1.msra.mxu0 0.0
        %1701 = vmatprep.subr.mxu0 0.0
        %1702 = vmatpush1.msra.mxu0 0.0
        %1703 = vmatprep.subr.mxu0 0.0
        %1704 = vmatpush1.msra.mxu0 0.0
        %1705 = vmatprep.subr.mxu0 0.0
        %1706 = vmatpush1.msra.mxu0 0.0
        %1707 = vmatprep.subr.mxu0 0.0
        %1708 = vmatpush1.msra.mxu0 0.0
        %1709 = vmatprep.subr.mxu0 0.0
        %1710 = vmatpush1.msra.mxu0 0.0
        %1711 = vmatprep.subr.mxu0 0.0
        %1712 = vmatpush1.msra.mxu0 0.0
        %1713 = vmatprep.subr.mxu0 0.0
        %1714 = vmatpush1.msra.mxu0 0.0
        %1715 = vmatprep.subr.mxu0 0.0
        %1716 = vmatpush1.msra.mxu0 0.0
        %1717 = vmatprep.subr.mxu0 0.0
        %1718 = vmatpush1.msra.mxu0 0.0
        %1719 = vmatprep.subr.mxu0 0.0
        %1720 = vmatpush1.msra.mxu0 0.0
        %1721 = vmatprep.mubr.f32.mxu0 0.0
        %1722 = vmatmul.mubr.f32.gmra.mrb[0].mxu0 %v1626
        %v1723 = vpop.f32.mrb[0].mxu0
        %v1724 = vadd.f32 0.0, %v1723
        %v1725 = vpop.f32.mrb[0].mxu0
        %1726 = vmatprep.mubr.f32.mxu0 0.0
        %1727 = vmatmul.mubr.f32.gmra.mrb[0].mxu0 %v1628
        %v1728 = vpop.f32.mrb[0].mxu0
        %v1729 = vadd.f32 0.0, %v1728
        %v1730 = vpop.f32.mrb[0].mxu0
        %1731 = vmatprep.mubr.f32.mxu0 0.0
        %1732 = vmatmul.mubr.f32.gmra.mrb[0].mxu0 %v1630
        %v1733 = vpop.f32.mrb[0].mxu0
        %v1734 = vadd.f32 0.0, %v1733
        %v1735 = vpop.f32.mrb[0].mxu0
        %1736 = vmatprep.mubr.f32.mxu0 0.0
        %1737 = vmatmul.mubr.f32.gmra.mrb[0].mxu0 %v1632
        %v1738 = vpop.f32.mrb[0].mxu0
        %v1739 = vadd.f32 0.0, %v1738
        %v1740 = vpop.f32.mrb[0].mxu0
        %1741 = vmatprep.mubr.f32.mxu0 0.0
        %1742 = vmatmul.mubr.f32.gmra.mrb[0].mxu0 %v1634
        %v1743 = vpop.f32.mrb[0].mxu0
        %v1744 = vadd.f32 0.0, %v1743
        %v1745 = vpop.f32.mrb[0].mxu0
        %1746 = vmatprep.mubr.f32.mxu0 0.0
        %1747 = vmatmul.mubr.f32.gmra.mrb[0].mxu0 %v1636
        %v1748 = vpop.f32.mrb[0].mxu0
        %v1749 = vadd.f32 0.0, %v1748
        %v1750 = vpop.f32.mrb[0].mxu0
        %1751 = vmatprep.mubr.f32.mxu0 0.0
        %1752 = vmatmul.mubr.f32.gmra.mrb[0].mxu0 %v1638
        %v1753 = vpop.f32.mrb[0].mxu0
        %v1754 = vadd.f32 0.0, %v1753
        %v1755 = vpop.f32.mrb[0].mxu0
        %1756 = vmatprep.mubr.f32.mxu0 0.0
        %1757 = vmatmul.mubr.f32.gmra.mrb[0].mxu0 %v1640
        %v1758 = vpop.f32.mrb[0].mxu0
        %v1759 = vadd.f32 0.0, %v1758
        %v1760 = vpop.f32.mrb[0].mxu0
        %1761 = vmatprep.mubr.f32.mxu0 0.0
        %1762 = vmatmul.mubr.f32.gmra.mrb[0].mxu0 %v1642
        %v1763 = vpop.f32.mrb[0].mxu0
        %v1764 = vadd.f32 0.0, %v1763
        %v1765 = vpop.f32.mrb[0].mxu0
        %1766 = vmatprep.mubr.f32.mxu0 0.0
        %1767 = vmatmul.mubr.f32.gmra.mrb[0].mxu0 %v1644
        %v1768 = vpop.f32.mrb[0].mxu0
        %v1769 = vadd.f32 0.0, %v1768
        %v1770 = vpop.f32.mrb[0].mxu0
        %1771 = vmatprep.mubr.f32.mxu0 0.0
        %1772 = vmatmul.mubr.f32.gmra.mrb[0].mxu0 %v1646
        %v1773 = vpop.f32.mrb[0].mxu0
        %v1774 = vadd.f32 0.0, %v1773
        %v1775 = vpop.f32.mrb[0].mxu0
        %1776 = vmatprep.mubr.f32.mxu0 0.0
        %1777 = vmatmul.mubr.f32.gmra.mrb[0].mxu0 %v1648
        %v1778 = vpop.f32.mrb[0].mxu0
        %v1779 = vadd.f32 0.0, %v1778
        %v1780 = vpop.f32.mrb[0].mxu0
        %1781 = vmatprep.mubr.f32.mxu0 0.0
        %1782 = vmatmul.mubr.f32.gmra.mrb[0].mxu0 %v1650
        %v1783 = vpop.f32.mrb[0].mxu0
        %v1784 = vadd.f32 0.0, %v1783
        %v1785 = vpop.f32.mrb[0].mxu0
        %1786 = vmatprep.mubr.f32.mxu0 0.0
        %1787 = vmatmul.mubr.f32.gmra.mrb[0].mxu0 %v1652
        %v1788 = vpop.f32.mrb[0].mxu0
        %v1789 = vadd.f32 0.0, %v1788
        %v1790 = vpop.f32.mrb[0].mxu0
        %1791 = vmatprep.mubr.f32.mxu0 0.0
        %1792 = vmatmul.mubr.f32.gmra.mrb[0].mxu0 %v1654
        %v1793 = vpop.f32.mrb[0].mxu0
        %v1794 = vadd.f32 0.0, %v1793
        %v1795 = vpop.f32.mrb[0].mxu0
        %1796 = vmatprep.mubr.f32.mxu0 0.0
        %1797 = vmatmul.mubr.f32.gmra.mrb[0].mxu0 %v1656
        %v1798 = vpop.f32.mrb[0].mxu0
        %v1799 = vadd.f32 0.0, %v1798
        %v1800 = vpop.f32.mrb[0].mxu0
        %1801 = vdwg.mxu0
        %v1802 = vlog2.pop %v1724
        %v1803 = vmul.f32 %v1802, 0.6931472
        %v1804 = vlog2.pop %v1729
        %v1805 = vmul.f32 %v1804, 0.6931472
        %v1806 = vlog2.pop %v1734
        %v1807 = vmul.f32 %v1806, 0.6931472
        %v1808 = vlog2.pop %v1739
        %v1809 = vmul.f32 %v1808, 0.6931472
        %v1810 = vlog2.pop %v1744
        %v1811 = vmul.f32 %v1810, 0.6931472
        %v1812 = vlog2.pop %v1749
        %v1813 = vmul.f32 %v1812, 0.6931472
        %v1814 = vlog2.pop %v1754
        %v1815 = vmul.f32 %v1814, 0.6931472
        %v1816 = vlog2.pop %v1759
        %v1817 = vmul.f32 %v1816, 0.6931472
        %v1818 = vlog2.pop %v1764
        %v1819 = vmul.f32 %v1818, 0.6931472
        %v1820 = vlog2.pop %v1769
        %v1821 = vmul.f32 %v1820, 0.6931472
        %v1822 = vlog2.pop %v1774
        %v1823 = vmul.f32 %v1822, 0.6931472
        %v1824 = vlog2.pop %v1779
        %v1825 = vmul.f32 %v1824, 0.6931472
        %v1826 = vlog2.pop %v1784
        %v1827 = vmul.f32 %v1826, 0.6931472
        %v1828 = vlog2.pop %v1789
        %v1829 = vmul.f32 %v1828, 0.6931472
        %v1830 = vlog2.pop %v1794
        %v1831 = vmul.f32 %v1830, 0.6931472
        %v1832 = vlog2.pop %v1799
        %v1833 = vmul.f32 %v1832, 0.6931472
        %v1834 = vadd.f32 %v1578, %v1803
        %v1835 = vadd.f32 %v1580, %v1805
        %v1836 = vadd.f32 %v1582, %v1807
        %v1837 = vadd.f32 %v1584, %v1809
        %v1838 = vadd.f32 %v1586, %v1811
        %v1839 = vadd.f32 %v1588, %v1813
        %v1840 = vadd.f32 %v1590, %v1815
        %v1841 = vadd.f32 %v1592, %v1817
        %v1842 = vadd.f32 %v1594, %v1819
        %v1843 = vadd.f32 %v1596, %v1821
        %v1844 = vadd.f32 %v1598, %v1823
        %v1845 = vadd.f32 %v1600, %v1825
        %v1846 = vadd.f32 %v1602, %v1827
        %v1847 = vadd.f32 %v1604, %v1829
        %v1848 = vadd.f32 %v1606, %v1831
        %v1849 = vadd.f32 %v1608, %v1833
        %v1850 = vstv %s1558
        %v1851 = vmul.f32 %v1850, %v1834
        %v1852 = vmul.f32 %v1850, %v1835
        %v1853 = vmul.f32 %v1850, %v1836
        %v1854 = vmul.f32 %v1850, %v1837
        %v1855 = vmul.f32 %v1850, %v1838
        %v1856 = vmul.f32 %v1850, %v1839
        %v1857 = vmul.f32 %v1850, %v1840
        %v1858 = vmul.f32 %v1850, %v1841
        %v1859 = vmul.f32 %v1850, %v1842
        %v1860 = vmul.f32 %v1850, %v1843
        %v1861 = vmul.f32 %v1850, %v1844
        %v1862 = vmul.f32 %v1850, %v1845
        %v1863 = vmul.f32 %v1850, %v1846
        %v1864 = vmul.f32 %v1850, %v1847
        %v1865 = vmul.f32 %v1850, %v1848
        %v1866 = vmul.f32 %v1850, %v1849
        %v1867 = vmul.f32 %v1438, %v1559
        %v1868 = vmul.f32 %v1439, %v1559
        %v1869 = vmul.f32 %v1440, %v1559
        %v1870 = vmul.f32 %v1441, %v1559
        %v1871 = vmul.f32 %v1442, %v1559
        %v1872 = vmul.f32 %v1443, %v1559
        %v1873 = vmul.f32 %v1444, %v1559
        %v1874 = vmul.f32 %v1445, %v1559
        %v1875 = vmul.f32 %v1446, %v1559
        %v1876 = vmul.f32 %v1447, %v1559
        %v1877 = vmul.f32 %v1448, %v1559
        %v1878 = vmul.f32 %v1449, %v1559
        %v1879 = vmul.f32 %v1450, %v1559
        %v1880 = vmul.f32 %v1451, %v1559
        %v1881 = vmul.f32 %v1452, %v1559
        %v1882 = vmul.f32 %v1453, %v1559
        %1884 = vset.pattern.permute.xlu0 0
        %1885 = vperm.xlu0 %1884, %v1867
        %v1886 = vpop.permute.xlu0 %1885
        %1889 = vset.pattern.permute.xlu0 0
        %1890 = vperm.xlu0 %1889, %v1868
        %v1891 = vpop.permute.xlu0 %1890
        %1894 = vset.pattern.permute.xlu0 0
        %1895 = vperm.xlu0 %1894, %v1869
        %v1896 = vpop.permute.xlu0 %1895
        %1899 = vset.pattern.permute.xlu0 0
        %1900 = vperm.xlu0 %1899, %v1870
        %v1901 = vpop.permute.xlu0 %1900
        %1904 = vset.pattern.permute.xlu0 0
        %1905 = vperm.xlu0 %1904, %v1871
        %v1906 = vpop.permute.xlu0 %1905
        %1909 = vset.pattern.permute.xlu0 0
        %1910 = vperm.xlu0 %1909, %v1872
        %v1911 = vpop.permute.xlu0 %1910
        %1914 = vset.pattern.permute.xlu0 0
        %1915 = vperm.xlu0 %1914, %v1873
        %v1916 = vpop.permute.xlu0 %1915
        %1919 = vset.pattern.permute.xlu0 0
        %1920 = vperm.xlu0 %1919, %v1874
        %v1921 = vpop.permute.xlu0 %1920
        %1924 = vset.pattern.permute.xlu0 0
        %1925 = vperm.xlu0 %1924, %v1875
        %v1926 = vpop.permute.xlu0 %1925
        %1929 = vset.pattern.permute.xlu0 0
        %1930 = vperm.xlu0 %1929, %v1876
        %v1931 = vpop.permute.xlu0 %1930
        %1934 = vset.pattern.permute.xlu0 0
        %1935 = vperm.xlu0 %1934, %v1877
        %v1936 = vpop.permute.xlu0 %1935
        %1939 = vset.pattern.permute.xlu0 0
        %1940 = vperm.xlu0 %1939, %v1878
        %v1941 = vpop.permute.xlu0 %1940
        %1944 = vset.pattern.permute.xlu0 0
        %1945 = vperm.xlu0 %1944, %v1879
        %v1946 = vpop.permute.xlu0 %1945
        %1949 = vset.pattern.permute.xlu0 0
        %1950 = vperm.xlu0 %1949, %v1880
        %v1951 = vpop.permute.xlu0 %1950
        %1954 = vset.pattern.permute.xlu0 0
        %1955 = vperm.xlu0 %1954, %v1881
        %v1956 = vpop.permute.xlu0 %1955
        %1959 = vset.pattern.permute.xlu0 0
        %1960 = vperm.xlu0 %1959, %v1882
        %v1961 = vpop.permute.xlu0 %1960
        %v1963 = vadd.f32 %v1478, %v1886
        %v1964 = vadd.f32 %v1479, %v1891
        %v1965 = vadd.f32 %v1480, %v1896
        %v1966 = vadd.f32 %v1481, %v1901
        %v1967 = vadd.f32 %v1482, %v1906
        %v1968 = vadd.f32 %v1483, %v1911
        %v1969 = vadd.f32 %v1484, %v1916
        %v1970 = vadd.f32 %v1485, %v1921
        %v1971 = vadd.f32 %v1486, %v1926
        %v1972 = vadd.f32 %v1487, %v1931
        %v1973 = vadd.f32 %v1488, %v1936
        %v1974 = vadd.f32 %v1489, %v1941
        %v1975 = vadd.f32 %v1490, %v1946
        %v1976 = vadd.f32 %v1491, %v1951
        %v1977 = vadd.f32 %v1492, %v1956
        %v1978 = vadd.f32 %v1493, %v1961
        %v1979 = vmax.f32 %v1963, %v1967
        %v1980 = vmax.f32 %v1964, %v1968
        %v1981 = vmax.f32 %v1965, %v1969
        %v1982 = vmax.f32 %v1966, %v1970
        %v1983 = vmax.f32 %v1979, %v1971
        %v1984 = vmax.f32 %v1980, %v1972
        %v1985 = vmax.f32 %v1981, %v1973
        %v1986 = vmax.f32 %v1982, %v1974
        %v1987 = vmax.f32 %v1983, %v1975
        %v1988 = vmax.f32 %v1984, %v1976
        %v1989 = vmax.f32 %v1985, %v1977
        %v1990 = vmax.f32 %v1986, %v1978
        %v1991 = vmax.f32 %v1987, %v1988
        %v1992 = vmax.f32 %v1989, %v1990
        %v1993 = vmax.f32 %v1991, %v1992
        %v1994 = vrot.slane %v1993, 4
        %v1995 = vmax.f32 %v1993, %v1994
        %v1996 = vrot.slane %v1995, 2
        %v1997 = vmax.f32 %v1995, %v1996
        %v1998 = vrot.slane %v1997, 1
        %v1999 = vmax.f32 %v1997, %v1998
        %v2000 = vsub.f32 %v1963, %v1999
        %v2001 = vsub.f32 %v1964, %v1999
        %v2002 = vsub.f32 %v1965, %v1999
        %v2003 = vsub.f32 %v1966, %v1999
        %v2004 = vsub.f32 %v1967, %v1999
        %v2005 = vsub.f32 %v1968, %v1999
        %v2006 = vsub.f32 %v1969, %v1999
        %v2007 = vsub.f32 %v1970, %v1999
        %v2008 = vsub.f32 %v1971, %v1999
        %v2009 = vsub.f32 %v1972, %v1999
        %v2010 = vsub.f32 %v1973, %v1999
        %v2011 = vsub.f32 %v1974, %v1999
        %v2012 = vsub.f32 %v1975, %v1999
        %v2013 = vsub.f32 %v1976, %v1999
        %v2014 = vsub.f32 %v1977, %v1999
        %v2015 = vsub.f32 %v1978, %v1999
        %v2016 = vmul.f32 %v2000, 1.442695
        %v2017 = vpow.pop %v2016
        %v2018 = vmul.f32 %v2001, 1.442695
        %v2019 = vpow.pop %v2018
        %v2020 = vmul.f32 %v2002, 1.442695
        %v2021 = vpow.pop %v2020
        %v2022 = vmul.f32 %v2003, 1.442695
        %v2023 = vpow.pop %v2022
        %v2024 = vmul.f32 %v2004, 1.442695
        %v2025 = vpow.pop %v2024
        %v2026 = vmul.f32 %v2005, 1.442695
        %v2027 = vpow.pop %v2026
        %v2028 = vmul.f32 %v2006, 1.442695
        %v2029 = vpow.pop %v2028
        %v2030 = vmul.f32 %v2007, 1.442695
        %v2031 = vpow.pop %v2030
        %v2032 = vmul.f32 %v2008, 1.442695
        %v2033 = vpow.pop %v2032
        %v2034 = vmul.f32 %v2009, 1.442695
        %v2035 = vpow.pop %v2034
        %v2036 = vmul.f32 %v2010, 1.442695
        %v2037 = vpow.pop %v2036
        %v2038 = vmul.f32 %v2011, 1.442695
        %v2039 = vpow.pop %v2038
        %v2040 = vmul.f32 %v2012, 1.442695
        %v2041 = vpow.pop %v2040
        %v2042 = vmul.f32 %v2013, 1.442695
        %v2043 = vpow.pop %v2042
        %v2044 = vmul.f32 %v2014, 1.442695
        %v2045 = vpow.pop %v2044
        %v2046 = vmul.f32 %v2015, 1.442695
        %v2047 = vpow.pop %v2046
        %v2048 = vadd.f32 %v2017, %v2019
        %v2049 = vadd.f32 %v2048, %v2021
        %v2050 = vadd.f32 %v2049, %v2023
        %v2051 = vadd.f32 %v2050, %v2025
        %v2052 = vadd.f32 %v2051, %v2027
        %v2053 = vadd.f32 %v2052, %v2029
        %v2054 = vadd.f32 %v2053, %v2031
        %v2055 = vadd.f32 %v2054, %v2033
        %v2056 = vadd.f32 %v2055, %v2035
        %v2057 = vadd.f32 %v2056, %v2037
        %v2058 = vadd.f32 %v2057, %v2039
        %v2059 = vadd.f32 %v2058, %v2041
        %v2060 = vadd.f32 %v2059, %v2043
        %v2061 = vadd.f32 %v2060, %v2045
        %v2062 = vadd.f32 %v2061, %v2047
        %v2063 = vrot.slane %v2062, 4
        %v2064 = vadd.f32 %v2062, %v2063
        %v2065 = vrot.slane %v2064, 2
        %v2066 = vadd.f32 %v2064, %v2065
        %v2067 = vrot.slane %v2066, 1
        %v2068 = vadd.f32 %v2066, %v2067
        %v2069 = vlog2.pop %v2068
        %v2070 = vmul.f32 %v2069, 0.6931472
        %v2071 = vadd.f32 %v1999, %v2070
        %v2072 = vmul.f32 %v1850, %v2071
        %v2073 = vadd.f32 %v1438, %v1851
        %v2074 = vadd.f32 %v1439, %v1852
        %v2075 = vadd.f32 %v1440, %v1853
        %v2076 = vadd.f32 %v1441, %v1854
        %v2077 = vadd.f32 %v1442, %v1855
        %v2078 = vadd.f32 %v1443, %v1856
        %v2079 = vadd.f32 %v1444, %v1857
        %v2080 = vadd.f32 %v1445, %v1858
        %v2081 = vadd.f32 %v1446, %v1859
        %v2082 = vadd.f32 %v1447, %v1860
        %v2083 = vadd.f32 %v1448, %v1861
        %v2084 = vadd.f32 %v1449, %v1862
        %v2085 = vadd.f32 %v1450, %v1863
        %v2086 = vadd.f32 %v1451, %v1864
        %v2087 = vadd.f32 %v1452, %v1865
        %v2088 = vadd.f32 %v1453, %v1866
        %v2089 = vmul.f32 %v2073, 0.5
        %v2090 = vmul.f32 %v2074, 0.5
        %v2091 = vmul.f32 %v2075, 0.5
        %v2092 = vmul.f32 %v2076, 0.5
        %v2093 = vmul.f32 %v2077, 0.5
        %v2094 = vmul.f32 %v2078, 0.5
        %v2095 = vmul.f32 %v2079, 0.5
        %v2096 = vmul.f32 %v2080, 0.5
        %v2097 = vmul.f32 %v2081, 0.5
        %v2098 = vmul.f32 %v2082, 0.5
        %v2099 = vmul.f32 %v2083, 0.5
        %v2100 = vmul.f32 %v2084, 0.5
        %v2101 = vmul.f32 %v2085, 0.5
        %v2102 = vmul.f32 %v2086, 0.5
        %v2103 = vmul.f32 %v2087, 0.5
        %v2104 = vmul.f32 %v2088, 0.5
        %v2105 = vadd.f32 %v1454, %v2072
        %v2106 = vmul.f32 %v2105, 0.5
        %v2107 = vmul.f32 %v1455, %v1559
        %v2108 = vadd.f32 %v1510, %v2107
        %v2109 = vadd.f32 %v1511, %v2107
        %v2110 = vadd.f32 %v1512, %v2107
        %v2111 = vadd.f32 %v1513, %v2107
        %v2112 = vadd.f32 %v1514, %v2107
        %v2113 = vadd.f32 %v1515, %v2107
        %v2114 = vadd.f32 %v1516, %v2107
        %v2115 = vadd.f32 %v1517, %v2107
        %v2116 = vadd.f32 %v1518, %v2107
        %v2117 = vadd.f32 %v1519, %v2107
        %v2118 = vadd.f32 %v1520, %v2107
        %v2119 = vadd.f32 %v1521, %v2107
        %v2120 = vadd.f32 %v1522, %v2107
        %v2121 = vadd.f32 %v1523, %v2107
        %v2122 = vadd.f32 %v1524, %v2107
        %v2123 = vadd.f32 %v1525, %v2107
        %2124 = vmax.xlane.f32.xlu0 %v2108
        %v2125 = vpop.xlane.xlu0 %2124
        %2126 = vmax.xlane.f32.xlu0 %v2109
        %v2127 = vpop.xlane.xlu0 %2126
        %2128 = vmax.xlane.f32.xlu0 %v2110
        %v2129 = vpop.xlane.xlu0 %2128
        %2130 = vmax.xlane.f32.xlu0 %v2111
        %v2131 = vpop.xlane.xlu0 %2130
        %2132 = vmax.xlane.f32.xlu0 %v2112
        %v2133 = vpop.xlane.xlu0 %2132
        %2134 = vmax.xlane.f32.xlu0 %v2113
        %v2135 = vpop.xlane.xlu0 %2134
        %2136 = vmax.xlane.f32.xlu0 %v2114
        %v2137 = vpop.xlane.xlu0 %2136
        %2138 = vmax.xlane.f32.xlu0 %v2115
        %v2139 = vpop.xlane.xlu0 %2138
        %2140 = vmax.xlane.f32.xlu0 %v2116
        %v2141 = vpop.xlane.xlu0 %2140
        %2142 = vmax.xlane.f32.xlu0 %v2117
        %v2143 = vpop.xlane.xlu0 %2142
        %2144 = vmax.xlane.f32.xlu0 %v2118
        %v2145 = vpop.xlane.xlu0 %2144
        %2146 = vmax.xlane.f32.xlu0 %v2119
        %v2147 = vpop.xlane.xlu0 %2146
        %2148 = vmax.xlane.f32.xlu0 %v2120
        %v2149 = vpop.xlane.xlu0 %2148
        %2150 = vmax.xlane.f32.xlu0 %v2121
        %v2151 = vpop.xlane.xlu0 %2150
        %2152 = vmax.xlane.f32.xlu0 %v2122
        %v2153 = vpop.xlane.xlu0 %2152
        %2154 = vmax.xlane.f32.xlu0 %v2123
        %v2155 = vpop.xlane.xlu0 %2154
        %v2156 = vsub.f32 %v2108, %v2125
        %v2157 = vsub.f32 %v2109, %v2127
        %v2158 = vsub.f32 %v2110, %v2129
        %v2159 = vsub.f32 %v2111, %v2131
        %v2160 = vsub.f32 %v2112, %v2133
        %v2161 = vsub.f32 %v2113, %v2135
        %v2162 = vsub.f32 %v2114, %v2137
        %v2163 = vsub.f32 %v2115, %v2139
        %v2164 = vsub.f32 %v2116, %v2141
        %v2165 = vsub.f32 %v2117, %v2143
        %v2166 = vsub.f32 %v2118, %v2145
        %v2167 = vsub.f32 %v2119, %v2147
        %v2168 = vsub.f32 %v2120, %v2149
        %v2169 = vsub.f32 %v2121, %v2151
        %v2170 = vsub.f32 %v2122, %v2153
        %v2171 = vsub.f32 %v2123, %v2155
        %v2172 = vmul.f32 %v2156, 1.442695
        %v2173 = vpow.pop %v2172
        %v2174 = vmul.f32 %v2157, 1.442695
        %v2175 = vpow.pop %v2174
        %v2176 = vmul.f32 %v2158, 1.442695
        %v2177 = vpow.pop %v2176
        %v2178 = vmul.f32 %v2159, 1.442695
        %v2179 = vpow.pop %v2178
        %v2180 = vmul.f32 %v2160, 1.442695
        %v2181 = vpow.pop %v2180
        %v2182 = vmul.f32 %v2161, 1.442695
        %v2183 = vpow.pop %v2182
        %v2184 = vmul.f32 %v2162, 1.442695
        %v2185 = vpow.pop %v2184
        %v2186 = vmul.f32 %v2163, 1.442695
        %v2187 = vpow.pop %v2186
        %v2188 = vmul.f32 %v2164, 1.442695
        %v2189 = vpow.pop %v2188
        %v2190 = vmul.f32 %v2165, 1.442695
        %v2191 = vpow.pop %v2190
        %v2192 = vmul.f32 %v2166, 1.442695
        %v2193 = vpow.pop %v2192
        %v2194 = vmul.f32 %v2167, 1.442695
        %v2195 = vpow.pop %v2194
        %v2196 = vmul.f32 %v2168, 1.442695
        %v2197 = vpow.pop %v2196
        %v2198 = vmul.f32 %v2169, 1.442695
        %v2199 = vpow.pop %v2198
        %v2200 = vmul.f32 %v2170, 1.442695
        %v2201 = vpow.pop %v2200
        %v2202 = vmul.f32 %v2171, 1.442695
        %v2203 = vpow.pop %v2202
        %2204 = vmatprep.subr.mxu0 0.0
        %2205 = vmatpush1.msra.mxu0 1.0
        %2206 = vmatprep.subr.mxu0 0.0
        %2207 = vmatpush1.msra.mxu0 1.0
        %2208 = vmatprep.subr.mxu0 0.0
        %2209 = vmatpush1.msra.mxu0 1.0
        %2210 = vmatprep.subr.mxu0 0.0
        %2211 = vmatpush1.msra.mxu0 1.0
        %2212 = vmatprep.subr.mxu0 0.0
        %2213 = vmatpush1.msra.mxu0 1.0
        %2214 = vmatprep.subr.mxu0 0.0
        %2215 = vmatpush1.msra.mxu0 1.0
        %2216 = vmatprep.subr.mxu0 0.0
        %2217 = vmatpush1.msra.mxu0 1.0
        %2218 = vmatprep.subr.mxu0 0.0
        %2219 = vmatpush1.msra.mxu0 1.0
        %2220 = vmatprep.subr.mxu0 0.0
        %2221 = vmatpush1.msra.mxu0 1.0
        %2222 = vmatprep.subr.mxu0 0.0
        %2223 = vmatpush1.msra.mxu0 1.0
        %2224 = vmatprep.subr.mxu0 0.0
        %2225 = vmatpush1.msra.mxu0 1.0
        %2226 = vmatprep.subr.mxu0 0.0
        %2227 = vmatpush1.msra.mxu0 1.0
        %2228 = vmatprep.subr.mxu0 0.0
        %2229 = vmatpush1.msra.mxu0 1.0
        %2230 = vmatprep.subr.mxu0 0.0
        %2231 = vmatpush1.msra.mxu0 1.0
        %2232 = vmatprep.subr.mxu0 0.0
        %2233 = vmatpush1.msra.mxu0 1.0
        %2234 = vmatprep.subr.mxu0 0.0
        %2235 = vmatpush1.msra.mxu0 1.0
        %2236 = vmatprep.subr.mxu0 0.0
        %2237 = vmatpush1.msra.mxu0 0.0
        %2238 = vmatprep.subr.mxu0 0.0
        %2239 = vmatpush1.msra.mxu0 0.0
        %2240 = vmatprep.subr.mxu0 0.0
        %2241 = vmatpush1.msra.mxu0 0.0
        %2242 = vmatprep.subr.mxu0 0.0
        %2243 = vmatpush1.msra.mxu0 0.0
        %2244 = vmatprep.subr.mxu0 0.0
        %2245 = vmatpush1.msra.mxu0 0.0
        %2246 = vmatprep.subr.mxu0 0.0
        %2247 = vmatpush1.msra.mxu0 0.0
        %2248 = vmatprep.subr.mxu0 0.0
        %2249 = vmatpush1.msra.mxu0 0.0
        %2250 = vmatprep.subr.mxu0 0.0
        %2251 = vmatpush1.msra.mxu0 0.0
        %2252 = vmatprep.subr.mxu0 0.0
        %2253 = vmatpush1.msra.mxu0 0.0
        %2254 = vmatprep.subr.mxu0 0.0
        %2255 = vmatpush1.msra.mxu0 0.0
        %2256 = vmatprep.subr.mxu0 0.0
        %2257 = vmatpush1.msra.mxu0 0.0
        %2258 = vmatprep.subr.mxu0 0.0
        %2259 = vmatpush1.msra.mxu0 0.0
        %2260 = vmatprep.subr.mxu0 0.0
        %2261 = vmatpush1.msra.mxu0 0.0
        %2262 = vmatprep.subr.mxu0 0.0
        %2263 = vmatpush1.msra.mxu0 0.0
        %2264 = vmatprep.subr.mxu0 0.0
        %2265 = vmatpush1.msra.mxu0 0.0
        %2266 = vmatprep.subr.mxu0 0.0
        %2267 = vmatpush1.msra.mxu0 0.0
        %2268 = vmatprep.mubr.f32.mxu0 0.0
        %2269 = vmatmul.mubr.f32.gmra.mrb[0].mxu0 %v2173
        %v2270 = vpop.f32.mrb[0].mxu0
        %v2271 = vadd.f32 0.0, %v2270
        %v2272 = vpop.f32.mrb[0].mxu0
        %2273 = vmatprep.mubr.f32.mxu0 0.0
        %2274 = vmatmul.mubr.f32.gmra.mrb[0].mxu0 %v2175
        %v2275 = vpop.f32.mrb[0].mxu0
        %v2276 = vadd.f32 0.0, %v2275
        %v2277 = vpop.f32.mrb[0].mxu0
        %2278 = vmatprep.mubr.f32.mxu0 0.0
        %2279 = vmatmul.mubr.f32.gmra.mrb[0].mxu0 %v2177
        %v2280 = vpop.f32.mrb[0].mxu0
        %v2281 = vadd.f32 0.0, %v2280
        %v2282 = vpop.f32.mrb[0].mxu0
        %2283 = vmatprep.mubr.f32.mxu0 0.0
        %2284 = vmatmul.mubr.f32.gmra.mrb[0].mxu0 %v2179
        %v2285 = vpop.f32.mrb[0].mxu0
        %v2286 = vadd.f32 0.0, %v2285
        %v2287 = vpop.f32.mrb[0].mxu0
        %2288 = vmatprep.mubr.f32.mxu0 0.0
        %2289 = vmatmul.mubr.f32.gmra.mrb[0].mxu0 %v2181
        %v2290 = vpop.f32.mrb[0].mxu0
        %v2291 = vadd.f32 0.0, %v2290
        %v2292 = vpop.f32.mrb[0].mxu0
        %2293 = vmatprep.mubr.f32.mxu0 0.0
        %2294 = vmatmul.mubr.f32.gmra.mrb[0].mxu0 %v2183
        %v2295 = vpop.f32.mrb[0].mxu0
        %v2296 = vadd.f32 0.0, %v2295
        %v2297 = vpop.f32.mrb[0].mxu0
        %2298 = vmatprep.mubr.f32.mxu0 0.0
        %2299 = vmatmul.mubr.f32.gmra.mrb[0].mxu0 %v2185
        %v2300 = vpop.f32.mrb[0].mxu0
        %v2301 = vadd.f32 0.0, %v2300
        %v2302 = vpop.f32.mrb[0].mxu0
        %2303 = vmatprep.mubr.f32.mxu0 0.0
        %2304 = vmatmul.mubr.f32.gmra.mrb[0].mxu0 %v2187
        %v2305 = vpop.f32.mrb[0].mxu0
        %v2306 = vadd.f32 0.0, %v2305
        %v2307 = vpop.f32.mrb[0].mxu0
        %2308 = vmatprep.mubr.f32.mxu0 0.0
        %2309 = vmatmul.mubr.f32.gmra.mrb[0].mxu0 %v2189
        %v2310 = vpop.f32.mrb[0].mxu0
        %v2311 = vadd.f32 0.0, %v2310
        %v2312 = vpop.f32.mrb[0].mxu0
        %2313 = vmatprep.mubr.f32.mxu0 0.0
        %2314 = vmatmul.mubr.f32.gmra.mrb[0].mxu0 %v2191
        %v2315 = vpop.f32.mrb[0].mxu0
        %v2316 = vadd.f32 0.0, %v2315
        %v2317 = vpop.f32.mrb[0].mxu0
        %2318 = vmatprep.mubr.f32.mxu0 0.0
        %2319 = vmatmul.mubr.f32.gmra.mrb[0].mxu0 %v2193
        %v2320 = vpop.f32.mrb[0].mxu0
        %v2321 = vadd.f32 0.0, %v2320
        %v2322 = vpop.f32.mrb[0].mxu0
        %2323 = vmatprep.mubr.f32.mxu0 0.0
        %2324 = vmatmul.mubr.f32.gmra.mrb[0].mxu0 %v2195
        %v2325 = vpop.f32.mrb[0].mxu0
        %v2326 = vadd.f32 0.0, %v2325
        %v2327 = vpop.f32.mrb[0].mxu0
        %2328 = vmatprep.mubr.f32.mxu0 0.0
        %2329 = vmatmul.mubr.f32.gmra.mrb[0].mxu0 %v2197
        %v2330 = vpop.f32.mrb[0].mxu0
        %v2331 = vadd.f32 0.0, %v2330
        %v2332 = vpop.f32.mrb[0].mxu0
        %2333 = vmatprep.mubr.f32.mxu0 0.0
        %2334 = vmatmul.mubr.f32.gmra.mrb[0].mxu0 %v2199
        %v2335 = vpop.f32.mrb[0].mxu0
        %v2336 = vadd.f32 0.0, %v2335
        %v2337 = vpop.f32.mrb[0].mxu0
        %2338 = vmatprep.mubr.f32.mxu0 0.0
        %2339 = vmatmul.mubr.f32.gmra.mrb[0].mxu0 %v2201
        %v2340 = vpop.f32.mrb[0].mxu0
        %v2341 = vadd.f32 0.0, %v2340
        %v2342 = vpop.f32.mrb[0].mxu0
        %2343 = vmatprep.mubr.f32.mxu0 0.0
        %2344 = vmatmul.mubr.f32.gmra.mrb[0].mxu0 %v2203
        %v2345 = vpop.f32.mrb[0].mxu0
        %v2346 = vadd.f32 0.0, %v2345
        %v2347 = vpop.f32.mrb[0].mxu0
        %2348 = vdwg.mxu0
        %v2349 = vlog2.pop %v2271
        %v2350 = vmul.f32 %v2349, 0.6931472
        %v2351 = vlog2.pop %v2276
        %v2352 = vmul.f32 %v2351, 0.6931472
        %v2353 = vlog2.pop %v2281
        %v2354 = vmul.f32 %v2353, 0.6931472
        %v2355 = vlog2.pop %v2286
        %v2356 = vmul.f32 %v2355, 0.6931472
        %v2357 = vlog2.pop %v2291
        %v2358 = vmul.f32 %v2357, 0.6931472
        %v2359 = vlog2.pop %v2296
        %v2360 = vmul.f32 %v2359, 0.6931472
        %v2361 = vlog2.pop %v2301
        %v2362 = vmul.f32 %v2361, 0.6931472
        %v2363 = vlog2.pop %v2306
        %v2364 = vmul.f32 %v2363, 0.6931472
        %v2365 = vlog2.pop %v2311
        %v2366 = vmul.f32 %v2365, 0.6931472
        %v2367 = vlog2.pop %v2316
        %v2368 = vmul.f32 %v2367, 0.6931472
        %v2369 = vlog2.pop %v2321
        %v2370 = vmul.f32 %v2369, 0.6931472
        %v2371 = vlog2.pop %v2326
        %v2372 = vmul.f32 %v2371, 0.6931472
        %v2373 = vlog2.pop %v2331
        %v2374 = vmul.f32 %v2373, 0.6931472
        %v2375 = vlog2.pop %v2336
        %v2376 = vmul.f32 %v2375, 0.6931472
        %v2377 = vlog2.pop %v2341
        %v2378 = vmul.f32 %v2377, 0.6931472
        %v2379 = vlog2.pop %v2346
        %v2380 = vmul.f32 %v2379, 0.6931472
        %v2381 = vadd.f32 %v2125, %v2350
        %v2382 = vadd.f32 %v2127, %v2352
        %v2383 = vadd.f32 %v2129, %v2354
        %v2384 = vadd.f32 %v2131, %v2356
        %v2385 = vadd.f32 %v2133, %v2358
        %v2386 = vadd.f32 %v2135, %v2360
        %v2387 = vadd.f32 %v2137, %v2362
        %v2388 = vadd.f32 %v2139, %v2364
        %v2389 = vadd.f32 %v2141, %v2366
        %v2390 = vadd.f32 %v2143, %v2368
        %v2391 = vadd.f32 %v2145, %v2370
        %v2392 = vadd.f32 %v2147, %v2372
        %v2393 = vadd.f32 %v2149, %v2374
        %v2394 = vadd.f32 %v2151, %v2376
        %v2395 = vadd.f32 %v2153, %v2378
        %v2396 = vadd.f32 %v2155, %v2380
        %v2397 = vmul.f32 %v1850, %v2381
        %v2398 = vmul.f32 %v1850, %v2382
        %v2399 = vmul.f32 %v1850, %v2383
        %v2400 = vmul.f32 %v1850, %v2384
        %v2401 = vmul.f32 %v1850, %v2385
        %v2402 = vmul.f32 %v1850, %v2386
        %v2403 = vmul.f32 %v1850, %v2387
        %v2404 = vmul.f32 %v1850, %v2388
        %v2405 = vmul.f32 %v1850, %v2389
        %v2406 = vmul.f32 %v1850, %v2390
        %v2407 = vmul.f32 %v1850, %v2391
        %v2408 = vmul.f32 %v1850, %v2392
        %v2409 = vmul.f32 %v1850, %v2393
        %v2410 = vmul.f32 %v1850, %v2394
        %v2411 = vmul.f32 %v1850, %v2395
        %v2412 = vmul.f32 %v1850, %v2396
        %v2413 = vmul.f32 %v2397, %v1559
        %v2414 = vmul.f32 %v2398, %v1559
        %v2415 = vmul.f32 %v2399, %v1559
        %v2416 = vmul.f32 %v2400, %v1559
        %v2417 = vmul.f32 %v2401, %v1559
        %v2418 = vmul.f32 %v2402, %v1559
        %v2419 = vmul.f32 %v2403, %v1559
        %v2420 = vmul.f32 %v2404, %v1559
        %v2421 = vmul.f32 %v2405, %v1559
        %v2422 = vmul.f32 %v2406, %v1559
        %v2423 = vmul.f32 %v2407, %v1559
        %v2424 = vmul.f32 %v2408, %v1559
        %v2425 = vmul.f32 %v2409, %v1559
        %v2426 = vmul.f32 %v2410, %v1559
        %v2427 = vmul.f32 %v2411, %v1559
        %v2428 = vmul.f32 %v2412, %v1559
        %2430 = vset.pattern.permute.xlu0 0
        %2431 = vperm.xlu0 %2430, %v2413
        %v2432 = vpop.permute.xlu0 %2431
        %2435 = vset.pattern.permute.xlu0 0
        %2436 = vperm.xlu0 %2435, %v2414
        %v2437 = vpop.permute.xlu0 %2436
        %2440 = vset.pattern.permute.xlu0 0
        %2441 = vperm.xlu0 %2440, %v2415
        %v2442 = vpop.permute.xlu0 %2441
        %2445 = vset.pattern.permute.xlu0 0
        %2446 = vperm.xlu0 %2445, %v2416
        %v2447 = vpop.permute.xlu0 %2446
        %2450 = vset.pattern.permute.xlu0 0
        %2451 = vperm.xlu0 %2450, %v2417
        %v2452 = vpop.permute.xlu0 %2451
        %2455 = vset.pattern.permute.xlu0 0
        %2456 = vperm.xlu0 %2455, %v2418
        %v2457 = vpop.permute.xlu0 %2456
        %2460 = vset.pattern.permute.xlu0 0
        %2461 = vperm.xlu0 %2460, %v2419
        %v2462 = vpop.permute.xlu0 %2461
        %2465 = vset.pattern.permute.xlu0 0
        %2466 = vperm.xlu0 %2465, %v2420
        %v2467 = vpop.permute.xlu0 %2466
        %2470 = vset.pattern.permute.xlu0 0
        %2471 = vperm.xlu0 %2470, %v2421
        %v2472 = vpop.permute.xlu0 %2471
        %2475 = vset.pattern.permute.xlu0 0
        %2476 = vperm.xlu0 %2475, %v2422
        %v2477 = vpop.permute.xlu0 %2476
        %2480 = vset.pattern.permute.xlu0 0
        %2481 = vperm.xlu0 %2480, %v2423
        %v2482 = vpop.permute.xlu0 %2481
        %2485 = vset.pattern.permute.xlu0 0
        %2486 = vperm.xlu0 %2485, %v2424
        %v2487 = vpop.permute.xlu0 %2486
        %2490 = vset.pattern.permute.xlu0 0
        %2491 = vperm.xlu0 %2490, %v2425
        %v2492 = vpop.permute.xlu0 %2491
        %2495 = vset.pattern.permute.xlu0 0
        %2496 = vperm.xlu0 %2495, %v2426
        %v2497 = vpop.permute.xlu0 %2496
        %2500 = vset.pattern.permute.xlu0 0
        %2501 = vperm.xlu0 %2500, %v2427
        %v2502 = vpop.permute.xlu0 %2501
        %2505 = vset.pattern.permute.xlu0 0
        %2506 = vperm.xlu0 %2505, %v2428
        %v2507 = vpop.permute.xlu0 %2506
        %v2509 = vadd.f32 %v1510, %v2432
        %v2510 = vadd.f32 %v1511, %v2437
        %v2511 = vadd.f32 %v1512, %v2442
        %v2512 = vadd.f32 %v1513, %v2447
        %v2513 = vadd.f32 %v1514, %v2452
        %v2514 = vadd.f32 %v1515, %v2457
        %v2515 = vadd.f32 %v1516, %v2462
        %v2516 = vadd.f32 %v1517, %v2467
        %v2517 = vadd.f32 %v1518, %v2472
        %v2518 = vadd.f32 %v1519, %v2477
        %v2519 = vadd.f32 %v1520, %v2482
        %v2520 = vadd.f32 %v1521, %v2487
        %v2521 = vadd.f32 %v1522, %v2492
        %v2522 = vadd.f32 %v1523, %v2497
        %v2523 = vadd.f32 %v1524, %v2502
        %v2524 = vadd.f32 %v1525, %v2507
        %v2525 = vmax.f32 %v2509, %v2513
        %v2526 = vmax.f32 %v2510, %v2514
        %v2527 = vmax.f32 %v2511, %v2515
        %v2528 = vmax.f32 %v2512, %v2516
        %v2529 = vmax.f32 %v2525, %v2517
        %v2530 = vmax.f32 %v2526, %v2518
        %v2531 = vmax.f32 %v2527, %v2519
        %v2532 = vmax.f32 %v2528, %v2520
        %v2533 = vmax.f32 %v2529, %v2521
        %v2534 = vmax.f32 %v2530, %v2522
        %v2535 = vmax.f32 %v2531, %v2523
        %v2536 = vmax.f32 %v2532, %v2524
        %v2537 = vmax.f32 %v2533, %v2534
        %v2538 = vmax.f32 %v2535, %v2536
        %v2539 = vmax.f32 %v2537, %v2538
        %v2540 = vrot.slane %v2539, 4
        %v2541 = vmax.f32 %v2539, %v2540
        %v2542 = vrot.slane %v2541, 2
        %v2543 = vmax.f32 %v2541, %v2542
        %v2544 = vrot.slane %v2543, 1
        %v2545 = vmax.f32 %v2543, %v2544
        %v2546 = vsub.f32 %v2509, %v2545
        %v2547 = vsub.f32 %v2510, %v2545
        %v2548 = vsub.f32 %v2511, %v2545
        %v2549 = vsub.f32 %v2512, %v2545
        %v2550 = vsub.f32 %v2513, %v2545
        %v2551 = vsub.f32 %v2514, %v2545
        %v2552 = vsub.f32 %v2515, %v2545
        %v2553 = vsub.f32 %v2516, %v2545
        %v2554 = vsub.f32 %v2517, %v2545
        %v2555 = vsub.f32 %v2518, %v2545
        %v2556 = vsub.f32 %v2519, %v2545
        %v2557 = vsub.f32 %v2520, %v2545
        %v2558 = vsub.f32 %v2521, %v2545
        %v2559 = vsub.f32 %v2522, %v2545
        %v2560 = vsub.f32 %v2523, %v2545
        %v2561 = vsub.f32 %v2524, %v2545
        %v2562 = vmul.f32 %v2546, 1.442695
        %v2563 = vpow.pop %v2562
        %v2564 = vmul.f32 %v2547, 1.442695
        %v2565 = vpow.pop %v2564
        %v2566 = vmul.f32 %v2548, 1.442695
        %v2567 = vpow.pop %v2566
        %v2568 = vmul.f32 %v2549, 1.442695
        %v2569 = vpow.pop %v2568
        %v2570 = vmul.f32 %v2550, 1.442695
        %v2571 = vpow.pop %v2570
        %v2572 = vmul.f32 %v2551, 1.442695
        %v2573 = vpow.pop %v2572
        %v2574 = vmul.f32 %v2552, 1.442695
        %v2575 = vpow.pop %v2574
        %v2576 = vmul.f32 %v2553, 1.442695
        %v2577 = vpow.pop %v2576
        %v2578 = vmul.f32 %v2554, 1.442695
        %v2579 = vpow.pop %v2578
        %v2580 = vmul.f32 %v2555, 1.442695
        %v2581 = vpow.pop %v2580
        %v2582 = vmul.f32 %v2556, 1.442695
        %v2583 = vpow.pop %v2582
        %v2584 = vmul.f32 %v2557, 1.442695
        %v2585 = vpow.pop %v2584
        %v2586 = vmul.f32 %v2558, 1.442695
        %v2587 = vpow.pop %v2586
        %v2588 = vmul.f32 %v2559, 1.442695
        %v2589 = vpow.pop %v2588
        %v2590 = vmul.f32 %v2560, 1.442695
        %v2591 = vpow.pop %v2590
        %v2592 = vmul.f32 %v2561, 1.442695
        %v2593 = vpow.pop %v2592
        %v2594 = vadd.f32 %v2563, %v2565
        %v2595 = vadd.f32 %v2594, %v2567
        %v2596 = vadd.f32 %v2595, %v2569
        %v2597 = vadd.f32 %v2596, %v2571
        %v2598 = vadd.f32 %v2597, %v2573
        %v2599 = vadd.f32 %v2598, %v2575
        %v2600 = vadd.f32 %v2599, %v2577
        %v2601 = vadd.f32 %v2600, %v2579
        %v2602 = vadd.f32 %v2601, %v2581
        %v2603 = vadd.f32 %v2602, %v2583
        %v2604 = vadd.f32 %v2603, %v2585
        %v2605 = vadd.f32 %v2604, %v2587
        %v2606 = vadd.f32 %v2605, %v2589
        %v2607 = vadd.f32 %v2606, %v2591
        %v2608 = vadd.f32 %v2607, %v2593
        %v2609 = vrot.slane %v2608, 4
        %v2610 = vadd.f32 %v2608, %v2609
        %v2611 = vrot.slane %v2610, 2
        %v2612 = vadd.f32 %v2610, %v2611
        %v2613 = vrot.slane %v2612, 1
        %v2614 = vadd.f32 %v2612, %v2613
        %v2615 = vlog2.pop %v2614
        %v2616 = vmul.f32 %v2615, 0.6931472
        %v2617 = vadd.f32 %v2545, %v2616
        %v2618 = vmul.f32 %v1850, %v2617
        %v2619 = vadd.f32 %v1455, %v2618
        %v2620 = vmul.f32 %v2619, 0.5
        %v2621 = vmul.f32 %v1456, %v1559
        %v2622 = vadd.f32 %v1542, %v2621
        %v2623 = vadd.f32 %v1543, %v2621
        %v2624 = vadd.f32 %v1544, %v2621
        %v2625 = vadd.f32 %v1545, %v2621
        %v2626 = vadd.f32 %v1546, %v2621
        %v2627 = vadd.f32 %v1547, %v2621
        %v2628 = vadd.f32 %v1548, %v2621
        %v2629 = vadd.f32 %v1549, %v2621
        %v2630 = vadd.f32 %v1550, %v2621
        %v2631 = vadd.f32 %v1551, %v2621
        %v2632 = vadd.f32 %v1552, %v2621
        %v2633 = vadd.f32 %v1553, %v2621
        %v2634 = vadd.f32 %v1554, %v2621
        %v2635 = vadd.f32 %v1555, %v2621
        %v2636 = vadd.f32 %v1556, %v2621
        %v2637 = vadd.f32 %v1557, %v2621
        %2638 = vmax.xlane.f32.xlu0 %v2622
        %v2639 = vpop.xlane.xlu0 %2638
        %2640 = vmax.xlane.f32.xlu0 %v2623
        %v2641 = vpop.xlane.xlu0 %2640
        %2642 = vmax.xlane.f32.xlu0 %v2624
        %v2643 = vpop.xlane.xlu0 %2642
        %2644 = vmax.xlane.f32.xlu0 %v2625
        %v2645 = vpop.xlane.xlu0 %2644
        %2646 = vmax.xlane.f32.xlu0 %v2626
        %v2647 = vpop.xlane.xlu0 %2646
        %2648 = vmax.xlane.f32.xlu0 %v2627
        %v2649 = vpop.xlane.xlu0 %2648
        %2650 = vmax.xlane.f32.xlu0 %v2628
        %v2651 = vpop.xlane.xlu0 %2650
        %2652 = vmax.xlane.f32.xlu0 %v2629
        %v2653 = vpop.xlane.xlu0 %2652
        %2654 = vmax.xlane.f32.xlu0 %v2630
        %v2655 = vpop.xlane.xlu0 %2654
        %2656 = vmax.xlane.f32.xlu0 %v2631
        %v2657 = vpop.xlane.xlu0 %2656
        %2658 = vmax.xlane.f32.xlu0 %v2632
        %v2659 = vpop.xlane.xlu0 %2658
        %2660 = vmax.xlane.f32.xlu0 %v2633
        %v2661 = vpop.xlane.xlu0 %2660
        %2662 = vmax.xlane.f32.xlu0 %v2634
        %v2663 = vpop.xlane.xlu0 %2662
        %2664 = vmax.xlane.f32.xlu0 %v2635
        %v2665 = vpop.xlane.xlu0 %2664
        %2666 = vmax.xlane.f32.xlu0 %v2636
        %v2667 = vpop.xlane.xlu0 %2666
        %2668 = vmax.xlane.f32.xlu0 %v2637
        %v2669 = vpop.xlane.xlu0 %2668
        %v2670 = vsub.f32 %v2622, %v2639
        %v2671 = vsub.f32 %v2623, %v2641
        %v2672 = vsub.f32 %v2624, %v2643
        %v2673 = vsub.f32 %v2625, %v2645
        %v2674 = vsub.f32 %v2626, %v2647
        %v2675 = vsub.f32 %v2627, %v2649
        %v2676 = vsub.f32 %v2628, %v2651
        %v2677 = vsub.f32 %v2629, %v2653
        %v2678 = vsub.f32 %v2630, %v2655
        %v2679 = vsub.f32 %v2631, %v2657
        %v2680 = vsub.f32 %v2632, %v2659
        %v2681 = vsub.f32 %v2633, %v2661
        %v2682 = vsub.f32 %v2634, %v2663
        %v2683 = vsub.f32 %v2635, %v2665
        %v2684 = vsub.f32 %v2636, %v2667
        %v2685 = vsub.f32 %v2637, %v2669
        %v2686 = vmul.f32 %v2670, 1.442695
        %v2687 = vpow.pop %v2686
        %v2688 = vmul.f32 %v2671, 1.442695
        %v2689 = vpow.pop %v2688
        %v2690 = vmul.f32 %v2672, 1.442695
        %v2691 = vpow.pop %v2690
        %v2692 = vmul.f32 %v2673, 1.442695
        %v2693 = vpow.pop %v2692
        %v2694 = vmul.f32 %v2674, 1.442695
        %v2695 = vpow.pop %v2694
        %v2696 = vmul.f32 %v2675, 1.442695
        %v2697 = vpow.pop %v2696
        %v2698 = vmul.f32 %v2676, 1.442695
        %v2699 = vpow.pop %v2698
        %v2700 = vmul.f32 %v2677, 1.442695
        %v2701 = vpow.pop %v2700
        %v2702 = vmul.f32 %v2678, 1.442695
        %v2703 = vpow.pop %v2702
        %v2704 = vmul.f32 %v2679, 1.442695
        %v2705 = vpow.pop %v2704
        %v2706 = vmul.f32 %v2680, 1.442695
        %v2707 = vpow.pop %v2706
        %v2708 = vmul.f32 %v2681, 1.442695
        %v2709 = vpow.pop %v2708
        %v2710 = vmul.f32 %v2682, 1.442695
        %v2711 = vpow.pop %v2710
        %v2712 = vmul.f32 %v2683, 1.442695
        %v2713 = vpow.pop %v2712
        %v2714 = vmul.f32 %v2684, 1.442695
        %v2715 = vpow.pop %v2714
        %v2716 = vmul.f32 %v2685, 1.442695
        %v2717 = vpow.pop %v2716
        %2718 = vmatprep.subr.mxu0 0.0
        %2719 = vmatpush1.msra.mxu0 1.0
        %2720 = vmatprep.subr.mxu0 0.0
        %2721 = vmatpush1.msra.mxu0 1.0
        %2722 = vmatprep.subr.mxu0 0.0
        %2723 = vmatpush1.msra.mxu0 1.0
        %2724 = vmatprep.subr.mxu0 0.0
        %2725 = vmatpush1.msra.mxu0 1.0
        %2726 = vmatprep.subr.mxu0 0.0
        %2727 = vmatpush1.msra.mxu0 1.0
        %2728 = vmatprep.subr.mxu0 0.0
        %2729 = vmatpush1.msra.mxu0 1.0
        %2730 = vmatprep.subr.mxu0 0.0
        %2731 = vmatpush1.msra.mxu0 1.0
        %2732 = vmatprep.subr.mxu0 0.0
        %2733 = vmatpush1.msra.mxu0 1.0
        %2734 = vmatprep.subr.mxu0 0.0
        %2735 = vmatpush1.msra.mxu0 1.0
        %2736 = vmatprep.subr.mxu0 0.0
        %2737 = vmatpush1.msra.mxu0 1.0
        %2738 = vmatprep.subr.mxu0 0.0
        %2739 = vmatpush1.msra.mxu0 1.0
        %2740 = vmatprep.subr.mxu0 0.0
        %2741 = vmatpush1.msra.mxu0 1.0
        %2742 = vmatprep.subr.mxu0 0.0
        %2743 = vmatpush1.msra.mxu0 1.0
        %2744 = vmatprep.subr.mxu0 0.0
        %2745 = vmatpush1.msra.mxu0 1.0
        %2746 = vmatprep.subr.mxu0 0.0
        %2747 = vmatpush1.msra.mxu0 1.0
        %2748 = vmatprep.subr.mxu0 0.0
        %2749 = vmatpush1.msra.mxu0 1.0
        %2750 = vmatprep.subr.mxu0 0.0
        %2751 = vmatpush1.msra.mxu0 0.0
        %2752 = vmatprep.subr.mxu0 0.0
        %2753 = vmatpush1.msra.mxu0 0.0
        %2754 = vmatprep.subr.mxu0 0.0
        %2755 = vmatpush1.msra.mxu0 0.0
        %2756 = vmatprep.subr.mxu0 0.0
        %2757 = vmatpush1.msra.mxu0 0.0
        %2758 = vmatprep.subr.mxu0 0.0
        %2759 = vmatpush1.msra.mxu0 0.0
        %2760 = vmatprep.subr.mxu0 0.0
        %2761 = vmatpush1.msra.mxu0 0.0
        %2762 = vmatprep.subr.mxu0 0.0
        %2763 = vmatpush1.msra.mxu0 0.0
        %2764 = vmatprep.subr.mxu0 0.0
        %2765 = vmatpush1.msra.mxu0 0.0
        %2766 = vmatprep.subr.mxu0 0.0
        %2767 = vmatpush1.msra.mxu0 0.0
        %2768 = vmatprep.subr.mxu0 0.0
        %2769 = vmatpush1.msra.mxu0 0.0
        %2770 = vmatprep.subr.mxu0 0.0
        %2771 = vmatpush1.msra.mxu0 0.0
        %2772 = vmatprep.subr.mxu0 0.0
        %2773 = vmatpush1.msra.mxu0 0.0
        %2774 = vmatprep.subr.mxu0 0.0
        %2775 = vmatpush1.msra.mxu0 0.0
        %2776 = vmatprep.subr.mxu0 0.0
        %2777 = vmatpush1.msra.mxu0 0.0
        %2778 = vmatprep.subr.mxu0 0.0
        %2779 = vmatpush1.msra.mxu0 0.0
        %2780 = vmatprep.subr.mxu0 0.0
        %2781 = vmatpush1.msra.mxu0 0.0
        %2782 = vmatprep.mubr.f32.mxu0 0.0
        %2783 = vmatmul.mubr.f32.gmra.mrb[0].mxu0 %v2687
        %v2784 = vpop.f32.mrb[0].mxu0
        %v2785 = vadd.f32 0.0, %v2784
        %v2786 = vpop.f32.mrb[0].mxu0
        %2787 = vmatprep.mubr.f32.mxu0 0.0
        %2788 = vmatmul.mubr.f32.gmra.mrb[0].mxu0 %v2689
        %v2789 = vpop.f32.mrb[0].mxu0
        %v2790 = vadd.f32 0.0, %v2789
        %v2791 = vpop.f32.mrb[0].mxu0
        %2792 = vmatprep.mubr.f32.mxu0 0.0
        %2793 = vmatmul.mubr.f32.gmra.mrb[0].mxu0 %v2691
        %v2794 = vpop.f32.mrb[0].mxu0
        %v2795 = vadd.f32 0.0, %v2794
        %v2796 = vpop.f32.mrb[0].mxu0
        %2797 = vmatprep.mubr.f32.mxu0 0.0
        %2798 = vmatmul.mubr.f32.gmra.mrb[0].mxu0 %v2693
        %v2799 = vpop.f32.mrb[0].mxu0
        %v2800 = vadd.f32 0.0, %v2799
        %v2801 = vpop.f32.mrb[0].mxu0
        %2802 = vmatprep.mubr.f32.mxu0 0.0
        %2803 = vmatmul.mubr.f32.gmra.mrb[0].mxu0 %v2695
        %v2804 = vpop.f32.mrb[0].mxu0
        %v2805 = vadd.f32 0.0, %v2804
        %v2806 = vpop.f32.mrb[0].mxu0
        %2807 = vmatprep.mubr.f32.mxu0 0.0
        %2808 = vmatmul.mubr.f32.gmra.mrb[0].mxu0 %v2697
        %v2809 = vpop.f32.mrb[0].mxu0
        %v2810 = vadd.f32 0.0, %v2809
        %v2811 = vpop.f32.mrb[0].mxu0
        %2812 = vmatprep.mubr.f32.mxu0 0.0
        %2813 = vmatmul.mubr.f32.gmra.mrb[0].mxu0 %v2699
        %v2814 = vpop.f32.mrb[0].mxu0
        %v2815 = vadd.f32 0.0, %v2814
        %v2816 = vpop.f32.mrb[0].mxu0
        %2817 = vmatprep.mubr.f32.mxu0 0.0
        %2818 = vmatmul.mubr.f32.gmra.mrb[0].mxu0 %v2701
        %v2819 = vpop.f32.mrb[0].mxu0
        %v2820 = vadd.f32 0.0, %v2819
        %v2821 = vpop.f32.mrb[0].mxu0
        %2822 = vmatprep.mubr.f32.mxu0 0.0
        %2823 = vmatmul.mubr.f32.gmra.mrb[0].mxu0 %v2703
        %v2824 = vpop.f32.mrb[0].mxu0
        %v2825 = vadd.f32 0.0, %v2824
        %v2826 = vpop.f32.mrb[0].mxu0
        %2827 = vmatprep.mubr.f32.mxu0 0.0
        %2828 = vmatmul.mubr.f32.gmra.mrb[0].mxu0 %v2705
        %v2829 = vpop.f32.mrb[0].mxu0
        %v2830 = vadd.f32 0.0, %v2829
        %v2831 = vpop.f32.mrb[0].mxu0
        %2832 = vmatprep.mubr.f32.mxu0 0.0
        %2833 = vmatmul.mubr.f32.gmra.mrb[0].mxu0 %v2707
        %v2834 = vpop.f32.mrb[0].mxu0
        %v2835 = vadd.f32 0.0, %v2834
        %v2836 = vpop.f32.mrb[0].mxu0
        %2837 = vmatprep.mubr.f32.mxu0 0.0
        %2838 = vmatmul.mubr.f32.gmra.mrb[0].mxu0 %v2709
        %v2839 = vpop.f32.mrb[0].mxu0
        %v2840 = vadd.f32 0.0, %v2839
        %v2841 = vpop.f32.mrb[0].mxu0
        %2842 = vmatprep.mubr.f32.mxu0 0.0
        %2843 = vmatmul.mubr.f32.gmra.mrb[0].mxu0 %v2711
        %v2844 = vpop.f32.mrb[0].mxu0
        %v2845 = vadd.f32 0.0, %v2844
        %v2846 = vpop.f32.mrb[0].mxu0
        %2847 = vmatprep.mubr.f32.mxu0 0.0
        %2848 = vmatmul.mubr.f32.gmra.mrb[0].mxu0 %v2713
        %v2849 = vpop.f32.mrb[0].mxu0
        %v2850 = vadd.f32 0.0, %v2849
        %v2851 = vpop.f32.mrb[0].mxu0
        %2852 = vmatprep.mubr.f32.mxu0 0.0
        %2853 = vmatmul.mubr.f32.gmra.mrb[0].mxu0 %v2715
        %v2854 = vpop.f32.mrb[0].mxu0
        %v2855 = vadd.f32 0.0, %v2854
        %v2856 = vpop.f32.mrb[0].mxu0
        %2857 = vmatprep.mubr.f32.mxu0 0.0
        %2858 = vmatmul.mubr.f32.gmra.mrb[0].mxu0 %v2717
        %v2859 = vpop.f32.mrb[0].mxu0
        %v2860 = vadd.f32 0.0, %v2859
        %v2861 = vpop.f32.mrb[0].mxu0
        %2862 = vdwg.mxu0
        %v2863 = vlog2.pop %v2785
        %v2864 = vmul.f32 %v2863, 0.6931472
        %v2865 = vlog2.pop %v2790
        %v2866 = vmul.f32 %v2865, 0.6931472
        %v2867 = vlog2.pop %v2795
        %v2868 = vmul.f32 %v2867, 0.6931472
        %v2869 = vlog2.pop %v2800
        %v2870 = vmul.f32 %v2869, 0.6931472
        %v2871 = vlog2.pop %v2805
        %v2872 = vmul.f32 %v2871, 0.6931472
        %v2873 = vlog2.pop %v2810
        %v2874 = vmul.f32 %v2873, 0.6931472
        %v2875 = vlog2.pop %v2815
        %v2876 = vmul.f32 %v2875, 0.6931472
        %v2877 = vlog2.pop %v2820
        %v2878 = vmul.f32 %v2877, 0.6931472
        %v2879 = vlog2.pop %v2825
        %v2880 = vmul.f32 %v2879, 0.6931472
        %v2881 = vlog2.pop %v2830
        %v2882 = vmul.f32 %v2881, 0.6931472
        %v2883 = vlog2.pop %v2835
        %v2884 = vmul.f32 %v2883, 0.6931472
        %v2885 = vlog2.pop %v2840
        %v2886 = vmul.f32 %v2885, 0.6931472
        %v2887 = vlog2.pop %v2845
        %v2888 = vmul.f32 %v2887, 0.6931472
        %v2889 = vlog2.pop %v2850
        %v2890 = vmul.f32 %v2889, 0.6931472
        %v2891 = vlog2.pop %v2855
        %v2892 = vmul.f32 %v2891, 0.6931472
        %v2893 = vlog2.pop %v2860
        %v2894 = vmul.f32 %v2893, 0.6931472
        %v2895 = vadd.f32 %v2639, %v2864
        %v2896 = vadd.f32 %v2641, %v2866
        %v2897 = vadd.f32 %v2643, %v2868
        %v2898 = vadd.f32 %v2645, %v2870
        %v2899 = vadd.f32 %v2647, %v2872
        %v2900 = vadd.f32 %v2649, %v2874
        %v2901 = vadd.f32 %v2651, %v2876
        %v2902 = vadd.f32 %v2653, %v2878
        %v2903 = vadd.f32 %v2655, %v2880
        %v2904 = vadd.f32 %v2657, %v2882
        %v2905 = vadd.f32 %v2659, %v2884
        %v2906 = vadd.f32 %v2661, %v2886
        %v2907 = vadd.f32 %v2663, %v2888
        %v2908 = vadd.f32 %v2665, %v2890
        %v2909 = vadd.f32 %v2667, %v2892
        %v2910 = vadd.f32 %v2669, %v2894
        %v2911 = vmul.f32 %v1850, %v2895
        %v2912 = vmul.f32 %v1850, %v2896
        %v2913 = vmul.f32 %v1850, %v2897
        %v2914 = vmul.f32 %v1850, %v2898
        %v2915 = vmul.f32 %v1850, %v2899
        %v2916 = vmul.f32 %v1850, %v2900
        %v2917 = vmul.f32 %v1850, %v2901
        %v2918 = vmul.f32 %v1850, %v2902
        %v2919 = vmul.f32 %v1850, %v2903
        %v2920 = vmul.f32 %v1850, %v2904
        %v2921 = vmul.f32 %v1850, %v2905
        %v2922 = vmul.f32 %v1850, %v2906
        %v2923 = vmul.f32 %v1850, %v2907
        %v2924 = vmul.f32 %v1850, %v2908
        %v2925 = vmul.f32 %v1850, %v2909
        %v2926 = vmul.f32 %v1850, %v2910
        %v2927 = vmul.f32 %v2911, %v1559
        %v2928 = vmul.f32 %v2912, %v1559
        %v2929 = vmul.f32 %v2913, %v1559
        %v2930 = vmul.f32 %v2914, %v1559
        %v2931 = vmul.f32 %v2915, %v1559
        %v2932 = vmul.f32 %v2916, %v1559
        %v2933 = vmul.f32 %v2917, %v1559
        %v2934 = vmul.f32 %v2918, %v1559
        %v2935 = vmul.f32 %v2919, %v1559
        %v2936 = vmul.f32 %v2920, %v1559
        %v2937 = vmul.f32 %v2921, %v1559
        %v2938 = vmul.f32 %v2922, %v1559
        %v2939 = vmul.f32 %v2923, %v1559
        %v2940 = vmul.f32 %v2924, %v1559
        %v2941 = vmul.f32 %v2925, %v1559
        %v2942 = vmul.f32 %v2926, %v1559
        %2944 = vset.pattern.permute.xlu0 0
        %2945 = vperm.xlu0 %2944, %v2927
        %v2946 = vpop.permute.xlu0 %2945
        %2949 = vset.pattern.permute.xlu0 0
        %2950 = vperm.xlu0 %2949, %v2928
        %v2951 = vpop.permute.xlu0 %2950
        %2954 = vset.pattern.permute.xlu0 0
        %2955 = vperm.xlu0 %2954, %v2929
        %v2956 = vpop.permute.xlu0 %2955
        %2959 = vset.pattern.permute.xlu0 0
        %2960 = vperm.xlu0 %2959, %v2930
        %v2961 = vpop.permute.xlu0 %2960
        %2964 = vset.pattern.permute.xlu0 0
        %2965 = vperm.xlu0 %2964, %v2931
        %v2966 = vpop.permute.xlu0 %2965
        %2969 = vset.pattern.permute.xlu0 0
        %2970 = vperm.xlu0 %2969, %v2932
        %v2971 = vpop.permute.xlu0 %2970
        %2974 = vset.pattern.permute.xlu0 0
        %2975 = vperm.xlu0 %2974, %v2933
        %v2976 = vpop.permute.xlu0 %2975
        %2979 = vset.pattern.permute.xlu0 0
        %2980 = vperm.xlu0 %2979, %v2934
        %v2981 = vpop.permute.xlu0 %2980
        %2984 = vset.pattern.permute.xlu0 0
        %2985 = vperm.xlu0 %2984, %v2935
        %v2986 = vpop.permute.xlu0 %2985
        %2989 = vset.pattern.permute.xlu0 0
        %2990 = vperm.xlu0 %2989, %v2936
        %v2991 = vpop.permute.xlu0 %2990
        %2994 = vset.pattern.permute.xlu0 0
        %2995 = vperm.xlu0 %2994, %v2937
        %v2996 = vpop.permute.xlu0 %2995
        %2999 = vset.pattern.permute.xlu0 0
        %3000 = vperm.xlu0 %2999, %v2938
        %v3001 = vpop.permute.xlu0 %3000
        %3004 = vset.pattern.permute.xlu0 0
        %3005 = vperm.xlu0 %3004, %v2939
        %v3006 = vpop.permute.xlu0 %3005
        %3009 = vset.pattern.permute.xlu0 0
        %3010 = vperm.xlu0 %3009, %v2940
        %v3011 = vpop.permute.xlu0 %3010
        %3014 = vset.pattern.permute.xlu0 0
        %3015 = vperm.xlu0 %3014, %v2941
        %v3016 = vpop.permute.xlu0 %3015
        %3019 = vset.pattern.permute.xlu0 0
        %3020 = vperm.xlu0 %3019, %v2942
        %v3021 = vpop.permute.xlu0 %3020
        %v3023 = vadd.f32 %v1542, %v2946
        %v3024 = vadd.f32 %v1543, %v2951
        %v3025 = vadd.f32 %v1544, %v2956
        %v3026 = vadd.f32 %v1545, %v2961
        %v3027 = vadd.f32 %v1546, %v2966
        %v3028 = vadd.f32 %v1547, %v2971
        %v3029 = vadd.f32 %v1548, %v2976
        %v3030 = vadd.f32 %v1549, %v2981
        %v3031 = vadd.f32 %v1550, %v2986
        %v3032 = vadd.f32 %v1551, %v2991
        %v3033 = vadd.f32 %v1552, %v2996
        %v3034 = vadd.f32 %v1553, %v3001
        %v3035 = vadd.f32 %v1554, %v3006
        %v3036 = vadd.f32 %v1555, %v3011
        %v3037 = vadd.f32 %v1556, %v3016
        %v3038 = vadd.f32 %v1557, %v3021
        %v3039 = vmax.f32 %v3023, %v3027
        %v3040 = vmax.f32 %v3024, %v3028
        %v3041 = vmax.f32 %v3025, %v3029
        %v3042 = vmax.f32 %v3026, %v3030
        %v3043 = vmax.f32 %v3039, %v3031
        %v3044 = vmax.f32 %v3040, %v3032
        %v3045 = vmax.f32 %v3041, %v3033
        %v3046 = vmax.f32 %v3042, %v3034
        %v3047 = vmax.f32 %v3043, %v3035
        %v3048 = vmax.f32 %v3044, %v3036
        %v3049 = vmax.f32 %v3045, %v3037
        %v3050 = vmax.f32 %v3046, %v3038
        %v3051 = vmax.f32 %v3047, %v3048
        %v3052 = vmax.f32 %v3049, %v3050
        %v3053 = vmax.f32 %v3051, %v3052
        %v3054 = vrot.slane %v3053, 4
        %v3055 = vmax.f32 %v3053, %v3054
        %v3056 = vrot.slane %v3055, 2
        %v3057 = vmax.f32 %v3055, %v3056
        %v3058 = vrot.slane %v3057, 1
        %v3059 = vmax.f32 %v3057, %v3058
        %v3060 = vsub.f32 %v3023, %v3059
        %v3061 = vsub.f32 %v3024, %v3059
        %v3062 = vsub.f32 %v3025, %v3059
        %v3063 = vsub.f32 %v3026, %v3059
        %v3064 = vsub.f32 %v3027, %v3059
        %v3065 = vsub.f32 %v3028, %v3059
        %v3066 = vsub.f32 %v3029, %v3059
        %v3067 = vsub.f32 %v3030, %v3059
        %v3068 = vsub.f32 %v3031, %v3059
        %v3069 = vsub.f32 %v3032, %v3059
        %v3070 = vsub.f32 %v3033, %v3059
        %v3071 = vsub.f32 %v3034, %v3059
        %v3072 = vsub.f32 %v3035, %v3059
        %v3073 = vsub.f32 %v3036, %v3059
        %v3074 = vsub.f32 %v3037, %v3059
        %v3075 = vsub.f32 %v3038, %v3059
        %v3076 = vmul.f32 %v3060, 1.442695
        %v3077 = vpow.pop %v3076
        %v3078 = vmul.f32 %v3061, 1.442695
        %v3079 = vpow.pop %v3078
        %v3080 = vmul.f32 %v3062, 1.442695
        %v3081 = vpow.pop %v3080
        %v3082 = vmul.f32 %v3063, 1.442695
        %v3083 = vpow.pop %v3082
        %v3084 = vmul.f32 %v3064, 1.442695
        %v3085 = vpow.pop %v3084
        %v3086 = vmul.f32 %v3065, 1.442695
        %v3087 = vpow.pop %v3086
        %v3088 = vmul.f32 %v3066, 1.442695
        %v3089 = vpow.pop %v3088
        %v3090 = vmul.f32 %v3067, 1.442695
        %v3091 = vpow.pop %v3090
        %v3092 = vmul.f32 %v3068, 1.442695
        %v3093 = vpow.pop %v3092
        %v3094 = vmul.f32 %v3069, 1.442695
        %v3095 = vpow.pop %v3094
        %v3096 = vmul.f32 %v3070, 1.442695
        %v3097 = vpow.pop %v3096
        %v3098 = vmul.f32 %v3071, 1.442695
        %v3099 = vpow.pop %v3098
        %v3100 = vmul.f32 %v3072, 1.442695
        %v3101 = vpow.pop %v3100
        %v3102 = vmul.f32 %v3073, 1.442695
        %v3103 = vpow.pop %v3102
        %v3104 = vmul.f32 %v3074, 1.442695
        %v3105 = vpow.pop %v3104
        %v3106 = vmul.f32 %v3075, 1.442695
        %v3107 = vpow.pop %v3106
        %v3108 = vadd.f32 %v3077, %v3079
        %v3109 = vadd.f32 %v3108, %v3081
        %v3110 = vadd.f32 %v3109, %v3083
        %v3111 = vadd.f32 %v3110, %v3085
        %v3112 = vadd.f32 %v3111, %v3087
        %v3113 = vadd.f32 %v3112, %v3089
        %v3114 = vadd.f32 %v3113, %v3091
        %v3115 = vadd.f32 %v3114, %v3093
        %v3116 = vadd.f32 %v3115, %v3095
        %v3117 = vadd.f32 %v3116, %v3097
        %v3118 = vadd.f32 %v3117, %v3099
        %v3119 = vadd.f32 %v3118, %v3101
        %v3120 = vadd.f32 %v3119, %v3103
        %v3121 = vadd.f32 %v3120, %v3105
        %v3122 = vadd.f32 %v3121, %v3107
        %v3123 = vrot.slane %v3122, 4
        %v3124 = vadd.f32 %v3122, %v3123
        %v3125 = vrot.slane %v3124, 2
        %v3126 = vadd.f32 %v3124, %v3125
        %v3127 = vrot.slane %v3126, 1
        %v3128 = vadd.f32 %v3126, %v3127
        %v3129 = vlog2.pop %v3128
        %v3130 = vmul.f32 %v3129, 0.6931472
        %v3131 = vadd.f32 %v3059, %v3130
        %v3132 = vmul.f32 %v1850, %v3131
        %v3133 = vadd.f32 %v1456, %v3132
        %v3134 = vmul.f32 %v3133, 0.5
        %s3135 = smul.f32 %s1437, 0.25
        %s3136 = smax.f32 %s3135, 0.0025
      $region41: #{_lambda_.1} parent=35 // loop_footer
        %s1436 = sadd.s32 1, %s1432
      $region42: #{_lambda_.1} parent=35 // loop_footer_branch
        %1431 = sbr.rel target = $region38
      $region43: #{_lambda_.1} parent=35 // loop_exit
        _
      %v3137 = vmul.f32 %v630, -200.0
      %v3138 = vmul.f32 %v631, -200.0
      %v3139 = vmul.f32 %v632, -200.0
      %v3140 = vmul.f32 %v633, -200.0
      %v3141 = vmul.f32 %v634, -200.0
      %v3142 = vmul.f32 %v635, -200.0
      %v3143 = vmul.f32 %v636, -200.0
      %v3144 = vmul.f32 %v637, -200.0
      %v3145 = vmul.f32 %v638, -200.0
      %v3146 = vmul.f32 %v639, -200.0
      %v3147 = vmul.f32 %v640, -200.0
      %v3148 = vmul.f32 %v641, -200.0
      %v3149 = vmul.f32 %v642, -200.0
      %v3150 = vmul.f32 %v643, -200.0
      %v3151 = vmul.f32 %v644, -200.0
      %v3152 = vmul.f32 %v645, -200.0
      %v3153 = vadd.f32 %v3137, -4.8520303
      %v3154 = vadd.f32 %v3138, -4.8520303
      %v3155 = vadd.f32 %v3139, -4.8520303
      %v3156 = vadd.f32 %v3140, -4.8520303
      %v3157 = vadd.f32 %v3141, -4.8520303
      %v3158 = vadd.f32 %v3142, -4.8520303
      %v3159 = vadd.f32 %v3143, -4.8520303
      %v3160 = vadd.f32 %v3144, -4.8520303
      %v3161 = vadd.f32 %v3145, -4.8520303
      %v3162 = vadd.f32 %v3146, -4.8520303
      %v3163 = vadd.f32 %v3147, -4.8520303
      %v3164 = vadd.f32 %v3148, -4.8520303
      %v3165 = vadd.f32 %v3149, -4.8520303
      %v3166 = vadd.f32 %v3150, -4.8520303
      %v3167 = vadd.f32 %v3151, -4.8520303
      %v3168 = vadd.f32 %v3152, -4.8520303
      %v3169 = vmul.f32 %v1454, 400.0
      %v3170 = vadd.f32 %v3153, %v3169
      %v3171 = vadd.f32 %v3154, %v3169
      %v3172 = vadd.f32 %v3155, %v3169
      %v3173 = vadd.f32 %v3156, %v3169
      %v3174 = vadd.f32 %v3157, %v3169
      %v3175 = vadd.f32 %v3158, %v3169
      %v3176 = vadd.f32 %v3159, %v3169
      %v3177 = vadd.f32 %v3160, %v3169
      %v3178 = vadd.f32 %v3161, %v3169
      %v3179 = vadd.f32 %v3162, %v3169
      %v3180 = vadd.f32 %v3163, %v3169
      %v3181 = vadd.f32 %v3164, %v3169
      %v3182 = vadd.f32 %v3165, %v3169
      %v3183 = vadd.f32 %v3166, %v3169
      %v3184 = vadd.f32 %v3167, %v3169
      %v3185 = vadd.f32 %v3168, %v3169
      %3186 = vmax.xlane.f32.xlu0 %v3170
      %v3187 = vpop.xlane.xlu0 %3186
      %3188 = vmax.xlane.f32.xlu0 %v3171
      %v3189 = vpop.xlane.xlu0 %3188
      %3190 = vmax.xlane.f32.xlu0 %v3172
      %v3191 = vpop.xlane.xlu0 %3190
      %3192 = vmax.xlane.f32.xlu0 %v3173
      %v3193 = vpop.xlane.xlu0 %3192
      %3194 = vmax.xlane.f32.xlu0 %v3174
      %v3195 = vpop.xlane.xlu0 %3194
      %3196 = vmax.xlane.f32.xlu0 %v3175
      %v3197 = vpop.xlane.xlu0 %3196
      %3198 = vmax.xlane.f32.xlu0 %v3176
      %v3199 = vpop.xlane.xlu0 %3198
      %3200 = vmax.xlane.f32.xlu0 %v3177
      %v3201 = vpop.xlane.xlu0 %3200
      %3202 = vmax.xlane.f32.xlu0 %v3178
      %v3203 = vpop.xlane.xlu0 %3202
      %3204 = vmax.xlane.f32.xlu0 %v3179
      %v3205 = vpop.xlane.xlu0 %3204
      %3206 = vmax.xlane.f32.xlu0 %v3180
      %v3207 = vpop.xlane.xlu0 %3206
      %3208 = vmax.xlane.f32.xlu0 %v3181
      %v3209 = vpop.xlane.xlu0 %3208
      %3210 = vmax.xlane.f32.xlu0 %v3182
      %v3211 = vpop.xlane.xlu0 %3210
      %3212 = vmax.xlane.f32.xlu0 %v3183
      %v3213 = vpop.xlane.xlu0 %3212
      %3214 = vmax.xlane.f32.xlu0 %v3184
      %v3215 = vpop.xlane.xlu0 %3214
      %3216 = vmax.xlane.f32.xlu0 %v3185
      %v3217 = vpop.xlane.xlu0 %3216
      %v3218 = vsub.f32 %v3170, %v3187
      %v3219 = vsub.f32 %v3171, %v3189
      %v3220 = vsub.f32 %v3172, %v3191
      %v3221 = vsub.f32 %v3173, %v3193
      %v3222 = vsub.f32 %v3174, %v3195
      %v3223 = vsub.f32 %v3175, %v3197
      %v3224 = vsub.f32 %v3176, %v3199
      %v3225 = vsub.f32 %v3177, %v3201
      %v3226 = vsub.f32 %v3178, %v3203
      %v3227 = vsub.f32 %v3179, %v3205
      %v3228 = vsub.f32 %v3180, %v3207
      %v3229 = vsub.f32 %v3181, %v3209
      %v3230 = vsub.f32 %v3182, %v3211
      %v3231 = vsub.f32 %v3183, %v3213
      %v3232 = vsub.f32 %v3184, %v3215
      %v3233 = vsub.f32 %v3185, %v3217
      %v3234 = vmul.f32 %v3218, 1.442695
      %v3235 = vpow.pop %v3234
      %v3236 = vmul.f32 %v3219, 1.442695
      %v3237 = vpow.pop %v3236
      %v3238 = vmul.f32 %v3220, 1.442695
      %v3239 = vpow.pop %v3238
      %v3240 = vmul.f32 %v3221, 1.442695
      %v3241 = vpow.pop %v3240
      %v3242 = vmul.f32 %v3222, 1.442695
      %v3243 = vpow.pop %v3242
      %v3244 = vmul.f32 %v3223, 1.442695
      %v3245 = vpow.pop %v3244
      %v3246 = vmul.f32 %v3224, 1.442695
      %v3247 = vpow.pop %v3246
      %v3248 = vmul.f32 %v3225, 1.442695
      %v3249 = vpow.pop %v3248
      %v3250 = vmul.f32 %v3226, 1.442695
      %v3251 = vpow.pop %v3250
      %v3252 = vmul.f32 %v3227, 1.442695
      %v3253 = vpow.pop %v3252
      %v3254 = vmul.f32 %v3228, 1.442695
      %v3255 = vpow.pop %v3254
      %v3256 = vmul.f32 %v3229, 1.442695
      %v3257 = vpow.pop %v3256
      %v3258 = vmul.f32 %v3230, 1.442695
      %v3259 = vpow.pop %v3258
      %v3260 = vmul.f32 %v3231, 1.442695
      %v3261 = vpow.pop %v3260
      %v3262 = vmul.f32 %v3232, 1.442695
      %v3263 = vpow.pop %v3262
      %v3264 = vmul.f32 %v3233, 1.442695
      %v3265 = vpow.pop %v3264
      %3266 = vmatprep.subr.mxu0 0.0
      %3267 = vmatpush1.msra.mxu0 1.0
      %3268 = vmatprep.subr.mxu0 0.0
      %3269 = vmatpush1.msra.mxu0 1.0
      %3270 = vmatprep.subr.mxu0 0.0
      %3271 = vmatpush1.msra.mxu0 1.0
      %3272 = vmatprep.subr.mxu0 0.0
      %3273 = vmatpush1.msra.mxu0 1.0
      %3274 = vmatprep.subr.mxu0 0.0
      %3275 = vmatpush1.msra.mxu0 1.0
      %3276 = vmatprep.subr.mxu0 0.0
      %3277 = vmatpush1.msra.mxu0 1.0
      %3278 = vmatprep.subr.mxu0 0.0
      %3279 = vmatpush1.msra.mxu0 1.0
      %3280 = vmatprep.subr.mxu0 0.0
      %3281 = vmatpush1.msra.mxu0 1.0
      %3282 = vmatprep.subr.mxu0 0.0
      %3283 = vmatpush1.msra.mxu0 1.0
      %3284 = vmatprep.subr.mxu0 0.0
      %3285 = vmatpush1.msra.mxu0 1.0
      %3286 = vmatprep.subr.mxu0 0.0
      %3287 = vmatpush1.msra.mxu0 1.0
      %3288 = vmatprep.subr.mxu0 0.0
      %3289 = vmatpush1.msra.mxu0 1.0
      %3290 = vmatprep.subr.mxu0 0.0
      %3291 = vmatpush1.msra.mxu0 1.0
      %3292 = vmatprep.subr.mxu0 0.0
      %3293 = vmatpush1.msra.mxu0 1.0
      %3294 = vmatprep.subr.mxu0 0.0
      %3295 = vmatpush1.msra.mxu0 1.0
      %3296 = vmatprep.subr.mxu0 0.0
      %3297 = vmatpush1.msra.mxu0 1.0
      %3298 = vmatprep.subr.mxu0 0.0
      %3299 = vmatpush1.msra.mxu0 0.0
      %3300 = vmatprep.subr.mxu0 0.0
      %3301 = vmatpush1.msra.mxu0 0.0
      %3302 = vmatprep.subr.mxu0 0.0
      %3303 = vmatpush1.msra.mxu0 0.0
      %3304 = vmatprep.subr.mxu0 0.0
      %3305 = vmatpush1.msra.mxu0 0.0
      %3306 = vmatprep.subr.mxu0 0.0
      %3307 = vmatpush1.msra.mxu0 0.0
      %3308 = vmatprep.subr.mxu0 0.0
      %3309 = vmatpush1.msra.mxu0 0.0
      %3310 = vmatprep.subr.mxu0 0.0
      %3311 = vmatpush1.msra.mxu0 0.0
      %3312 = vmatprep.subr.mxu0 0.0
      %3313 = vmatpush1.msra.mxu0 0.0
      %3314 = vmatprep.subr.mxu0 0.0
      %3315 = vmatpush1.msra.mxu0 0.0
      %3316 = vmatprep.subr.mxu0 0.0
      %3317 = vmatpush1.msra.mxu0 0.0
      %3318 = vmatprep.subr.mxu0 0.0
      %3319 = vmatpush1.msra.mxu0 0.0
      %3320 = vmatprep.subr.mxu0 0.0
      %3321 = vmatpush1.msra.mxu0 0.0
      %3322 = vmatprep.subr.mxu0 0.0
      %3323 = vmatpush1.msra.mxu0 0.0
      %3324 = vmatprep.subr.mxu0 0.0
      %3325 = vmatpush1.msra.mxu0 0.0
      %3326 = vmatprep.subr.mxu0 0.0
      %3327 = vmatpush1.msra.mxu0 0.0
      %3328 = vmatprep.subr.mxu0 0.0
      %3329 = vmatpush1.msra.mxu0 0.0
      %3330 = vmatprep.mubr.f32.mxu0 0.0
      %3331 = vmatmul.mubr.f32.gmra.mrb[0].mxu0 %v3235
      %v3332 = vpop.f32.mrb[0].mxu0
      %v3333 = vadd.f32 0.0, %v3332
      %v3334 = vpop.f32.mrb[0].mxu0
      %3335 = vmatprep.mubr.f32.mxu0 0.0
      %3336 = vmatmul.mubr.f32.gmra.mrb[0].mxu0 %v3237
      %v3337 = vpop.f32.mrb[0].mxu0
      %v3338 = vadd.f32 0.0, %v3337
      %v3339 = vpop.f32.mrb[0].mxu0
      %3340 = vmatprep.mubr.f32.mxu0 0.0
      %3341 = vmatmul.mubr.f32.gmra.mrb[0].mxu0 %v3239
      %v3342 = vpop.f32.mrb[0].mxu0
      %v3343 = vadd.f32 0.0, %v3342
      %v3344 = vpop.f32.mrb[0].mxu0
      %3345 = vmatprep.mubr.f32.mxu0 0.0
      %3346 = vmatmul.mubr.f32.gmra.mrb[0].mxu0 %v3241
      %v3347 = vpop.f32.mrb[0].mxu0
      %v3348 = vadd.f32 0.0, %v3347
      %v3349 = vpop.f32.mrb[0].mxu0
      %3350 = vmatprep.mubr.f32.mxu0 0.0
      %3351 = vmatmul.mubr.f32.gmra.mrb[0].mxu0 %v3243
      %v3352 = vpop.f32.mrb[0].mxu0
      %v3353 = vadd.f32 0.0, %v3352
      %v3354 = vpop.f32.mrb[0].mxu0
      %3355 = vmatprep.mubr.f32.mxu0 0.0
      %3356 = vmatmul.mubr.f32.gmra.mrb[0].mxu0 %v3245
      %v3357 = vpop.f32.mrb[0].mxu0
      %v3358 = vadd.f32 0.0, %v3357
      %v3359 = vpop.f32.mrb[0].mxu0
      %3360 = vmatprep.mubr.f32.mxu0 0.0
      %3361 = vmatmul.mubr.f32.gmra.mrb[0].mxu0 %v3247
      %v3362 = vpop.f32.mrb[0].mxu0
      %v3363 = vadd.f32 0.0, %v3362
      %v3364 = vpop.f32.mrb[0].mxu0
      %3365 = vmatprep.mubr.f32.mxu0 0.0
      %3366 = vmatmul.mubr.f32.gmra.mrb[0].mxu0 %v3249
      %v3367 = vpop.f32.mrb[0].mxu0
      %v3368 = vadd.f32 0.0, %v3367
      %v3369 = vpop.f32.mrb[0].mxu0
      %3370 = vmatprep.mubr.f32.mxu0 0.0
      %3371 = vmatmul.mubr.f32.gmra.mrb[0].mxu0 %v3251
      %v3372 = vpop.f32.mrb[0].mxu0
      %v3373 = vadd.f32 0.0, %v3372
      %v3374 = vpop.f32.mrb[0].mxu0
      %3375 = vmatprep.mubr.f32.mxu0 0.0
      %3376 = vmatmul.mubr.f32.gmra.mrb[0].mxu0 %v3253
      %v3377 = vpop.f32.mrb[0].mxu0
      %v3378 = vadd.f32 0.0, %v3377
      %v3379 = vpop.f32.mrb[0].mxu0
      %3380 = vmatprep.mubr.f32.mxu0 0.0
      %3381 = vmatmul.mubr.f32.gmra.mrb[0].mxu0 %v3255
      %v3382 = vpop.f32.mrb[0].mxu0
      %v3383 = vadd.f32 0.0, %v3382
      %v3384 = vpop.f32.mrb[0].mxu0
      %3385 = vmatprep.mubr.f32.mxu0 0.0
      %3386 = vmatmul.mubr.f32.gmra.mrb[0].mxu0 %v3257
      %v3387 = vpop.f32.mrb[0].mxu0
      %v3388 = vadd.f32 0.0, %v3387
      %v3389 = vpop.f32.mrb[0].mxu0
      %3390 = vmatprep.mubr.f32.mxu0 0.0
      %3391 = vmatmul.mubr.f32.gmra.mrb[0].mxu0 %v3259
      %v3392 = vpop.f32.mrb[0].mxu0
      %v3393 = vadd.f32 0.0, %v3392
      %v3394 = vpop.f32.mrb[0].mxu0
      %3395 = vmatprep.mubr.f32.mxu0 0.0
      %3396 = vmatmul.mubr.f32.gmra.mrb[0].mxu0 %v3261
      %v3397 = vpop.f32.mrb[0].mxu0
      %v3398 = vadd.f32 0.0, %v3397
      %v3399 = vpop.f32.mrb[0].mxu0
      %3400 = vmatprep.mubr.f32.mxu0 0.0
      %3401 = vmatmul.mubr.f32.gmra.mrb[0].mxu0 %v3263
      %v3402 = vpop.f32.mrb[0].mxu0
      %v3403 = vadd.f32 0.0, %v3402
      %v3404 = vpop.f32.mrb[0].mxu0
      %3405 = vmatprep.mubr.f32.mxu0 0.0
      %3406 = vmatmul.mubr.f32.gmra.mrb[0].mxu0 %v3265
      %v3407 = vpop.f32.mrb[0].mxu0
      %v3408 = vadd.f32 0.0, %v3407
      %v3409 = vpop.f32.mrb[0].mxu0
      %3410 = vdwg.mxu0
      %v3411 = vlog2.pop %v3333
      %v3412 = vmul.f32 %v3411, 0.6931472
      %v3413 = vlog2.pop %v3338
      %v3414 = vmul.f32 %v3413, 0.6931472
      %v3415 = vlog2.pop %v3343
      %v3416 = vmul.f32 %v3415, 0.6931472
      %v3417 = vlog2.pop %v3348
      %v3418 = vmul.f32 %v3417, 0.6931472
      %v3419 = vlog2.pop %v3353
      %v3420 = vmul.f32 %v3419, 0.6931472
      %v3421 = vlog2.pop %v3358
      %v3422 = vmul.f32 %v3421, 0.6931472
      %v3423 = vlog2.pop %v3363
      %v3424 = vmul.f32 %v3423, 0.6931472
      %v3425 = vlog2.pop %v3368
      %v3426 = vmul.f32 %v3425, 0.6931472
      %v3427 = vlog2.pop %v3373
      %v3428 = vmul.f32 %v3427, 0.6931472
      %v3429 = vlog2.pop %v3378
      %v3430 = vmul.f32 %v3429, 0.6931472
      %v3431 = vlog2.pop %v3383
      %v3432 = vmul.f32 %v3431, 0.6931472
      %v3433 = vlog2.pop %v3388
      %v3434 = vmul.f32 %v3433, 0.6931472
      %v3435 = vlog2.pop %v3393
      %v3436 = vmul.f32 %v3435, 0.6931472
      %v3437 = vlog2.pop %v3398
      %v3438 = vmul.f32 %v3437, 0.6931472
      %v3439 = vlog2.pop %v3403
      %v3440 = vmul.f32 %v3439, 0.6931472
      %v3441 = vlog2.pop %v3408
      %v3442 = vmul.f32 %v3441, 0.6931472
      %v3443 = vadd.f32 %v3187, %v3412
      %v3444 = vadd.f32 %v3189, %v3414
      %v3445 = vadd.f32 %v3191, %v3416
      %v3446 = vadd.f32 %v3193, %v3418
      %v3447 = vadd.f32 %v3195, %v3420
      %v3448 = vadd.f32 %v3197, %v3422
      %v3449 = vadd.f32 %v3199, %v3424
      %v3450 = vadd.f32 %v3201, %v3426
      %v3451 = vadd.f32 %v3203, %v3428
      %v3452 = vadd.f32 %v3205, %v3430
      %v3453 = vadd.f32 %v3207, %v3432
      %v3454 = vadd.f32 %v3209, %v3434
      %v3455 = vadd.f32 %v3211, %v3436
      %v3456 = vadd.f32 %v3213, %v3438
      %v3457 = vadd.f32 %v3215, %v3440
      %v3458 = vadd.f32 %v3217, %v3442
      %v3459 = vmul.f32 %v3443, -0.0025
      %v3460 = vmul.f32 %v3444, -0.0025
      %v3461 = vmul.f32 %v3445, -0.0025
      %v3462 = vmul.f32 %v3446, -0.0025
      %v3463 = vmul.f32 %v3447, -0.0025
      %v3464 = vmul.f32 %v3448, -0.0025
      %v3465 = vmul.f32 %v3449, -0.0025
      %v3466 = vmul.f32 %v3450, -0.0025
      %v3467 = vmul.f32 %v3451, -0.0025
      %v3468 = vmul.f32 %v3452, -0.0025
      %v3469 = vmul.f32 %v3453, -0.0025
      %v3470 = vmul.f32 %v3454, -0.0025
      %v3471 = vmul.f32 %v3455, -0.0025
      %v3472 = vmul.f32 %v3456, -0.0025
      %v3473 = vmul.f32 %v3457, -0.0025
      %v3474 = vmul.f32 %v3458, -0.0025
      %v3475 = vmul.f32 %v1438, 400.0
      %v3476 = vmul.f32 %v1439, 400.0
      %v3477 = vmul.f32 %v1440, 400.0
      %v3478 = vmul.f32 %v1441, 400.0
      %v3479 = vmul.f32 %v1442, 400.0
      %v3480 = vmul.f32 %v1443, 400.0
      %v3481 = vmul.f32 %v1444, 400.0
      %v3482 = vmul.f32 %v1445, 400.0
      %v3483 = vmul.f32 %v1446, 400.0
      %v3484 = vmul.f32 %v1447, 400.0
      %v3485 = vmul.f32 %v1448, 400.0
      %v3486 = vmul.f32 %v1449, 400.0
      %v3487 = vmul.f32 %v1450, 400.0
      %v3488 = vmul.f32 %v1451, 400.0
      %v3489 = vmul.f32 %v1452, 400.0
      %v3490 = vmul.f32 %v1453, 400.0
      %3492 = vset.pattern.permute.xlu0 0
      %3493 = vperm.xlu0 %3492, %v3475
      %v3494 = vpop.permute.xlu0 %3493
      %3497 = vset.pattern.permute.xlu0 0
      %3498 = vperm.xlu0 %3497, %v3476
      %v3499 = vpop.permute.xlu0 %3498
      %3502 = vset.pattern.permute.xlu0 0
      %3503 = vperm.xlu0 %3502, %v3477
      %v3504 = vpop.permute.xlu0 %3503
      %3507 = vset.pattern.permute.xlu0 0
      %3508 = vperm.xlu0 %3507, %v3478
      %v3509 = vpop.permute.xlu0 %3508
      %3512 = vset.pattern.permute.xlu0 0
      %3513 = vperm.xlu0 %3512, %v3479
      %v3514 = vpop.permute.xlu0 %3513
      %3517 = vset.pattern.permute.xlu0 0
      %3518 = vperm.xlu0 %3517, %v3480
      %v3519 = vpop.permute.xlu0 %3518
      %3522 = vset.pattern.permute.xlu0 0
      %3523 = vperm.xlu0 %3522, %v3481
      %v3524 = vpop.permute.xlu0 %3523
      %3527 = vset.pattern.permute.xlu0 0
      %3528 = vperm.xlu0 %3527, %v3482
      %v3529 = vpop.permute.xlu0 %3528
      %3532 = vset.pattern.permute.xlu0 0
      %3533 = vperm.xlu0 %3532, %v3483
      %v3534 = vpop.permute.xlu0 %3533
      %3537 = vset.pattern.permute.xlu0 0
      %3538 = vperm.xlu0 %3537, %v3484
      %v3539 = vpop.permute.xlu0 %3538
      %3542 = vset.pattern.permute.xlu0 0
      %3543 = vperm.xlu0 %3542, %v3485
      %v3544 = vpop.permute.xlu0 %3543
      %3547 = vset.pattern.permute.xlu0 0
      %3548 = vperm.xlu0 %3547, %v3486
      %v3549 = vpop.permute.xlu0 %3548
      %3552 = vset.pattern.permute.xlu0 0
      %3553 = vperm.xlu0 %3552, %v3487
      %v3554 = vpop.permute.xlu0 %3553
      %3557 = vset.pattern.permute.xlu0 0
      %3558 = vperm.xlu0 %3557, %v3488
      %v3559 = vpop.permute.xlu0 %3558
      %3562 = vset.pattern.permute.xlu0 0
      %3563 = vperm.xlu0 %3562, %v3489
      %v3564 = vpop.permute.xlu0 %3563
      %3567 = vset.pattern.permute.xlu0 0
      %3568 = vperm.xlu0 %3567, %v3490
      %v3569 = vpop.permute.xlu0 %3568
      %v3571 = vadd.f32 %v3153, %v3494
      %v3572 = vadd.f32 %v3154, %v3499
      %v3573 = vadd.f32 %v3155, %v3504
      %v3574 = vadd.f32 %v3156, %v3509
      %v3575 = vadd.f32 %v3157, %v3514
      %v3576 = vadd.f32 %v3158, %v3519
      %v3577 = vadd.f32 %v3159, %v3524
      %v3578 = vadd.f32 %v3160, %v3529
      %v3579 = vadd.f32 %v3161, %v3534
      %v3580 = vadd.f32 %v3162, %v3539
      %v3581 = vadd.f32 %v3163, %v3544
      %v3582 = vadd.f32 %v3164, %v3549
      %v3583 = vadd.f32 %v3165, %v3554
      %v3584 = vadd.f32 %v3166, %v3559
      %v3585 = vadd.f32 %v3167, %v3564
      %v3586 = vadd.f32 %v3168, %v3569
      %v3587 = vmax.f32 %v3571, %v3575
      %v3588 = vmax.f32 %v3572, %v3576
      %v3589 = vmax.f32 %v3573, %v3577
      %v3590 = vmax.f32 %v3574, %v3578
      %v3591 = vmax.f32 %v3587, %v3579
      %v3592 = vmax.f32 %v3588, %v3580
      %v3593 = vmax.f32 %v3589, %v3581
      %v3594 = vmax.f32 %v3590, %v3582
      %v3595 = vmax.f32 %v3591, %v3583
      %v3596 = vmax.f32 %v3592, %v3584
      %v3597 = vmax.f32 %v3593, %v3585
      %v3598 = vmax.f32 %v3594, %v3586
      %v3599 = vmax.f32 %v3595, %v3596
      %v3600 = vmax.f32 %v3597, %v3598
      %v3601 = vmax.f32 %v3599, %v3600
      %v3602 = vrot.slane %v3601, 4
      %v3603 = vmax.f32 %v3601, %v3602
      %v3604 = vrot.slane %v3603, 2
      %v3605 = vmax.f32 %v3603, %v3604
      %v3606 = vrot.slane %v3605, 1
      %v3607 = vmax.f32 %v3605, %v3606
      %v3608 = vsub.f32 %v3571, %v3607
      %v3609 = vsub.f32 %v3572, %v3607
      %v3610 = vsub.f32 %v3573, %v3607
      %v3611 = vsub.f32 %v3574, %v3607
      %v3612 = vsub.f32 %v3575, %v3607
      %v3613 = vsub.f32 %v3576, %v3607
      %v3614 = vsub.f32 %v3577, %v3607
      %v3615 = vsub.f32 %v3578, %v3607
      %v3616 = vsub.f32 %v3579, %v3607
      %v3617 = vsub.f32 %v3580, %v3607
      %v3618 = vsub.f32 %v3581, %v3607
      %v3619 = vsub.f32 %v3582, %v3607
      %v3620 = vsub.f32 %v3583, %v3607
      %v3621 = vsub.f32 %v3584, %v3607
      %v3622 = vsub.f32 %v3585, %v3607
      %v3623 = vsub.f32 %v3586, %v3607
      %v3624 = vmul.f32 %v3608, 1.442695
      %v3625 = vpow.pop %v3624
      %v3626 = vmul.f32 %v3609, 1.442695
      %v3627 = vpow.pop %v3626
      %v3628 = vmul.f32 %v3610, 1.442695
      %v3629 = vpow.pop %v3628
      %v3630 = vmul.f32 %v3611, 1.442695
      %v3631 = vpow.pop %v3630
      %v3632 = vmul.f32 %v3612, 1.442695
      %v3633 = vpow.pop %v3632
      %v3634 = vmul.f32 %v3613, 1.442695
      %v3635 = vpow.pop %v3634
      %v3636 = vmul.f32 %v3614, 1.442695
      %v3637 = vpow.pop %v3636
      %v3638 = vmul.f32 %v3615, 1.442695
      %v3639 = vpow.pop %v3638
      %v3640 = vmul.f32 %v3616, 1.442695
      %v3641 = vpow.pop %v3640
      %v3642 = vmul.f32 %v3617, 1.442695
      %v3643 = vpow.pop %v3642
      %v3644 = vmul.f32 %v3618, 1.442695
      %v3645 = vpow.pop %v3644
      %v3646 = vmul.f32 %v3619, 1.442695
      %v3647 = vpow.pop %v3646
      %v3648 = vmul.f32 %v3620, 1.442695
      %v3649 = vpow.pop %v3648
      %v3650 = vmul.f32 %v3621, 1.442695
      %v3651 = vpow.pop %v3650
      %v3652 = vmul.f32 %v3622, 1.442695
      %v3653 = vpow.pop %v3652
      %v3654 = vmul.f32 %v3623, 1.442695
      %v3655 = vpow.pop %v3654
      %v3656 = vadd.f32 %v3625, %v3627
      %v3657 = vadd.f32 %v3656, %v3629
      %v3658 = vadd.f32 %v3657, %v3631
      %v3659 = vadd.f32 %v3658, %v3633
      %v3660 = vadd.f32 %v3659, %v3635
      %v3661 = vadd.f32 %v3660, %v3637
      %v3662 = vadd.f32 %v3661, %v3639
      %v3663 = vadd.f32 %v3662, %v3641
      %v3664 = vadd.f32 %v3663, %v3643
      %v3665 = vadd.f32 %v3664, %v3645
      %v3666 = vadd.f32 %v3665, %v3647
      %v3667 = vadd.f32 %v3666, %v3649
      %v3668 = vadd.f32 %v3667, %v3651
      %v3669 = vadd.f32 %v3668, %v3653
      %v3670 = vadd.f32 %v3669, %v3655
      %v3671 = vrot.slane %v3670, 4
      %v3672 = vadd.f32 %v3670, %v3671
      %v3673 = vrot.slane %v3672, 2
      %v3674 = vadd.f32 %v3672, %v3673
      %v3675 = vrot.slane %v3674, 1
      %v3676 = vadd.f32 %v3674, %v3675
      %v3677 = vlog2.pop %v3676
      %v3678 = vmul.f32 %v3677, 0.6931472
      %v3679 = vadd.f32 %v3607, %v3678
      %v3680 = vmul.f32 %v3679, -0.0025
      %v3681 = vsel %vm1186, %v3459, 0.0
      %v3682 = vsel %vm1186, %v3460, 0.0
      %v3683 = vadd.f32 %v3681, %v3682
      %v3684 = vsel %vm1186, %v3461, 0.0
      %v3685 = vadd.f32 %v3683, %v3684
      %v3686 = vsel %vm1186, %v3462, 0.0
      %v3687 = vadd.f32 %v3685, %v3686
      %v3688 = vsel %vm1186, %v3463, 0.0
      %v3689 = vadd.f32 %v3687, %v3688
      %v3690 = vsel %vm1186, %v3464, 0.0
      %v3691 = vadd.f32 %v3689, %v3690
      %v3692 = vsel %vm1186, %v3465, 0.0
      %v3693 = vadd.f32 %v3691, %v3692
      %v3694 = vsel %vm1186, %v3466, 0.0
      %v3695 = vadd.f32 %v3693, %v3694
      %v3696 = vsel %vm1186, %v3467, 0.0
      %v3697 = vadd.f32 %v3695, %v3696
      %v3698 = vsel %vm1186, %v3468, 0.0
      %v3699 = vadd.f32 %v3697, %v3698
      %v3700 = vsel %vm1186, %v3469, 0.0
      %v3701 = vadd.f32 %v3699, %v3700
      %v3702 = vsel %vm1186, %v3470, 0.0
      %v3703 = vadd.f32 %v3701, %v3702
      %v3704 = vsel %vm1186, %v3471, 0.0
      %v3705 = vadd.f32 %v3703, %v3704
      %v3706 = vsel %vm1186, %v3472, 0.0
      %v3707 = vadd.f32 %v3705, %v3706
      %v3708 = vsel %vm1186, %v3473, 0.0
      %v3709 = vadd.f32 %v3707, %v3708
      %v3710 = vsel %vm1186, %v3474, 0.0
      %v3711 = vadd.f32 %v3709, %v3710
      %3712 = vadd.xlane.f32.xlu0 %v3711
      %v3713 = vpop.xlane.xlu0 %3712
      %v3714 = vrot.slane %v3713, 4
      %v3715 = vadd.f32 %v3713, %v3714
      %v3716 = vrot.slane %v3715, 2
      %v3717 = vadd.f32 %v3715, %v3716
      %v3718 = vrot.slane %v3717, 1
      %v3719 = vadd.f32 %v3717, %v3718
      %s3720 = vtos %v3719
      %v3721 = vsel %vm1251, %v1455, 0.0
      %3722 = vadd.xlane.f32.xlu0 %v3721
      %v3723 = vpop.xlane.xlu0 %3722
      %v3724 = vrot.slane %v3723, 4
      %v3725 = vadd.f32 %v3723, %v3724
      %v3726 = vrot.slane %v3725, 2
      %v3727 = vadd.f32 %v3725, %v3726
      %v3728 = vrot.slane %v3727, 1
      %v3729 = vadd.f32 %v3727, %v3728
      %s3730 = vtos %v3729
      %s3731 = ssub.f32 %s3720, %s3730
      %v3732 = vsel %vm1251, %v3680, 0.0
      %3733 = vadd.xlane.f32.xlu0 %v3732
      %v3734 = vpop.xlane.xlu0 %3733
      %v3735 = vrot.slane %v3734, 4
      %v3736 = vadd.f32 %v3734, %v3735
      %v3737 = vrot.slane %v3736, 2
      %v3738 = vadd.f32 %v3736, %v3737
      %v3739 = vrot.slane %v3738, 1
      %v3740 = vadd.f32 %v3738, %v3739
      %s3741 = vtos %v3740
      %v3742 = vsel %vm1251, %v1456, 0.0
      %3743 = vadd.xlane.f32.xlu0 %v3742
      %v3744 = vpop.xlane.xlu0 %3743
      %v3745 = vrot.slane %v3744, 4
      %v3746 = vadd.f32 %v3744, %v3745
      %v3747 = vrot.slane %v3746, 2
      %v3748 = vadd.f32 %v3746, %v3747
      %v3749 = vrot.slane %v3748, 1
      %v3750 = vadd.f32 %v3748, %v3749
      %s3751 = vtos %v3750
      %s3752 = ssub.f32 %s3741, %s3751
      %s3753 = sadd.f32 %s3731, %s3752
      %s3754 = smul.f32 %s3753, 0.0078125
      %v3755 = vlaneseq
      %v3756 = vand.u32 %v3755, 127
      %vm3757 = vcmp.eq.s32.totalorder %v3756, 0
      %v3758 = vstv %s1265
      %v3759 = vstv %s3754
      %v3760 = vsel %vm3757, %v3758, %v3759
      %vm3761 = vcmask 8192
      %3762 = vst.msk [vmem:[%s247] sm:$0x1] %vm3761, %v3760
      %p3763 = scmp.lt.s32.totalorder %s15, 1
      %s3764 = scalar_select %p3763, %s15, 1
      %s3765 = scalar_lea.vmem %s4, %s3764
      // Predicated region
      $region44: #{_lambda_.1} parent=35 // pred_check
        %p3766 = pneg %p137
      $region45: #{_lambda_.1} parent=35 // pred_check_branch
        %3768 = sbr.rel (%p3766) target = $region47
      $region46: #{_lambda_.1} parent=35 // pred_region
        _
      $region47: #{_lambda_.1} parent=35 // pred_fallthru
        _
    $region36: #{_lambda_.1} parent=5 // pred_fallthru
      _
    %p3769 = scmp.le.s32.totalorder 2, %s10
    // Predicated region
    $region48: #{_lambda_.1} parent=5 // pred_check
      %p3770 = pneg %p3769
    $region49: #{_lambda_.1} parent=5 // pred_check_branch
      %3772 = sbr.rel (%p3770) target = $region51
    $region50: #{_lambda_.1} parent=5 // pred_region
      %s3773 = ssub.s32 %s10, 2
      // Predicated region
      $region52: #{_lambda_.1} parent=50 // pred_check
        %p3774 = pneg %p143
      $region53: #{_lambda_.1} parent=50 // pred_check_branch
        %3776 = sbr.rel (%p3774) target = $region55
      $region54: #{_lambda_.1} parent=50 // pred_region
        %p3777 = scmp.lt.s32.totalorder %s16, 1
        %s3778 = scalar_select %p3777, %s16, 1
        %s3779 = scalar_lea.vmem %s4, %s3778
      $region55: #{_lambda_.1} parent=50 // pred_fallthru
        _
    $region51: #{_lambda_.1} parent=5 // pred_fallthru
      _
  $region6: #{_lambda_.1} parent=0 // loop_footer
    %s14 = sadd.s32 1, %s10
  $region7: #{_lambda_.1} parent=0 // loop_footer_branch
    %9 = sbr.rel target = $region3
  $region8: #{_lambda_.1} parent=0 // loop_exit
    _

</llo_original>
